<compile_context>
chip_gen: v5e
topology: v5e:2x2
jax: 0.10.0
libtpu: 0.0.40
codegen_flags: <defaults>
</compile_context>

<pallas_src>
import jax
import jax.numpy as jnp
from jax.experimental import pallas as pl
from jax.experimental.pallas import tpu as pltpu

X_DIM, H1, H2, H3, LS = 784, 512, 256, 128, 2
X_PAD = 896    # 784 rounded up to 128 -> lane-dense x loads AND z stores
LS_PAD = 128   # latent lanes padded to 128 -> lane-dense ls stores


def _round_up(n, m):
    return ((n + m - 1) // m) * m


def _pick_tb(batch, block_batch=None):
    """Batch tile: multiple of 16, capped at 512, >= 2 grid steps when possible."""
    if block_batch is not None:
        return max(16, _round_up(block_batch, 16))
    if batch <= 16:
        return 16
    half = _round_up(pl.cdiv(batch, 2), 16)   # >= 2 steps -> both TCs on v7x
    return min(512, half)


def ae_mlp_kernel(x_ref,
                  w1, b1, w2, b2, w3, b3,
                  w4p, b4p, w45, b45,
                  w6, b6, w7, b7, w8p, b8p,
                  z_ref, ls_ref):
    """One batch tile of the fused 8-layer MLP autoencoder."""
    x = x_ref[...]  # bf16 (TB, 896); lanes [784:896] are zero

    def lin(h_bf16, w_ref, b_ref):
        # bf16 x bf16 matmul on the MXU, f32 accumulation, f32 bias add.
        acc = jnp.dot(h_bf16, w_ref[...], preferred_element_type=jnp.float32)
        return acc + b_ref[...]

    def relu_bf16(a_f32):
        # ReLU in f32 (v5e-safe), cast to bf16 only for the next MXU input.
        return jnp.maximum(a_f32, 0.0).astype(jnp.bfloat16)

    # ----- encoder -----
    h = relu_bf16(lin(x, w1, b1))       # (TB, 512)
    h = relu_bf16(lin(h, w2, b2))       # (TB, 256)
    h3 = relu_bf16(lin(h, w3, b3))      # (TB, 128)

    # latent: lanes [0:LS] are the real latent, remaining lanes are zero-pad cols
    ls_ref[...] = lin(h3, w4p, b4p).astype(ls_ref.dtype)

    # ----- decoder (fc4·fc5 pre-fused, feeds directly from h3) -----
    h = relu_bf16(lin(h3, w45, b45))    # (TB, 128)
    h = relu_bf16(lin(h, w6, b6))       # (TB, 256)
    h = relu_bf16(lin(h, w7, b7))       # (TB, 512)
    z_ref[...] = jax.nn.sigmoid(lin(h, w8p, b8p)).astype(z_ref.dtype)


def init_linear(key, fan_in, fan_out):
    # PyTorch nn.Linear default init: U(-1/sqrt(fan_in), 1/sqrt(fan_in)) for W and b.
    kw, kb = jax.random.split(key)
    bound = 1.0 / jnp.sqrt(jnp.float32(fan_in))
    w = jax.random.uniform(kw, (fan_in, fan_out), jnp.float32, -bound, bound)
    b = jax.random.uniform(kb, (1, fan_out), jnp.float32, -bound, bound)
    return w, b


def make_params(key):
    dims = [(X_DIM, H1), (H1, H2), (H2, H3), (H3, LS),
            (LS, H3), (H3, H2), (H2, H1), (H1, X_DIM)]
    keys = jax.random.split(key, len(dims))
    params = []
    for k, (fi, fo) in zip(keys, dims):
        params.extend(init_linear(k, fi, fo))
    return params  # [w1, b1, ..., w8, b8]  (w stored as (in, out))


def _prepare_kernel_params(params):
    """f32 PyTorch-layout params -> bf16 weights, f32 biases, padded/fused layers."""
    (w1, b1, w2, b2, w3, b3, w4, b4,
     w5, b5, w6, b6, w7, b7, w8, b8) = params

    def bf(w):
        return w.astype(jnp.bfloat16)

    # Zero-row-pad fc1 so the dominant matmul gets an unmasked, lane-dense K=896.
    w1p = jnp.zeros((X_PAD, H1), jnp.float32).at[:X_DIM, :].set(w1)

    # Lane-pad fc4 so the latent lands in a lane-dense (TB, 128) slab.
    w4p = jnp.zeros((H3, LS_PAD), jnp.float32).at[:, :LS].set(w4)
    b4p = jnp.zeros((1, LS_PAD), jnp.float32).at[:, :LS].set(b4)

    # Fuse fc4 -> fc5 (no activation in between): relu(h3 @ (w4@w5) + (b4@w5 + b5)).
    w45 = w4 @ w5
    b45 = b4 @ w5 + b5

    # Lane-pad fc8 so the reconstruction lands in a lane-dense (TB, 896) slab.
    w8p = jnp.zeros((H1, X_PAD), jnp.float32).at[:, :X_DIM].set(w8)
    b8p = jnp.zeros((1, X_PAD), jnp.float32).at[:, :X_DIM].set(b8)

    return [bf(w1p), b1, bf(w2), b2, bf(w3), b3,
            bf(w4p), b4p, bf(w45), b45,
            bf(w6), b6, bf(w7), b7, bf(w8p), b8p]


def ae_mlp_p_forward(x, params, block_batch=None):
    """x: any shape reshapable to (-1, 784) (e.g. (B,1,28,28)). Returns (z, ls) in f32."""
    # Single pass: cast straight to bf16, then one pad (batch rows + 784->896 lanes).
    x_bf = x.reshape(-1, X_DIM).astype(jnp.bfloat16)
    batch = x_bf.shape[0]

    tb = _pick_tb(batch, block_batch)
    padded = _round_up(batch, tb)
    x_bf = jnp.pad(x_bf, ((0, padded - batch), (0, X_PAD - X_DIM)))

    kparams = _prepare_kernel_params(params)

    def const_spec(p):
        # Full-array block, constant index_map, single-buffered: the weight is
        # DMA'd once and stays VMEM-resident across all batch grid steps.
        return pl.BlockSpec(p.shape, lambda i, _nd=p.ndim: (0,) * _nd,
                            pipeline_mode=pl.Buffered(1))

    grid = (padded // tb,)
    z_pad, ls_pad = pl.pallas_call(
        ae_mlp_kernel,
        out_shape=(
            jax.ShapeDtypeStruct((padded, X_PAD), jnp.bfloat16),   # padded reconstruction
            jax.ShapeDtypeStruct((padded, LS_PAD), jnp.bfloat16),  # padded latent
        ),
        grid=grid,
        in_specs=[pl.BlockSpec((tb, X_PAD), lambda i: (i, 0))]
                 + [const_spec(p) for p in kparams],
        out_specs=(
            pl.BlockSpec((tb, X_PAD), lambda i: (i, 0)),
            pl.BlockSpec((tb, LS_PAD), lambda i: (i, 0)),
        ),
        compiler_params=pltpu.CompilerParams(
            dimension_semantics=("parallel",),
            # TB=512 + single-buffered weights is ~13 MB; 32 MiB keeps it legal
            # on v5e (16 MiB default scoped VMEM) and within v7x's 64 MiB physical.
            vmem_limit_bytes=32 * 1024 * 1024),
    )(x_bf, *kparams)

    z = z_pad[:batch, :X_DIM].astype(jnp.float32)
    ls = ls_pad[:batch, :LS].astype(jnp.float32)
    return z, ls


def reference_forward(x, params):
    """Exact f32 PyTorch semantics (unfused, unpadded)."""
    xf = x.reshape(-1, X_DIM).astype(jnp.float32)
    (w1, b1, w2, b2, w3, b3, w4, b4,
     w5, b5, w6, b6, w7, b7, w8, b8) = params
    h = jnp.maximum(xf @ w1 + b1, 0)
    h = jnp.maximum(h @ w2 + b2, 0)
    h = jnp.maximum(h @ w3 + b3, 0)
    ls = h @ w4 + b4
    h = jnp.maximum(ls @ w5 + b5, 0)
    h = jnp.maximum(h @ w6 + b6, 0)
    h = jnp.maximum(h @ w7 + b7, 0)
    z = jax.nn.sigmoid(h @ w8 + b8)
    return z, ls


if __name__ == "__main__":
    key = jax.random.PRNGKey(0)
    k_params, k_x = jax.random.split(key)

    params = make_params(k_params)
    # MNIST-like input: (batch=32, channels=1, 28, 28), NCHW as in PyTorch.
    x = jax.random.uniform(k_x, (32, 1, 28, 28), jnp.float32)

    # Auto tile pick -> tb=16, grid=(2,): exercises the parallel batch grid
    # with VMEM-resident single-buffered weights.
    z, ls = ae_mlp_p_forward(x, params)
    jax.block_until_ready((z, ls))

    z_ref, ls_ref = reference_forward(x, params)
    assert z.shape == (32, X_DIM) and ls.shape == (32, LS)
    # bf16 weights/activations/outputs vs f32 reference -> loose absolute tolerance.
    assert jnp.allclose(z, z_ref, atol=1e-2)
    assert jnp.allclose(ls, ls_ref, atol=1e-2)

    print("KERNEL_OK")
</pallas_src>

<mosaic_0001>
module attributes {stable_mosaic.version = 11 : i64} {
  func.func @ae_mlp_kernel(%arg0: i32, %arg1: memref<16x896xbf16, #tpu.memory_space<vmem>>, %arg2: memref<896x512xbf16, #tpu.memory_space<vmem>>, %arg3: memref<1x512xf32, #tpu.memory_space<vmem>>, %arg4: memref<512x256xbf16, #tpu.memory_space<vmem>>, %arg5: memref<1x256xf32, #tpu.memory_space<vmem>>, %arg6: memref<256x128xbf16, #tpu.memory_space<vmem>>, %arg7: memref<1x128xf32, #tpu.memory_space<vmem>>, %arg8: memref<128x128xbf16, #tpu.memory_space<vmem>>, %arg9: memref<1x128xf32, #tpu.memory_space<vmem>>, %arg10: memref<128x128xbf16, #tpu.memory_space<vmem>>, %arg11: memref<1x128xf32, #tpu.memory_space<vmem>>, %arg12: memref<128x256xbf16, #tpu.memory_space<vmem>>, %arg13: memref<1x256xf32, #tpu.memory_space<vmem>>, %arg14: memref<256x512xbf16, #tpu.memory_space<vmem>>, %arg15: memref<1x512xf32, #tpu.memory_space<vmem>>, %arg16: memref<512x896xbf16, #tpu.memory_space<vmem>>, %arg17: memref<1x896xf32, #tpu.memory_space<vmem>>, %arg18: memref<16x896xbf16, #tpu.memory_space<vmem>>, %arg19: memref<16x128xbf16, #tpu.memory_space<vmem>>) attributes {dimension_semantics = [#tpu.dimension_semantics<parallel>], iteration_bounds = array<i64: 2>, scalar_prefetch = 0 : i64, scratch_operands = 0 : i64, tpu.core_type = #tpu.core_type<tc>, window_params = [{transform_indices = @transform_0, window_bounds = array<i64: 16, 896>}, {pipeline_mode = #tpu.pipeline_mode<synchronous>, transform_indices = @transform_1, window_bounds = array<i64: 896, 512>}, {pipeline_mode = #tpu.pipeline_mode<synchronous>, transform_indices = @transform_2, window_bounds = array<i64: 1, 512>}, {pipeline_mode = #tpu.pipeline_mode<synchronous>, transform_indices = @transform_3, window_bounds = array<i64: 512, 256>}, {pipeline_mode = #tpu.pipeline_mode<synchronous>, transform_indices = @transform_4, window_bounds = array<i64: 1, 256>}, {pipeline_mode = #tpu.pipeline_mode<synchronous>, transform_indices = @transform_5, window_bounds = array<i64: 256, 128>}, {pipeline_mode = #tpu.pipeline_mode<synchronous>, transform_indices = @transform_6, window_bounds = array<i64: 1, 128>}, {pipeline_mode = #tpu.pipeline_mode<synchronous>, transform_indices = @transform_7, window_bounds = array<i64: 128, 128>}, {pipeline_mode = #tpu.pipeline_mode<synchronous>, transform_indices = @transform_8, window_bounds = array<i64: 1, 128>}, {pipeline_mode = #tpu.pipeline_mode<synchronous>, transform_indices = @transform_9, window_bounds = array<i64: 128, 128>}, {pipeline_mode = #tpu.pipeline_mode<synchronous>, transform_indices = @transform_10, window_bounds = array<i64: 1, 128>}, {pipeline_mode = #tpu.pipeline_mode<synchronous>, transform_indices = @transform_11, window_bounds = array<i64: 128, 256>}, {pipeline_mode = #tpu.pipeline_mode<synchronous>, transform_indices = @transform_12, window_bounds = array<i64: 1, 256>}, {pipeline_mode = #tpu.pipeline_mode<synchronous>, transform_indices = @transform_13, window_bounds = array<i64: 256, 512>}, {pipeline_mode = #tpu.pipeline_mode<synchronous>, transform_indices = @transform_14, window_bounds = array<i64: 1, 512>}, {pipeline_mode = #tpu.pipeline_mode<synchronous>, transform_indices = @transform_15, window_bounds = array<i64: 512, 896>}, {pipeline_mode = #tpu.pipeline_mode<synchronous>, transform_indices = @transform_16, window_bounds = array<i64: 1, 896>}, {transform_indices = @transform_17, window_bounds = array<i64: 16, 896>}, {transform_indices = @transform_18, window_bounds = array<i64: 16, 128>}]} {
    %c0 = arith.constant 0 : index
    %c0_0 = arith.constant 0 : index
    %0 = vector.load %arg1[%c0, %c0_0] : memref<16x896xbf16, #tpu.memory_space<vmem>>, vector<16x896xbf16>
    %c0_1 = arith.constant 0 : index
    %c0_2 = arith.constant 0 : index
    %1 = vector.load %arg2[%c0_1, %c0_2] : memref<896x512xbf16, #tpu.memory_space<vmem>>, vector<896x512xbf16>
    %cst = arith.constant dense<0.000000e+00> : vector<16x512xf32>
    %2 = tpu.matmul %0, %1, %cst {dimension_numbers = #tpu.dot_dimension_numbers<[1], [0], [0], [1], [0, 0, 1, 1], [], []>} : vector<16x896xbf16>, vector<896x512xbf16>, vector<16x512xf32> -> vector<16x512xf32>
    %c0_3 = arith.constant 0 : index
    %c0_4 = arith.constant 0 : index
    %3 = vector.load %arg3[%c0_3, %c0_4] : memref<1x512xf32, #tpu.memory_space<vmem>>, vector<1x512xf32>
    %4 = vector.broadcast %3 : vector<1x512xf32> to vector<16x512xf32>
    %5 = arith.addf %2, %4 : vector<16x512xf32>
    %cst_5 = arith.constant 0.000000e+00 : f32
    %6 = vector.broadcast %cst_5 : f32 to vector<16x512xf32>
    %7 = arith.maximumf %5, %6 : vector<16x512xf32>
    %8 = arith.truncf %7 : vector<16x512xf32> to vector<16x512xbf16>
    %c0_6 = arith.constant 0 : index
    %c0_7 = arith.constant 0 : index
    %9 = vector.load %arg4[%c0_6, %c0_7] : memref<512x256xbf16, #tpu.memory_space<vmem>>, vector<512x256xbf16>
    %cst_8 = arith.constant dense<0.000000e+00> : vector<16x256xf32>
    %10 = tpu.matmul %8, %9, %cst_8 {dimension_numbers = #tpu.dot_dimension_numbers<[1], [0], [0], [1], [0, 0, 1, 1], [], []>} : vector<16x512xbf16>, vector<512x256xbf16>, vector<16x256xf32> -> vector<16x256xf32>
    %c0_9 = arith.constant 0 : index
    %c0_10 = arith.constant 0 : index
    %11 = vector.load %arg5[%c0_9, %c0_10] : memref<1x256xf32, #tpu.memory_space<vmem>>, vector<1x256xf32>
    %12 = vector.broadcast %11 : vector<1x256xf32> to vector<16x256xf32>
    %13 = arith.addf %10, %12 : vector<16x256xf32>
    %cst_11 = arith.constant 0.000000e+00 : f32
    %14 = vector.broadcast %cst_11 : f32 to vector<16x256xf32>
    %15 = arith.maximumf %13, %14 : vector<16x256xf32>
    %16 = arith.truncf %15 : vector<16x256xf32> to vector<16x256xbf16>
    %c0_12 = arith.constant 0 : index
    %c0_13 = arith.constant 0 : index
    %17 = vector.load %arg6[%c0_12, %c0_13] : memref<256x128xbf16, #tpu.memory_space<vmem>>, vector<256x128xbf16>
    %cst_14 = arith.constant dense<0.000000e+00> : vector<16x128xf32>
    %18 = tpu.matmul %16, %17, %cst_14 {dimension_numbers = #tpu.dot_dimension_numbers<[1], [0], [0], [1], [0, 0, 1, 1], [], []>} : vector<16x256xbf16>, vector<256x128xbf16>, vector<16x128xf32> -> vector<16x128xf32>
    %c0_15 = arith.constant 0 : index
    %c0_16 = arith.constant 0 : index
    %19 = vector.load %arg7[%c0_15, %c0_16] : memref<1x128xf32, #tpu.memory_space<vmem>>, vector<1x128xf32>
    %20 = vector.broadcast %19 : vector<1x128xf32> to vector<16x128xf32>
    %21 = arith.addf %18, %20 : vector<16x128xf32>
    %cst_17 = arith.constant 0.000000e+00 : f32
    %22 = vector.broadcast %cst_17 : f32 to vector<16x128xf32>
    %23 = arith.maximumf %21, %22 : vector<16x128xf32>
    %24 = arith.truncf %23 : vector<16x128xf32> to vector<16x128xbf16>
    %c0_18 = arith.constant 0 : index
    %c0_19 = arith.constant 0 : index
    %25 = vector.load %arg8[%c0_18, %c0_19] : memref<128x128xbf16, #tpu.memory_space<vmem>>, vector<128x128xbf16>
    %cst_20 = arith.constant dense<0.000000e+00> : vector<16x128xf32>
    %26 = tpu.matmul %24, %25, %cst_20 {dimension_numbers = #tpu.dot_dimension_numbers<[1], [0], [0], [1], [0, 0, 1, 1], [], []>} : vector<16x128xbf16>, vector<128x128xbf16>, vector<16x128xf32> -> vector<16x128xf32>
    %c0_21 = arith.constant 0 : index
    %c0_22 = arith.constant 0 : index
    %27 = vector.load %arg9[%c0_21, %c0_22] : memref<1x128xf32, #tpu.memory_space<vmem>>, vector<1x128xf32>
    %28 = vector.broadcast %27 : vector<1x128xf32> to vector<16x128xf32>
    %29 = arith.addf %26, %28 : vector<16x128xf32>
    %30 = arith.truncf %29 : vector<16x128xf32> to vector<16x128xbf16>
    %c0_23 = arith.constant 0 : index
    %c0_24 = arith.constant 0 : index
    %31 = vector.load %arg19[%c0_23, %c0_24] : memref<16x128xbf16, #tpu.memory_space<vmem>>, vector<16x128xbf16>
    tpu.vector_store %arg19[%c0_23, %c0_24], %30 {strides = array<i32>} : memref<16x128xbf16, #tpu.memory_space<vmem>>, vector<16x128xbf16>,
    %c0_25 = arith.constant 0 : index
    %c0_26 = arith.constant 0 : index
    %32 = vector.load %arg10[%c0_25, %c0_26] : memref<128x128xbf16, #tpu.memory_space<vmem>>, vector<128x128xbf16>
    %cst_27 = arith.constant dense<0.000000e+00> : vector<16x128xf32>
    %33 = tpu.matmul %24, %32, %cst_27 {dimension_numbers = #tpu.dot_dimension_numbers<[1], [0], [0], [1], [0, 0, 1, 1], [], []>} : vector<16x128xbf16>, vector<128x128xbf16>, vector<16x128xf32> -> vector<16x128xf32>
    %c0_28 = arith.constant 0 : index
    %c0_29 = arith.constant 0 : index
    %34 = vector.load %arg11[%c0_28, %c0_29] : memref<1x128xf32, #tpu.memory_space<vmem>>, vector<1x128xf32>
    %35 = vector.broadcast %34 : vector<1x128xf32> to vector<16x128xf32>
    %36 = arith.addf %33, %35 : vector<16x128xf32>
    %cst_30 = arith.constant 0.000000e+00 : f32
    %37 = vector.broadcast %cst_30 : f32 to vector<16x128xf32>
    %38 = arith.maximumf %36, %37 : vector<16x128xf32>
    %39 = arith.truncf %38 : vector<16x128xf32> to vector<16x128xbf16>
    %c0_31 = arith.constant 0 : index
    %c0_32 = arith.constant 0 : index
    %40 = vector.load %arg12[%c0_31, %c0_32] : memref<128x256xbf16, #tpu.memory_space<vmem>>, vector<128x256xbf16>
    %cst_33 = arith.constant dense<0.000000e+00> : vector<16x256xf32>
    %41 = tpu.matmul %39, %40, %cst_33 {dimension_numbers = #tpu.dot_dimension_numbers<[1], [0], [0], [1], [0, 0, 1, 1], [], []>} : vector<16x128xbf16>, vector<128x256xbf16>, vector<16x256xf32> -> vector<16x256xf32>
    %c0_34 = arith.constant 0 : index
    %c0_35 = arith.constant 0 : index
    %42 = vector.load %arg13[%c0_34, %c0_35] : memref<1x256xf32, #tpu.memory_space<vmem>>, vector<1x256xf32>
    %43 = vector.broadcast %42 : vector<1x256xf32> to vector<16x256xf32>
    %44 = arith.addf %41, %43 : vector<16x256xf32>
    %cst_36 = arith.constant 0.000000e+00 : f32
    %45 = vector.broadcast %cst_36 : f32 to vector<16x256xf32>
    %46 = arith.maximumf %44, %45 : vector<16x256xf32>
    %47 = arith.truncf %46 : vector<16x256xf32> to vector<16x256xbf16>
    %c0_37 = arith.constant 0 : index
    %c0_38 = arith.constant 0 : index
    %48 = vector.load %arg14[%c0_37, %c0_38] : memref<256x512xbf16, #tpu.memory_space<vmem>>, vector<256x512xbf16>
    %cst_39 = arith.constant dense<0.000000e+00> : vector<16x512xf32>
    %49 = tpu.matmul %47, %48, %cst_39 {dimension_numbers = #tpu.dot_dimension_numbers<[1], [0], [0], [1], [0, 0, 1, 1], [], []>} : vector<16x256xbf16>, vector<256x512xbf16>, vector<16x512xf32> -> vector<16x512xf32>
    %c0_40 = arith.constant 0 : index
    %c0_41 = arith.constant 0 : index
    %50 = vector.load %arg15[%c0_40, %c0_41] : memref<1x512xf32, #tpu.memory_space<vmem>>, vector<1x512xf32>
    %51 = vector.broadcast %50 : vector<1x512xf32> to vector<16x512xf32>
    %52 = arith.addf %49, %51 : vector<16x512xf32>
    %cst_42 = arith.constant 0.000000e+00 : f32
    %53 = vector.broadcast %cst_42 : f32 to vector<16x512xf32>
    %54 = arith.maximumf %52, %53 : vector<16x512xf32>
    %55 = arith.truncf %54 : vector<16x512xf32> to vector<16x512xbf16>
    %c0_43 = arith.constant 0 : index
    %c0_44 = arith.constant 0 : index
    %56 = vector.load %arg16[%c0_43, %c0_44] : memref<512x896xbf16, #tpu.memory_space<vmem>>, vector<512x896xbf16>
    %cst_45 = arith.constant dense<0.000000e+00> : vector<16x896xf32>
    %57 = tpu.matmul %55, %56, %cst_45 {dimension_numbers = #tpu.dot_dimension_numbers<[1], [0], [0], [1], [0, 0, 1, 1], [], []>} : vector<16x512xbf16>, vector<512x896xbf16>, vector<16x896xf32> -> vector<16x896xf32>
    %c0_46 = arith.constant 0 : index
    %c0_47 = arith.constant 0 : index
    %58 = vector.load %arg17[%c0_46, %c0_47] : memref<1x896xf32, #tpu.memory_space<vmem>>, vector<1x896xf32>
    %59 = vector.broadcast %58 : vector<1x896xf32> to vector<16x896xf32>
    %60 = arith.addf %57, %59 : vector<16x896xf32>
    %61 = arith.negf %60 : vector<16x896xf32>
    %62 = math.exp %61 : vector<16x896xf32>
    %cst_48 = arith.constant 1.000000e+00 : f32
    %63 = vector.broadcast %cst_48 : f32 to vector<16x896xf32>
    %64 = arith.addf %63, %62 : vector<16x896xf32>
    %65 = arith.divf %63, %64 : vector<16x896xf32>
    %66 = arith.truncf %65 : vector<16x896xf32> to vector<16x896xbf16>
    %c0_49 = arith.constant 0 : index
    %c0_50 = arith.constant 0 : index
    %67 = vector.load %arg18[%c0_49, %c0_50] : memref<16x896xbf16, #tpu.memory_space<vmem>>, vector<16x896xbf16>
    tpu.vector_store %arg18[%c0_49, %c0_50], %66 {strides = array<i32>} : memref<16x896xbf16, #tpu.memory_space<vmem>>, vector<16x896xbf16>,
    return
  }
  func.func @transform_0(%arg0: i32) -> (i32, i32) {
    %c0_i32 = arith.constant 0 : i32
    %c0_i32_0 = arith.constant 0 : i32
    return %arg0, %c0_i32 : i32, i32
  }
  func.func @transform_1(%arg0: i32) -> (i32, i32) {
    %c0_i32 = arith.constant 0 : i32
    %c0_i32_0 = arith.constant 0 : i32
    %c0_i32_1 = arith.constant 0 : i32
    return %c0_i32, %c0_i32_0 : i32, i32
  }
  func.func @transform_2(%arg0: i32) -> (i32, i32) {
    %c0_i32 = arith.constant 0 : i32
    %c0_i32_0 = arith.constant 0 : i32
    %c0_i32_1 = arith.constant 0 : i32
    return %c0_i32, %c0_i32_0 : i32, i32
  }
  func.func @transform_3(%arg0: i32) -> (i32, i32) {
    %c0_i32 = arith.constant 0 : i32
    %c0_i32_0 = arith.constant 0 : i32
    %c0_i32_1 = arith.constant 0 : i32
    return %c0_i32, %c0_i32_0 : i32, i32
  }
  func.func @transform_4(%arg0: i32) -> (i32, i32) {
    %c0_i32 = arith.constant 0 : i32
    %c0_i32_0 = arith.constant 0 : i32
    %c0_i32_1 = arith.constant 0 : i32
    return %c0_i32, %c0_i32_0 : i32, i32
  }
  func.func @transform_5(%arg0: i32) -> (i32, i32) {
    %c0_i32 = arith.constant 0 : i32
    %c0_i32_0 = arith.constant 0 : i32
    %c0_i32_1 = arith.constant 0 : i32
    return %c0_i32, %c0_i32_0 : i32, i32
  }
  func.func @transform_6(%arg0: i32) -> (i32, i32) {
    %c0_i32 = arith.constant 0 : i32
    %c0_i32_0 = arith.constant 0 : i32
    %c0_i32_1 = arith.constant 0 : i32
    return %c0_i32, %c0_i32_0 : i32, i32
  }
  func.func @transform_7(%arg0: i32) -> (i32, i32) {
    %c0_i32 = arith.constant 0 : i32
    %c0_i32_0 = arith.constant 0 : i32
    %c0_i32_1 = arith.constant 0 : i32
    return %c0_i32, %c0_i32_0 : i32, i32
  }
  func.func @transform_8(%arg0: i32) -> (i32, i32) {
    %c0_i32 = arith.constant 0 : i32
    %c0_i32_0 = arith.constant 0 : i32
    %c0_i32_1 = arith.constant 0 : i32
    return %c0_i32, %c0_i32_0 : i32, i32
  }
  func.func @transform_9(%arg0: i32) -> (i32, i32) {
    %c0_i32 = arith.constant 0 : i32
    %c0_i32_0 = arith.constant 0 : i32
    %c0_i32_1 = arith.constant 0 : i32
    return %c0_i32, %c0_i32_0 : i32, i32
  }
  func.func @transform_10(%arg0: i32) -> (i32, i32) {
    %c0_i32 = arith.constant 0 : i32
    %c0_i32_0 = arith.constant 0 : i32
    %c0_i32_1 = arith.constant 0 : i32
    return %c0_i32, %c0_i32_0 : i32, i32
  }
  func.func @transform_11(%arg0: i32) -> (i32, i32) {
    %c0_i32 = arith.constant 0 : i32
    %c0_i32_0 = arith.constant 0 : i32
    %c0_i32_1 = arith.constant 0 : i32
    return %c0_i32, %c0_i32_0 : i32, i32
  }
  func.func @transform_12(%arg0: i32) -> (i32, i32) {
    %c0_i32 = arith.constant 0 : i32
    %c0_i32_0 = arith.constant 0 : i32
    %c0_i32_1 = arith.constant 0 : i32
    return %c0_i32, %c0_i32_0 : i32, i32
  }
  func.func @transform_13(%arg0: i32) -> (i32, i32) {
    %c0_i32 = arith.constant 0 : i32
    %c0_i32_0 = arith.constant 0 : i32
    %c0_i32_1 = arith.constant 0 : i32
    return %c0_i32, %c0_i32_0 : i32, i32
  }
  func.func @transform_14(%arg0: i32) -> (i32, i32) {
    %c0_i32 = arith.constant 0 : i32
    %c0_i32_0 = arith.constant 0 : i32
    %c0_i32_1 = arith.constant 0 : i32
    return %c0_i32, %c0_i32_0 : i32, i32
  }
  func.func @transform_15(%arg0: i32) -> (i32, i32) {
    %c0_i32 = arith.constant 0 : i32
    %c0_i32_0 = arith.constant 0 : i32
    %c0_i32_1 = arith.constant 0 : i32
    return %c0_i32, %c0_i32_0 : i32, i32
  }
  func.func @transform_16(%arg0: i32) -> (i32, i32) {
    %c0_i32 = arith.constant 0 : i32
    %c0_i32_0 = arith.constant 0 : i32
    %c0_i32_1 = arith.constant 0 : i32
    return %c0_i32, %c0_i32_0 : i32, i32
  }
  func.func @transform_17(%arg0: i32) -> (i32, i32) {
    %c0_i32 = arith.constant 0 : i32
    %c0_i32_0 = arith.constant 0 : i32
    return %arg0, %c0_i32 : i32, i32
  }
  func.func @transform_18(%arg0: i32) -> (i32, i32) {
    %c0_i32 = arith.constant 0 : i32
    %c0_i32_0 = arith.constant 0 : i32
    return %arg0, %c0_i32 : i32, i32
  }
}

</mosaic_0001>

<llo_original>
// kernel: tpu_custom_call.1
$region0: #{tpu_custom_call.1}
  #allocation0 [shape = 'u32[]', space=smem, size = 0x4, offset = 0x4, fixed_abs, tag = 'smem constant byte address 0x4 - core index']
  #allocation1 [shape = 'u32[72,128]{1,0:T(1,128)}', space=vmem, size = 0x9000, scoped, tag = 'internal scratch']
  %s0 = inlined_call_operand.hbm [shape: bf16[32,896], index: 0, kind: input, shape index: {}]
  %s1 = inlined_call_operand.hbm [shape: bf16[896,512], index: 1, kind: input, shape index: {}]
  %s2 = inlined_call_operand.hbm [shape: f32[1,512], index: 2, kind: input, shape index: {}]
  %s3 = inlined_call_operand.hbm [shape: bf16[512,256], index: 3, kind: input, shape index: {}]
  %s4 = inlined_call_operand.vmem [shape: f32[1,256], index: 4, kind: input, shape index: {}]
  %s5 = inlined_call_operand.hbm [shape: bf16[256,128], index: 5, kind: input, shape index: {}]
  %s6 = inlined_call_operand.vmem [shape: f32[1,128], index: 6, kind: input, shape index: {}]
  %s7 = inlined_call_operand.hbm [shape: bf16[128,128], index: 7, kind: input, shape index: {}]
  %s8 = inlined_call_operand.hbm [shape: f32[1,128], index: 8, kind: input, shape index: {}]
  %s9 = inlined_call_operand.hbm [shape: bf16[128,128], index: 9, kind: input, shape index: {}]
  %s10 = inlined_call_operand.hbm [shape: f32[1,128], index: 10, kind: input, shape index: {}]
  %s11 = inlined_call_operand.hbm [shape: bf16[128,256], index: 11, kind: input, shape index: {}]
  %s12 = inlined_call_operand.hbm [shape: f32[1,256], index: 12, kind: input, shape index: {}]
  %s13 = inlined_call_operand.hbm [shape: bf16[256,512], index: 13, kind: input, shape index: {}]
  %s14 = inlined_call_operand.vmem [shape: f32[1,512], index: 14, kind: input, shape index: {}]
  %s15 = inlined_call_operand.hbm [shape: bf16[512,896], index: 15, kind: input, shape index: {}]
  %s16 = inlined_call_operand.vmem [shape: f32[1,896], index: 16, kind: input, shape index: {}]
  %s17 = inlined_call_operand.hbm [shape: bf16[32,896], index: 17, kind: output, shape index: {0}]
  %s18 = inlined_call_operand.hbm [shape: bf16[32,128], index: 18, kind: output, shape index: {1}]
  %19 = xla_tuple %s17, %s18
  %s20 = sld [smem:[#allocation0]]
  $region161: #{tpu_custom_call.1} parent=0
    _
  %s22 = ssub.s32 1, %s20
  %s23 = scalar_select 0, %s22, %s20
  $region1: #{tpu_custom_call.1} parent=0
    #allocation2 [shape = 'u8[57344]{0}', space=vmem, size = 0xe000, scoped, tag = 'input window, operand 0']
    #allocation3 [shape = 's32[2]{0}', space=sflag, size = 0x8, scoped, tag = 'scoped memory for tpu_custom_call.1']
    #allocation4 [shape = 's32[2]{0}', space=sflag, size = 0x8, scoped, tag = 'scoped memory for tpu_custom_call.1']
    #allocation5 [shape = 'u8[917504]{0}', space=vmem, size = 0xe0000, scoped, tag = 'input window, operand 1, single buffered']
    #allocation6 [shape = 's32[1]{0}', space=sflag, size = 0x4, scoped, tag = 'scoped memory for tpu_custom_call.1']
    #allocation7 [shape = 'u8[2048]{0}', space=vmem, size = 0x800, scoped, tag = 'input window, operand 2, single buffered']
    #allocation8 [shape = 'u8[262144]{0}', space=vmem, size = 0x40000, scoped, tag = 'input window, operand 3, single buffered']
    #allocation9 [shape = 's32[1]{0}', space=sflag, size = 0x4, scoped, tag = 'scoped memory for tpu_custom_call.1']
    #allocation10 [shape = 'u8[65536]{0}', space=vmem, size = 0x10000, scoped, tag = 'input window, operand 5, single buffered']
    #allocation11 [shape = 'u8[32768]{0}', space=vmem, size = 0x8000, scoped, tag = 'input window, operand 7, single buffered']
    #allocation12 [shape = 's32[1]{0}', space=sflag, size = 0x4, scoped, tag = 'scoped memory for tpu_custom_call.1']
    #allocation13 [shape = 'u8[512]{0}', space=vmem, size = 0x400, scoped, tag = 'input window, operand 8, single buffered']
    #allocation14 [shape = 'u8[32768]{0}', space=vmem, size = 0x8000, scoped, tag = 'input window, operand 9, single buffered']
    #allocation15 [shape = 's32[1]{0}', space=sflag, size = 0x4, scoped, tag = 'scoped memory for tpu_custom_call.1']
    #allocation16 [shape = 'u8[512]{0}', space=vmem, size = 0x400, scoped, tag = 'input window, operand 10, single buffered']
    #allocation17 [shape = 'u8[65536]{0}', space=vmem, size = 0x10000, scoped, tag = 'input window, operand 11, single buffered']
    #allocation18 [shape = 's32[1]{0}', space=sflag, size = 0x4, scoped, tag = 'scoped memory for tpu_custom_call.1']
    #allocation19 [shape = 'u8[1024]{0}', space=vmem, size = 0x400, scoped, tag = 'input window, operand 12, single buffered']
    #allocation20 [shape = 'u8[262144]{0}', space=vmem, size = 0x40000, scoped, tag = 'input window, operand 13, single buffered']
    #allocation21 [shape = 's32[1]{0}', space=sflag, size = 0x4, scoped, tag = 'scoped memory for tpu_custom_call.1']
    #allocation22 [shape = 'u8[917504]{0}', space=vmem, size = 0xe0000, scoped, tag = 'input window, operand 15, single buffered']
    #allocation23 [shape = 'u8[57344]{0}', space=vmem, size = 0xe000, scoped, tag = 'output window, operand 0']
    #allocation24 [shape = 'u8[8192]{0}', space=vmem, size = 0x2000, scoped, tag = 'output window, operand 1']
    #allocation25 [shape = 's32[2]{0}', space=sflag, size = 0x8, scoped, tag = 'scoped memory for tpu_custom_call.1']
    %24 = vsyncpa [#allocation3], 0
    %s25 = scalar_lea.sflag [#allocation3], 1
    %26 = vsyncpa %s25, 0
    %27 = vsyncpa [#allocation6], 0
    %28 = vsyncpa [#allocation9], 0
    %29 = vsyncpa [#allocation12], 0
    %30 = vsyncpa [#allocation15], 0
    %31 = vsyncpa [#allocation18], 0
    %32 = vsyncpa [#allocation21], 0
    %33 = vsyncpa [#allocation4], 0
    %s34 = scalar_lea.sflag [#allocation4], 1
    %35 = vsyncpa %s34, 0
    %36 = vsyncpa [#allocation25], 0
    %s37 = scalar_lea.sflag [#allocation25], 1
    %38 = vsyncpa %s37, 0
    loop: start=0, step=1, limit=4
    $region2: #{tpu_custom_call.1} parent=1 // loop_pre_header
      _
    $region3: #{tpu_custom_call.1} parent=1 // loop_header
      %s40 = sphi 0, %s44
      %p41 = scmp.ge.s32.totalorder %s40, 4
      %s50 = sphi 0, %s52
      %s53 = sphi 0, %s50
      %s54 = sphi 0, %s53
      %s70 = sphi 0, %s54
      %s74 = sphi 0, %s74
      %s76 = sphi 0, %s74
      %s77 = sphi 0, %s76
      %s91 = sphi 0, %s77
      %s95 = sphi 0, %s95
      %s97 = sphi 0, %s95
      %s98 = sphi 0, %s97
      %s112 = sphi 0, %s98
      %s116 = sphi 0, %s116
      %s118 = sphi 0, %s116
      %s119 = sphi 0, %s118
      %s133 = sphi 0, %s119
      %s137 = sphi 0, %s137
      %s139 = sphi 0, %s137
      %s140 = sphi 0, %s139
      %s154 = sphi 0, %s140
      %s158 = sphi 0, %s158
      %s160 = sphi 0, %s158
      %s161 = sphi 0, %s160
      %s175 = sphi 0, %s161
      %s179 = sphi 0, %s179
      %s181 = sphi 0, %s179
      %s182 = sphi 0, %s181
      %s196 = sphi 0, %s182
      %s200 = sphi 0, %s200
      %s202 = sphi 0, %s200
      %s203 = sphi 0, %s202
      %s217 = sphi 0, %s203
      %s221 = sphi 0, %s221
      %s223 = sphi 0, %s221
      %s224 = sphi 0, %s223
      %s238 = sphi 0, %s224
      %s242 = sphi 0, %s242
      %s244 = sphi 0, %s242
      %s245 = sphi 0, %s244
      %s259 = sphi 0, %s245
      %s263 = sphi 0, %s263
      %s265 = sphi 0, %s263
      %s266 = sphi 0, %s265
      %s280 = sphi 0, %s266
      %s284 = sphi 0, %s284
      %s286 = sphi 0, %s284
      %s287 = sphi 0, %s286
      %s301 = sphi 0, %s287
      %s305 = sphi 0, %s305
      %s307 = sphi 0, %s305
      %s308 = sphi 0, %s307
      %s322 = sphi 0, %s308
      %s326 = sphi 0, %s326
      %s328 = sphi 0, %s326
      %s329 = sphi 0, %s328
      %s343 = sphi 0, %s329
      %s347 = sphi 0, %s347
      %s349 = sphi 0, %s347
      %s350 = sphi 0, %s349
      %s364 = sphi 0, %s350
      %s368 = sphi 0, %s368
      %s370 = sphi 0, %s368
      %s371 = sphi 0, %s370
      %s385 = sphi 0, %s371
      %s389 = sphi 0, %s389
      %s391 = sphi 0, %s389
      %s392 = sphi 0, %s391
      %s406 = sphi 0, %s392
      %s412 = sphi 0, %s414
      %s415 = sphi 0, %s412
      %s416 = sphi 0, %s415
      %s432 = sphi 0, %s416
      %s438 = sphi 0, %s440
      %s441 = sphi 0, %s438
      %s442 = sphi 0, %s441
      %s458 = sphi 0, %s442
    $region4: #{tpu_custom_call.1} parent=1 // loop_header_branch
      %43 = sbr.rel (%p41) target = $region8
    $region5: #{tpu_custom_call.1} parent=1 // loop_body
      %s45 = ssub.s32 %s40, 1
      %s46 = ssub.s32 %s40, 2
      %s47 = sadd.s32 %s40, 1
      %s48 = ssub.s32 %s40, %s47
      %p49 = scmp.eq.s32.totalorder %s48, 0
      %s51 = sadd.s32 %s50, 1
      %s52 = scalar_select %p49, %s50, %s51
      %p55 = pneg %p49
      %p56 = scmp.eq.s32.totalorder %s40, 1
      %p57 = por %p55, %p56
      %p58 = scmp.ne.s32.totalorder %s50, %s53
      %p59 = scmp.eq.s32.totalorder %s40, 0
      %p60 = por %p58, %p59
      %p61 = scmp.ne.s32.totalorder %s50, %s53
      %p62 = scmp.eq.s32.totalorder %s45, 1
      %p63 = por %p61, %p62
      %p64 = scmp.ne.s32.totalorder %s53, %s54
      %p65 = scmp.eq.s32.totalorder %s45, 0
      %p66 = por %p64, %p65
      %p67 = scmp.ne.s32.totalorder %s53, %s54
      %p68 = scmp.eq.s32.totalorder %s46, 1
      %p69 = por %p67, %p68
      %p71 = scmp.ne.s32.totalorder %s54, %s70
      %p72 = scmp.eq.s32.totalorder %s46, 0
      %p73 = por %p71, %p72
      %s75 = sadd.s32 %s74, 1
      %p78 = scmp.eq.s32.totalorder %s40, 1
      %p79 = scmp.ne.s32.totalorder %s74, %s76
      %p80 = scmp.eq.s32.totalorder %s40, 0
      %p81 = por %p79, %p80
      %p82 = scmp.ne.s32.totalorder %s74, %s76
      %p83 = scmp.eq.s32.totalorder %s45, 1
      %p84 = por %p82, %p83
      %p85 = scmp.ne.s32.totalorder %s76, %s77
      %p86 = scmp.eq.s32.totalorder %s45, 0
      %p87 = por %p85, %p86
      %p88 = scmp.ne.s32.totalorder %s76, %s77
      %p89 = scmp.eq.s32.totalorder %s46, 1
      %p90 = por %p88, %p89
      %p92 = scmp.ne.s32.totalorder %s77, %s91
      %p93 = scmp.eq.s32.totalorder %s46, 0
      %p94 = por %p92, %p93
      %s96 = sadd.s32 %s95, 1
      %p99 = scmp.eq.s32.totalorder %s40, 1
      %p100 = scmp.ne.s32.totalorder %s95, %s97
      %p101 = scmp.eq.s32.totalorder %s40, 0
      %p102 = por %p100, %p101
      %p103 = scmp.ne.s32.totalorder %s95, %s97
      %p104 = scmp.eq.s32.totalorder %s45, 1
      %p105 = por %p103, %p104
      %p106 = scmp.ne.s32.totalorder %s97, %s98
      %p107 = scmp.eq.s32.totalorder %s45, 0
      %p108 = por %p106, %p107
      %p109 = scmp.ne.s32.totalorder %s97, %s98
      %p110 = scmp.eq.s32.totalorder %s46, 1
      %p111 = por %p109, %p110
      %p113 = scmp.ne.s32.totalorder %s98, %s112
      %p114 = scmp.eq.s32.totalorder %s46, 0
      %p115 = por %p113, %p114
      %s117 = sadd.s32 %s116, 1
      %p120 = scmp.eq.s32.totalorder %s40, 1
      %p121 = scmp.ne.s32.totalorder %s116, %s118
      %p122 = scmp.eq.s32.totalorder %s40, 0
      %p123 = por %p121, %p122
      %p124 = scmp.ne.s32.totalorder %s116, %s118
      %p125 = scmp.eq.s32.totalorder %s45, 1
      %p126 = por %p124, %p125
      %p127 = scmp.ne.s32.totalorder %s118, %s119
      %p128 = scmp.eq.s32.totalorder %s45, 0
      %p129 = por %p127, %p128
      %p130 = scmp.ne.s32.totalorder %s118, %s119
      %p131 = scmp.eq.s32.totalorder %s46, 1
      %p132 = por %p130, %p131
      %p134 = scmp.ne.s32.totalorder %s119, %s133
      %p135 = scmp.eq.s32.totalorder %s46, 0
      %p136 = por %p134, %p135
      %s138 = sadd.s32 %s137, 1
      %p141 = scmp.eq.s32.totalorder %s40, 1
      %p142 = scmp.ne.s32.totalorder %s137, %s139
      %p143 = scmp.eq.s32.totalorder %s40, 0
      %p144 = por %p142, %p143
      %p145 = scmp.ne.s32.totalorder %s137, %s139
      %p146 = scmp.eq.s32.totalorder %s45, 1
      %p147 = por %p145, %p146
      %p148 = scmp.ne.s32.totalorder %s139, %s140
      %p149 = scmp.eq.s32.totalorder %s45, 0
      %p150 = por %p148, %p149
      %p151 = scmp.ne.s32.totalorder %s139, %s140
      %p152 = scmp.eq.s32.totalorder %s46, 1
      %p153 = por %p151, %p152
      %p155 = scmp.ne.s32.totalorder %s140, %s154
      %p156 = scmp.eq.s32.totalorder %s46, 0
      %p157 = por %p155, %p156
      %s159 = sadd.s32 %s158, 1
      %p162 = scmp.eq.s32.totalorder %s40, 1
      %p163 = scmp.ne.s32.totalorder %s158, %s160
      %p164 = scmp.eq.s32.totalorder %s40, 0
      %p165 = por %p163, %p164
      %p166 = scmp.ne.s32.totalorder %s158, %s160
      %p167 = scmp.eq.s32.totalorder %s45, 1
      %p168 = por %p166, %p167
      %p169 = scmp.ne.s32.totalorder %s160, %s161
      %p170 = scmp.eq.s32.totalorder %s45, 0
      %p171 = por %p169, %p170
      %p172 = scmp.ne.s32.totalorder %s160, %s161
      %p173 = scmp.eq.s32.totalorder %s46, 1
      %p174 = por %p172, %p173
      %p176 = scmp.ne.s32.totalorder %s161, %s175
      %p177 = scmp.eq.s32.totalorder %s46, 0
      %p178 = por %p176, %p177
      %s180 = sadd.s32 %s179, 1
      %p183 = scmp.eq.s32.totalorder %s40, 1
      %p184 = scmp.ne.s32.totalorder %s179, %s181
      %p185 = scmp.eq.s32.totalorder %s40, 0
      %p186 = por %p184, %p185
      %p187 = scmp.ne.s32.totalorder %s179, %s181
      %p188 = scmp.eq.s32.totalorder %s45, 1
      %p189 = por %p187, %p188
      %p190 = scmp.ne.s32.totalorder %s181, %s182
      %p191 = scmp.eq.s32.totalorder %s45, 0
      %p192 = por %p190, %p191
      %p193 = scmp.ne.s32.totalorder %s181, %s182
      %p194 = scmp.eq.s32.totalorder %s46, 1
      %p195 = por %p193, %p194
      %p197 = scmp.ne.s32.totalorder %s182, %s196
      %p198 = scmp.eq.s32.totalorder %s46, 0
      %p199 = por %p197, %p198
      %s201 = sadd.s32 %s200, 1
      %p204 = scmp.eq.s32.totalorder %s40, 1
      %p205 = scmp.ne.s32.totalorder %s200, %s202
      %p206 = scmp.eq.s32.totalorder %s40, 0
      %p207 = por %p205, %p206
      %p208 = scmp.ne.s32.totalorder %s200, %s202
      %p209 = scmp.eq.s32.totalorder %s45, 1
      %p210 = por %p208, %p209
      %p211 = scmp.ne.s32.totalorder %s202, %s203
      %p212 = scmp.eq.s32.totalorder %s45, 0
      %p213 = por %p211, %p212
      %p214 = scmp.ne.s32.totalorder %s202, %s203
      %p215 = scmp.eq.s32.totalorder %s46, 1
      %p216 = por %p214, %p215
      %p218 = scmp.ne.s32.totalorder %s203, %s217
      %p219 = scmp.eq.s32.totalorder %s46, 0
      %p220 = por %p218, %p219
      %s222 = sadd.s32 %s221, 1
      %p225 = scmp.eq.s32.totalorder %s40, 1
      %p226 = scmp.ne.s32.totalorder %s221, %s223
      %p227 = scmp.eq.s32.totalorder %s40, 0
      %p228 = por %p226, %p227
      %p229 = scmp.ne.s32.totalorder %s221, %s223
      %p230 = scmp.eq.s32.totalorder %s45, 1
      %p231 = por %p229, %p230
      %p232 = scmp.ne.s32.totalorder %s223, %s224
      %p233 = scmp.eq.s32.totalorder %s45, 0
      %p234 = por %p232, %p233
      %p235 = scmp.ne.s32.totalorder %s223, %s224
      %p236 = scmp.eq.s32.totalorder %s46, 1
      %p237 = por %p235, %p236
      %p239 = scmp.ne.s32.totalorder %s224, %s238
      %p240 = scmp.eq.s32.totalorder %s46, 0
      %p241 = por %p239, %p240
      %s243 = sadd.s32 %s242, 1
      %p246 = scmp.eq.s32.totalorder %s40, 1
      %p247 = scmp.ne.s32.totalorder %s242, %s244
      %p248 = scmp.eq.s32.totalorder %s40, 0
      %p249 = por %p247, %p248
      %p250 = scmp.ne.s32.totalorder %s242, %s244
      %p251 = scmp.eq.s32.totalorder %s45, 1
      %p252 = por %p250, %p251
      %p253 = scmp.ne.s32.totalorder %s244, %s245
      %p254 = scmp.eq.s32.totalorder %s45, 0
      %p255 = por %p253, %p254
      %p256 = scmp.ne.s32.totalorder %s244, %s245
      %p257 = scmp.eq.s32.totalorder %s46, 1
      %p258 = por %p256, %p257
      %p260 = scmp.ne.s32.totalorder %s245, %s259
      %p261 = scmp.eq.s32.totalorder %s46, 0
      %p262 = por %p260, %p261
      %s264 = sadd.s32 %s263, 1
      %p267 = scmp.eq.s32.totalorder %s40, 1
      %p268 = scmp.ne.s32.totalorder %s263, %s265
      %p269 = scmp.eq.s32.totalorder %s40, 0
      %p270 = por %p268, %p269
      %p271 = scmp.ne.s32.totalorder %s263, %s265
      %p272 = scmp.eq.s32.totalorder %s45, 1
      %p273 = por %p271, %p272
      %p274 = scmp.ne.s32.totalorder %s265, %s266
      %p275 = scmp.eq.s32.totalorder %s45, 0
      %p276 = por %p274, %p275
      %p277 = scmp.ne.s32.totalorder %s265, %s266
      %p278 = scmp.eq.s32.totalorder %s46, 1
      %p279 = por %p277, %p278
      %p281 = scmp.ne.s32.totalorder %s266, %s280
      %p282 = scmp.eq.s32.totalorder %s46, 0
      %p283 = por %p281, %p282
      %s285 = sadd.s32 %s284, 1
      %p288 = scmp.eq.s32.totalorder %s40, 1
      %p289 = scmp.ne.s32.totalorder %s284, %s286
      %p290 = scmp.eq.s32.totalorder %s40, 0
      %p291 = por %p289, %p290
      %p292 = scmp.ne.s32.totalorder %s284, %s286
      %p293 = scmp.eq.s32.totalorder %s45, 1
      %p294 = por %p292, %p293
      %p295 = scmp.ne.s32.totalorder %s286, %s287
      %p296 = scmp.eq.s32.totalorder %s45, 0
      %p297 = por %p295, %p296
      %p298 = scmp.ne.s32.totalorder %s286, %s287
      %p299 = scmp.eq.s32.totalorder %s46, 1
      %p300 = por %p298, %p299
      %p302 = scmp.ne.s32.totalorder %s287, %s301
      %p303 = scmp.eq.s32.totalorder %s46, 0
      %p304 = por %p302, %p303
      %s306 = sadd.s32 %s305, 1
      %p309 = scmp.eq.s32.totalorder %s40, 1
      %p310 = scmp.ne.s32.totalorder %s305, %s307
      %p311 = scmp.eq.s32.totalorder %s40, 0
      %p312 = por %p310, %p311
      %p313 = scmp.ne.s32.totalorder %s305, %s307
      %p314 = scmp.eq.s32.totalorder %s45, 1
      %p315 = por %p313, %p314
      %p316 = scmp.ne.s32.totalorder %s307, %s308
      %p317 = scmp.eq.s32.totalorder %s45, 0
      %p318 = por %p316, %p317
      %p319 = scmp.ne.s32.totalorder %s307, %s308
      %p320 = scmp.eq.s32.totalorder %s46, 1
      %p321 = por %p319, %p320
      %p323 = scmp.ne.s32.totalorder %s308, %s322
      %p324 = scmp.eq.s32.totalorder %s46, 0
      %p325 = por %p323, %p324
      %s327 = sadd.s32 %s326, 1
      %p330 = scmp.eq.s32.totalorder %s40, 1
      %p331 = scmp.ne.s32.totalorder %s326, %s328
      %p332 = scmp.eq.s32.totalorder %s40, 0
      %p333 = por %p331, %p332
      %p334 = scmp.ne.s32.totalorder %s326, %s328
      %p335 = scmp.eq.s32.totalorder %s45, 1
      %p336 = por %p334, %p335
      %p337 = scmp.ne.s32.totalorder %s328, %s329
      %p338 = scmp.eq.s32.totalorder %s45, 0
      %p339 = por %p337, %p338
      %p340 = scmp.ne.s32.totalorder %s328, %s329
      %p341 = scmp.eq.s32.totalorder %s46, 1
      %p342 = por %p340, %p341
      %p344 = scmp.ne.s32.totalorder %s329, %s343
      %p345 = scmp.eq.s32.totalorder %s46, 0
      %p346 = por %p344, %p345
      %s348 = sadd.s32 %s347, 1
      %p351 = scmp.eq.s32.totalorder %s40, 1
      %p352 = scmp.ne.s32.totalorder %s347, %s349
      %p353 = scmp.eq.s32.totalorder %s40, 0
      %p354 = por %p352, %p353
      %p355 = scmp.ne.s32.totalorder %s347, %s349
      %p356 = scmp.eq.s32.totalorder %s45, 1
      %p357 = por %p355, %p356
      %p358 = scmp.ne.s32.totalorder %s349, %s350
      %p359 = scmp.eq.s32.totalorder %s45, 0
      %p360 = por %p358, %p359
      %p361 = scmp.ne.s32.totalorder %s349, %s350
      %p362 = scmp.eq.s32.totalorder %s46, 1
      %p363 = por %p361, %p362
      %p365 = scmp.ne.s32.totalorder %s350, %s364
      %p366 = scmp.eq.s32.totalorder %s46, 0
      %p367 = por %p365, %p366
      %s369 = sadd.s32 %s368, 1
      %p372 = scmp.eq.s32.totalorder %s40, 1
      %p373 = scmp.ne.s32.totalorder %s368, %s370
      %p374 = scmp.eq.s32.totalorder %s40, 0
      %p375 = por %p373, %p374
      %p376 = scmp.ne.s32.totalorder %s368, %s370
      %p377 = scmp.eq.s32.totalorder %s45, 1
      %p378 = por %p376, %p377
      %p379 = scmp.ne.s32.totalorder %s370, %s371
      %p380 = scmp.eq.s32.totalorder %s45, 0
      %p381 = por %p379, %p380
      %p382 = scmp.ne.s32.totalorder %s370, %s371
      %p383 = scmp.eq.s32.totalorder %s46, 1
      %p384 = por %p382, %p383
      %p386 = scmp.ne.s32.totalorder %s371, %s385
      %p387 = scmp.eq.s32.totalorder %s46, 0
      %p388 = por %p386, %p387
      %s390 = sadd.s32 %s389, 1
      %p393 = scmp.eq.s32.totalorder %s40, 1
      %p394 = scmp.ne.s32.totalorder %s389, %s391
      %p395 = scmp.eq.s32.totalorder %s40, 0
      %p396 = por %p394, %p395
      %p397 = scmp.ne.s32.totalorder %s389, %s391
      %p398 = scmp.eq.s32.totalorder %s45, 1
      %p399 = por %p397, %p398
      %p400 = scmp.ne.s32.totalorder %s391, %s392
      %p401 = scmp.eq.s32.totalorder %s45, 0
      %p402 = por %p400, %p401
      %p403 = scmp.ne.s32.totalorder %s391, %s392
      %p404 = scmp.eq.s32.totalorder %s46, 1
      %p405 = por %p403, %p404
      %p407 = scmp.ne.s32.totalorder %s392, %s406
      %p408 = scmp.eq.s32.totalorder %s46, 0
      %p409 = por %p407, %p408
      %s410 = ssub.s32 %s40, %s47
      %p411 = scmp.eq.s32.totalorder %s410, 0
      %s413 = sadd.s32 %s412, 1
      %s414 = scalar_select %p411, %s412, %s413
      %p417 = pneg %p411
      %p418 = scmp.eq.s32.totalorder %s40, 1
      %p419 = por %p417, %p418
      %p420 = scmp.ne.s32.totalorder %s412, %s415
      %p421 = scmp.eq.s32.totalorder %s40, 0
      %p422 = por %p420, %p421
      %p423 = scmp.ne.s32.totalorder %s412, %s415
      %p424 = scmp.eq.s32.totalorder %s45, 1
      %p425 = por %p423, %p424
      %p426 = scmp.ne.s32.totalorder %s415, %s416
      %p427 = scmp.eq.s32.totalorder %s45, 0
      %p428 = por %p426, %p427
      %p429 = scmp.ne.s32.totalorder %s415, %s416
      %p430 = scmp.eq.s32.totalorder %s46, 1
      %p431 = por %p429, %p430
      %p433 = scmp.ne.s32.totalorder %s416, %s432
      %p434 = scmp.eq.s32.totalorder %s46, 0
      %p435 = por %p433, %p434
      %s436 = ssub.s32 %s40, %s47
      %p437 = scmp.eq.s32.totalorder %s436, 0
      %s439 = sadd.s32 %s438, 1
      %s440 = scalar_select %p437, %s438, %s439
      %p443 = pneg %p437
      %p444 = scmp.eq.s32.totalorder %s40, 1
      %p445 = por %p443, %p444
      %p446 = scmp.ne.s32.totalorder %s438, %s441
      %p447 = scmp.eq.s32.totalorder %s40, 0
      %p448 = por %p446, %p447
      %p449 = scmp.ne.s32.totalorder %s438, %s441
      %p450 = scmp.eq.s32.totalorder %s45, 1
      %p451 = por %p449, %p450
      %p452 = scmp.ne.s32.totalorder %s441, %s442
      %p453 = scmp.eq.s32.totalorder %s45, 0
      %p454 = por %p452, %p453
      %p455 = scmp.ne.s32.totalorder %s441, %s442
      %p456 = scmp.eq.s32.totalorder %s46, 1
      %p457 = por %p455, %p456
      %p459 = scmp.ne.s32.totalorder %s442, %s458
      %p460 = scmp.eq.s32.totalorder %s46, 0
      %p461 = por %p459, %p460
      %p462 = scmp.le.s32.totalorder 1, %s40
      %p463 = scmp.lt.s32.totalorder %s40, 3
      %p464 = pnand %p462, %p463
      %p465 = pneg %p464
      // Predicated region
      $region9: #{tpu_custom_call.1} parent=5 // pred_check
        _
      $region10: #{tpu_custom_call.1} parent=5 // pred_check_branch
        %467 = sbr.rel (%p464) target = $region12
      $region11: #{tpu_custom_call.1} parent=5 // pred_region
        %s468 = ssub.s32 %s40, 1
        // Predicated region
        $region13: #{tpu_custom_call.1} parent=11 // pred_check
          %p469 = pneg %p87
        $region14: #{tpu_custom_call.1} parent=11 // pred_check_branch
          %471 = sbr.rel (%p469) target = $region16
        $region15: #{tpu_custom_call.1} parent=11 // pred_region
          %473 = vsyncadd [#allocation6], 0
          %s474 = sshll.u32 %s1, 4
          %s475 = int_to_ptr.hbm [resolvable:$true] %s474
          %s476 = sshll.u32 [#allocation5], 4
          %s477 = int_to_ptr.vmem [resolvable:$true] %s476
          %482 = dma.hbm_to_vmem [thread:$0]  %s475, 28672, %s477, [#allocation6], 256, 256, 16
        $region16: #{tpu_custom_call.1} parent=11 // pred_fallthru
          _
        // Predicated region
        $region17: #{tpu_custom_call.1} parent=11 // pred_check
          %p483 = pneg %p108
        $region18: #{tpu_custom_call.1} parent=11 // pred_check_branch
          %485 = sbr.rel (%p483) target = $region20
        $region19: #{tpu_custom_call.1} parent=11 // pred_region
          %487 = vsyncadd [#allocation6], 0
          %s489 = sshll.u32 %s2, 4
          %s490 = int_to_ptr.hbm [resolvable:$true] %s489
          %s491 = sshll.u32 [#allocation7], 4
          %s492 = int_to_ptr.vmem [resolvable:$true] %s491
          %494 = dma.hbm_to_vmem [thread:$0]  %s490, 64, %s492, [#allocation6]
        $region20: #{tpu_custom_call.1} parent=11 // pred_fallthru
          _
        // Predicated region
        $region21: #{tpu_custom_call.1} parent=11 // pred_check
          %p495 = pneg %p129
        $region22: #{tpu_custom_call.1} parent=11 // pred_check_branch
          %497 = sbr.rel (%p495) target = $region24
        $region23: #{tpu_custom_call.1} parent=11 // pred_region
          %499 = vsyncadd [#allocation9], 0
          %s500 = sshll.u32 %s3, 4
          %s501 = int_to_ptr.hbm [resolvable:$true] %s500
          %s502 = sshll.u32 [#allocation8], 4
          %s503 = int_to_ptr.vmem [resolvable:$true] %s502
          %508 = dma.hbm_to_vmem [thread:$0]  %s501, 8192, %s503, [#allocation9], 128, 128, 8
        $region24: #{tpu_custom_call.1} parent=11 // pred_fallthru
          _
        // Predicated region
        $region25: #{tpu_custom_call.1} parent=11 // pred_check
          %p509 = pneg %p150
        $region26: #{tpu_custom_call.1} parent=11 // pred_check_branch
          %511 = sbr.rel (%p509) target = $region28
        $region27: #{tpu_custom_call.1} parent=11 // pred_region
          _
        $region28: #{tpu_custom_call.1} parent=11 // pred_fallthru
          _
        // Predicated region
        $region29: #{tpu_custom_call.1} parent=11 // pred_check
          %p512 = pneg %p171
        $region30: #{tpu_custom_call.1} parent=11 // pred_check_branch
          %514 = sbr.rel (%p512) target = $region32
        $region31: #{tpu_custom_call.1} parent=11 // pred_region
          %516 = vsyncadd [#allocation9], 0
          %s517 = sshll.u32 %s5, 4
          %s518 = int_to_ptr.hbm [resolvable:$true] %s517
          %s519 = sshll.u32 [#allocation10], 4
          %s520 = int_to_ptr.vmem [resolvable:$true] %s519
          %525 = dma.hbm_to_vmem [thread:$0]  %s518, 2048, %s520, [#allocation9], 64, 64, 4
        $region32: #{tpu_custom_call.1} parent=11 // pred_fallthru
          _
        // Predicated region
        $region33: #{tpu_custom_call.1} parent=11 // pred_check
          %p526 = pneg %p192
        $region34: #{tpu_custom_call.1} parent=11 // pred_check_branch
          %528 = sbr.rel (%p526) target = $region36
        $region35: #{tpu_custom_call.1} parent=11 // pred_region
          _
        $region36: #{tpu_custom_call.1} parent=11 // pred_fallthru
          _
        // Predicated region
        $region37: #{tpu_custom_call.1} parent=11 // pred_check
          %p529 = pneg %p213
        $region38: #{tpu_custom_call.1} parent=11 // pred_check_branch
          %531 = sbr.rel (%p529) target = $region40
        $region39: #{tpu_custom_call.1} parent=11 // pred_region
          %533 = vsyncadd [#allocation12], 0
          %s534 = sshll.u32 %s7, 4
          %s535 = int_to_ptr.hbm [resolvable:$true] %s534
          %s536 = sshll.u32 [#allocation11], 4
          %s537 = int_to_ptr.vmem [resolvable:$true] %s536
          %542 = dma.hbm_to_vmem [thread:$0]  %s535, 1024, %s537, [#allocation12], 64, 64, 4
        $region40: #{tpu_custom_call.1} parent=11 // pred_fallthru
          _
        // Predicated region
        $region41: #{tpu_custom_call.1} parent=11 // pred_check
          %p543 = pneg %p234
        $region42: #{tpu_custom_call.1} parent=11 // pred_check_branch
          %545 = sbr.rel (%p543) target = $region44
        $region43: #{tpu_custom_call.1} parent=11 // pred_region
          %547 = vsyncadd [#allocation12], 0
          %s549 = sshll.u32 %s8, 4
          %s550 = int_to_ptr.hbm [resolvable:$true] %s549
          %s551 = sshll.u32 [#allocation13], 4
          %s552 = int_to_ptr.vmem [resolvable:$true] %s551
          %554 = dma.hbm_to_vmem [thread:$0]  %s550, 16, %s552, [#allocation12]
        $region44: #{tpu_custom_call.1} parent=11 // pred_fallthru
          _
        // Predicated region
        $region45: #{tpu_custom_call.1} parent=11 // pred_check
          %p555 = pneg %p255
        $region46: #{tpu_custom_call.1} parent=11 // pred_check_branch
          %557 = sbr.rel (%p555) target = $region48
        $region47: #{tpu_custom_call.1} parent=11 // pred_region
          %559 = vsyncadd [#allocation15], 0
          %s560 = sshll.u32 %s9, 4
          %s561 = int_to_ptr.hbm [resolvable:$true] %s560
          %s562 = sshll.u32 [#allocation14], 4
          %s563 = int_to_ptr.vmem [resolvable:$true] %s562
          %568 = dma.hbm_to_vmem [thread:$0]  %s561, 1024, %s563, [#allocation15], 64, 64, 4
        $region48: #{tpu_custom_call.1} parent=11 // pred_fallthru
          _
        // Predicated region
        $region49: #{tpu_custom_call.1} parent=11 // pred_check
          %p569 = pneg %p276
        $region50: #{tpu_custom_call.1} parent=11 // pred_check_branch
          %571 = sbr.rel (%p569) target = $region52
        $region51: #{tpu_custom_call.1} parent=11 // pred_region
          %573 = vsyncadd [#allocation15], 0
          %s575 = sshll.u32 %s10, 4
          %s576 = int_to_ptr.hbm [resolvable:$true] %s575
          %s577 = sshll.u32 [#allocation16], 4
          %s578 = int_to_ptr.vmem [resolvable:$true] %s577
          %580 = dma.hbm_to_vmem [thread:$0]  %s576, 16, %s578, [#allocation15]
        $region52: #{tpu_custom_call.1} parent=11 // pred_fallthru
          _
        // Predicated region
        $region53: #{tpu_custom_call.1} parent=11 // pred_check
          %p581 = pneg %p297
        $region54: #{tpu_custom_call.1} parent=11 // pred_check_branch
          %583 = sbr.rel (%p581) target = $region56
        $region55: #{tpu_custom_call.1} parent=11 // pred_region
          %585 = vsyncadd [#allocation18], 0
          %s586 = sshll.u32 %s11, 4
          %s587 = int_to_ptr.hbm [resolvable:$true] %s586
          %s588 = sshll.u32 [#allocation17], 4
          %s589 = int_to_ptr.vmem [resolvable:$true] %s588
          %594 = dma.hbm_to_vmem [thread:$0]  %s587, 2048, %s589, [#allocation18], 128, 128, 8
        $region56: #{tpu_custom_call.1} parent=11 // pred_fallthru
          _
        // Predicated region
        $region57: #{tpu_custom_call.1} parent=11 // pred_check
          %p595 = pneg %p318
        $region58: #{tpu_custom_call.1} parent=11 // pred_check_branch
          %597 = sbr.rel (%p595) target = $region60
        $region59: #{tpu_custom_call.1} parent=11 // pred_region
          %599 = vsyncadd [#allocation18], 0
          %s601 = sshll.u32 %s12, 4
          %s602 = int_to_ptr.hbm [resolvable:$true] %s601
          %s603 = sshll.u32 [#allocation19], 4
          %s604 = int_to_ptr.vmem [resolvable:$true] %s603
          %606 = dma.hbm_to_vmem [thread:$0]  %s602, 32, %s604, [#allocation18]
        $region60: #{tpu_custom_call.1} parent=11 // pred_fallthru
          _
        // Predicated region
        $region61: #{tpu_custom_call.1} parent=11 // pred_check
          %p607 = pneg %p339
        $region62: #{tpu_custom_call.1} parent=11 // pred_check_branch
          %609 = sbr.rel (%p607) target = $region64
        $region63: #{tpu_custom_call.1} parent=11 // pred_region
          %611 = vsyncadd [#allocation21], 0
          %s612 = sshll.u32 %s13, 4
          %s613 = int_to_ptr.hbm [resolvable:$true] %s612
          %s614 = sshll.u32 [#allocation20], 4
          %s615 = int_to_ptr.vmem [resolvable:$true] %s614
          %620 = dma.hbm_to_vmem [thread:$0]  %s613, 8192, %s615, [#allocation21], 256, 256, 16
        $region64: #{tpu_custom_call.1} parent=11 // pred_fallthru
          _
        // Predicated region
        $region65: #{tpu_custom_call.1} parent=11 // pred_check
          %p621 = pneg %p360
        $region66: #{tpu_custom_call.1} parent=11 // pred_check_branch
          %623 = sbr.rel (%p621) target = $region68
        $region67: #{tpu_custom_call.1} parent=11 // pred_region
          _
        $region68: #{tpu_custom_call.1} parent=11 // pred_fallthru
          _
        // Predicated region
        $region69: #{tpu_custom_call.1} parent=11 // pred_check
          %p624 = pneg %p381
        $region70: #{tpu_custom_call.1} parent=11 // pred_check_branch
          %626 = sbr.rel (%p624) target = $region72
        $region71: #{tpu_custom_call.1} parent=11 // pred_region
          %628 = vsyncadd [#allocation21], 0
          %s629 = sshll.u32 %s15, 4
          %s630 = int_to_ptr.hbm [resolvable:$true] %s629
          %s631 = sshll.u32 [#allocation22], 4
          %s632 = int_to_ptr.vmem [resolvable:$true] %s631
          %637 = dma.hbm_to_vmem [thread:$0]  %s630, 28672, %s632, [#allocation21], 448, 448, 28
        $region72: #{tpu_custom_call.1} parent=11 // pred_fallthru
          _
        // Predicated region
        $region73: #{tpu_custom_call.1} parent=11 // pred_check
          %p638 = pneg %p402
        $region74: #{tpu_custom_call.1} parent=11 // pred_check_branch
          %640 = sbr.rel (%p638) target = $region76
        $region75: #{tpu_custom_call.1} parent=11 // pred_region
          _
        $region76: #{tpu_custom_call.1} parent=11 // pred_fallthru
          _
      $region12: #{tpu_custom_call.1} parent=5 // pred_fallthru
        _
      %p641 = scmp.lt.s32.totalorder %s40, 2
      // Predicated region
      $region77: #{tpu_custom_call.1} parent=5 // pred_check
        %p642 = pneg %p641
      $region78: #{tpu_custom_call.1} parent=5 // pred_check_branch
        %644 = sbr.rel (%p642) target = $region80
      $region79: #{tpu_custom_call.1} parent=5 // pred_region
        // Predicated region
        $region81: #{tpu_custom_call.1} parent=79 // pred_check
          %p645 = pneg %p60
        $region82: #{tpu_custom_call.1} parent=79 // pred_check_branch
          %647 = sbr.rel (%p645) target = $region84
        $region83: #{tpu_custom_call.1} parent=79 // pred_region
          %s648 = sand.u32 %s50, 1
          %s649 = scalar_lea.sflag [#allocation3], %s648
          %s650 = sand.u32 %s50, 1
          %s651 = smul.addr %s650, 56
          %s652 = scalar_lea.vmem [#allocation2], %s651
          %s653 = smul.u32 2, %s40
          %655 = vsyncadd %s649, 0
          %s656 = smul.addr %s653, 7
          %s657 = smul.addr %s656, 4
          %s658 = scalar_lea.hbm %s0, %s657
          %s659 = sshll.u32 %s658, 4
          %s660 = int_to_ptr.hbm [resolvable:$true] %s659
          %s661 = sshll.u32 %s652, 4
          %s662 = int_to_ptr.vmem [resolvable:$true] %s661
          %667 = dma.hbm_to_vmem [thread:$0]  %s660, 896, %s662, %s649, 448, 448, 28
        $region84: #{tpu_custom_call.1} parent=79 // pred_fallthru
          _
      $region80: #{tpu_custom_call.1} parent=5 // pred_fallthru
        _
      %p668 = scmp.le.s32.totalorder 1, %s40
      %p669 = scmp.lt.s32.totalorder %s40, 3
      %p670 = pnand %p668, %p669
      %p671 = pneg %p670
      // Predicated region
      $region85: #{tpu_custom_call.1} parent=5 // pred_check
        _
      $region86: #{tpu_custom_call.1} parent=5 // pred_check_branch
        %673 = sbr.rel (%p670) target = $region88
      $region87: #{tpu_custom_call.1} parent=5 // pred_region
        %s674 = ssub.s32 %s40, 1
        %s675 = sand.u32 %s53, 1
        %s676 = scalar_lea.sflag [#allocation3], %s675
        %s677 = sand.u32 %s53, 1
        %s678 = smul.addr %s677, 56
        %s679 = scalar_lea.vmem [#allocation2], %s678
        // Predicated region
        $region89: #{tpu_custom_call.1} parent=87 // pred_check
          %p680 = pneg %p66
        $region90: #{tpu_custom_call.1} parent=87 // pred_check_branch
          %682 = sbr.rel (%p680) target = $region92
        $region91: #{tpu_custom_call.1} parent=87 // pred_region
          %684 = dma.done %s676, 896
        $region92: #{tpu_custom_call.1} parent=87 // pred_fallthru
          _
        // Predicated region
        $region93: #{tpu_custom_call.1} parent=87 // pred_check
          %p685 = pneg %p87
        $region94: #{tpu_custom_call.1} parent=87 // pred_check_branch
          %687 = sbr.rel (%p685) target = $region96
        $region95: #{tpu_custom_call.1} parent=87 // pred_region
          %689 = dma.done [#allocation6], 28672
        $region96: #{tpu_custom_call.1} parent=87 // pred_fallthru
          _
        // Predicated region
        $region97: #{tpu_custom_call.1} parent=87 // pred_check
          %p690 = pneg %p108
        $region98: #{tpu_custom_call.1} parent=87 // pred_check_branch
          %692 = sbr.rel (%p690) target = $region100
        $region99: #{tpu_custom_call.1} parent=87 // pred_region
          %694 = dma.done [#allocation6], 64
        $region100: #{tpu_custom_call.1} parent=87 // pred_fallthru
          _
        // Predicated region
        $region101: #{tpu_custom_call.1} parent=87 // pred_check
          %p695 = pneg %p129
        $region102: #{tpu_custom_call.1} parent=87 // pred_check_branch
          %697 = sbr.rel (%p695) target = $region104
        $region103: #{tpu_custom_call.1} parent=87 // pred_region
          %699 = dma.done [#allocation9], 8192
        $region104: #{tpu_custom_call.1} parent=87 // pred_fallthru
          _
        // Predicated region
        $region105: #{tpu_custom_call.1} parent=87 // pred_check
          %p700 = pneg %p171
        $region106: #{tpu_custom_call.1} parent=87 // pred_check_branch
          %702 = sbr.rel (%p700) target = $region108
        $region107: #{tpu_custom_call.1} parent=87 // pred_region
          %704 = dma.done [#allocation9], 2048
        $region108: #{tpu_custom_call.1} parent=87 // pred_fallthru
          _
        // Predicated region
        $region109: #{tpu_custom_call.1} parent=87 // pred_check
          %p705 = pneg %p213
        $region110: #{tpu_custom_call.1} parent=87 // pred_check_branch
          %707 = sbr.rel (%p705) target = $region112
        $region111: #{tpu_custom_call.1} parent=87 // pred_region
          %709 = dma.done [#allocation12], 1024
        $region112: #{tpu_custom_call.1} parent=87 // pred_fallthru
          _
        // Predicated region
        $region113: #{tpu_custom_call.1} parent=87 // pred_check
          %p710 = pneg %p234
        $region114: #{tpu_custom_call.1} parent=87 // pred_check_branch
          %712 = sbr.rel (%p710) target = $region116
        $region115: #{tpu_custom_call.1} parent=87 // pred_region
          %714 = dma.done [#allocation12], 16
        $region116: #{tpu_custom_call.1} parent=87 // pred_fallthru
          _
        // Predicated region
        $region117: #{tpu_custom_call.1} parent=87 // pred_check
          %p715 = pneg %p255
        $region118: #{tpu_custom_call.1} parent=87 // pred_check_branch
          %717 = sbr.rel (%p715) target = $region120
        $region119: #{tpu_custom_call.1} parent=87 // pred_region
          %719 = dma.done [#allocation15], 1024
        $region120: #{tpu_custom_call.1} parent=87 // pred_fallthru
          _
        // Predicated region
        $region121: #{tpu_custom_call.1} parent=87 // pred_check
          %p720 = pneg %p276
        $region122: #{tpu_custom_call.1} parent=87 // pred_check_branch
          %722 = sbr.rel (%p720) target = $region124
        $region123: #{tpu_custom_call.1} parent=87 // pred_region
          %724 = dma.done [#allocation15], 16
        $region124: #{tpu_custom_call.1} parent=87 // pred_fallthru
          _
        // Predicated region
        $region125: #{tpu_custom_call.1} parent=87 // pred_check
          %p725 = pneg %p297
        $region126: #{tpu_custom_call.1} parent=87 // pred_check_branch
          %727 = sbr.rel (%p725) target = $region128
        $region127: #{tpu_custom_call.1} parent=87 // pred_region
          %729 = dma.done [#allocation18], 2048
        $region128: #{tpu_custom_call.1} parent=87 // pred_fallthru
          _
        // Predicated region
        $region129: #{tpu_custom_call.1} parent=87 // pred_check
          %p730 = pneg %p318
        $region130: #{tpu_custom_call.1} parent=87 // pred_check_branch
          %732 = sbr.rel (%p730) target = $region132
        $region131: #{tpu_custom_call.1} parent=87 // pred_region
          %734 = dma.done [#allocation18], 32
        $region132: #{tpu_custom_call.1} parent=87 // pred_fallthru
          _
        // Predicated region
        $region133: #{tpu_custom_call.1} parent=87 // pred_check
          %p735 = pneg %p339
        $region134: #{tpu_custom_call.1} parent=87 // pred_check_branch
          %737 = sbr.rel (%p735) target = $region136
        $region135: #{tpu_custom_call.1} parent=87 // pred_region
          %739 = dma.done [#allocation21], 8192
        $region136: #{tpu_custom_call.1} parent=87 // pred_fallthru
          _
        // Predicated region
        $region137: #{tpu_custom_call.1} parent=87 // pred_check
          %p740 = pneg %p381
        $region138: #{tpu_custom_call.1} parent=87 // pred_check_branch
          %742 = sbr.rel (%p740) target = $region140
        $region139: #{tpu_custom_call.1} parent=87 // pred_region
          %744 = dma.done [#allocation21], 28672
        $region140: #{tpu_custom_call.1} parent=87 // pred_fallthru
          _
        %s745 = sand.u32 %s53, 1
        %s746 = scalar_lea.sflag [#allocation3], %s745
        %s747 = sand.u32 %s53, 1
        %s748 = smul.addr %s747, 56
        %s749 = scalar_lea.vmem [#allocation2], %s748
        %p750 = pneg %p66
        %p751 = pneg %p63
        %p752 = pneg %p87
        %p753 = pneg %p84
        %p754 = pneg %p108
        %p755 = pneg %p105
        %p756 = pneg %p129
        %p757 = pneg %p126
        %p758 = pneg %p150
        %p759 = pneg %p147
        %p760 = pneg %p171
        %p761 = pneg %p168
        %p762 = pneg %p192
        %p763 = pneg %p189
        %p764 = pneg %p213
        %p765 = pneg %p210
        %p766 = pneg %p234
        %p767 = pneg %p231
        %p768 = pneg %p255
        %p769 = pneg %p252
        %p770 = pneg %p276
        %p771 = pneg %p273
        %p772 = pneg %p297
        %p773 = pneg %p294
        %p774 = pneg %p318
        %p775 = pneg %p315
        %p776 = pneg %p339
        %p777 = pneg %p336
        %p778 = pneg %p360
        %p779 = pneg %p357
        %p780 = pneg %p381
        %p781 = pneg %p378
        %p782 = pneg %p402
        %p783 = pneg %p399
        %p784 = pneg %p428
        %p785 = pneg %p425
        %s786 = sand.u32 %s415, 1
        %s787 = scalar_lea.sflag [#allocation4], %s786
        %s788 = sand.u32 %s415, 1
        %s789 = smul.addr %s788, 56
        %s790 = scalar_lea.vmem [#allocation23], %s789
        %p791 = pneg %p454
        %p792 = pneg %p451
        %s793 = sand.u32 %s441, 1
        %s794 = scalar_lea.sflag [#allocation25], %s793
        %s795 = sand.u32 %s441, 1
        %s796 = smul.addr %s795, 8
        %s797 = scalar_lea.vmem [#allocation24], %s796
        %s798 = smul.u32 2, %s45
        %s799 = smul.u32 2, %s45
        %s800 = smul.u32 2, %s45
        %v801 = vld [vmem:[%s679] sm:$0xff]
        %v802 = vld [vmem:[%s679 + $0x8] sm:$0xff]
        %v803 = vld [vmem:[%s679 + $0x10] sm:$0xff]
        %v804 = vld [vmem:[%s679 + $0x18] sm:$0xf]
        %v805 = vld [vmem:[%s679 + $0x1c] sm:$0xff]
        %v806 = vld [vmem:[%s679 + $0x24] sm:$0xff]
        %v807 = vld [vmem:[%s679 + $0x2c] sm:$0xff]
        %v808 = vld [vmem:[%s679 + $0x34] sm:$0xf]
        %v809 = vld [vmem:[#allocation5] sm:$0xff]
        %v810 = vld [vmem:[#allocation5 + $0x8] sm:$0xff]
        %v811 = vld [vmem:[#allocation5 + $0x10] sm:$0xff]
        %v812 = vld [vmem:[#allocation5 + $0x18] sm:$0xff]
        %v813 = vld [vmem:[#allocation5 + $0x20] sm:$0xff]
        %v814 = vld [vmem:[#allocation5 + $0x28] sm:$0xff]
        %v815 = vld [vmem:[#allocation5 + $0x30] sm:$0xff]
        %v816 = vld [vmem:[#allocation5 + $0x38] sm:$0xff]
        %v817 = vld [vmem:[#allocation5 + $0x40] sm:$0xff]
        %v818 = vld [vmem:[#allocation5 + $0x48] sm:$0xff]
        %v819 = vld [vmem:[#allocation5 + $0x50] sm:$0xff]
        %v820 = vld [vmem:[#allocation5 + $0x58] sm:$0xff]
        %v821 = vld [vmem:[#allocation5 + $0x60] sm:$0xff]
        %v822 = vld [vmem:[#allocation5 + $0x68] sm:$0xff]
        %v823 = vld [vmem:[#allocation5 + $0x70] sm:$0xff]
        %v824 = vld [vmem:[#allocation5 + $0x78] sm:$0xff]
        %v825 = vld [vmem:[#allocation5 + $0x80] sm:$0xff]
        %v826 = vld [vmem:[#allocation5 + $0x88] sm:$0xff]
        %v827 = vld [vmem:[#allocation5 + $0x90] sm:$0xff]
        %v828 = vld [vmem:[#allocation5 + $0x98] sm:$0xff]
        %v829 = vld [vmem:[#allocation5 + $0xa0] sm:$0xff]
        %v830 = vld [vmem:[#allocation5 + $0xa8] sm:$0xff]
        %v831 = vld [vmem:[#allocation5 + $0xb0] sm:$0xff]
        %v832 = vld [vmem:[#allocation5 + $0xb8] sm:$0xff]
        %v833 = vld [vmem:[#allocation5 + $0xc0] sm:$0xff]
        %v834 = vld [vmem:[#allocation5 + $0xc8] sm:$0xff]
        %v835 = vld [vmem:[#allocation5 + $0xd0] sm:$0xff]
        %v836 = vld [vmem:[#allocation5 + $0xd8] sm:$0xff]
        %v837 = vld [vmem:[#allocation5 + $0xe0] sm:$0xff]
        %v838 = vld [vmem:[#allocation5 + $0xe8] sm:$0xff]
        %v839 = vld [vmem:[#allocation5 + $0xf0] sm:$0xff]
        %v840 = vld [vmem:[#allocation5 + $0xf8] sm:$0xff]
        %v841 = vld [vmem:[#allocation5 + $0x100] sm:$0xff]
        %v842 = vld [vmem:[#allocation5 + $0x108] sm:$0xff]
        %v843 = vld [vmem:[#allocation5 + $0x110] sm:$0xff]
        %v844 = vld [vmem:[#allocation5 + $0x118] sm:$0xff]
        %v845 = vld [vmem:[#allocation5 + $0x120] sm:$0xff]
        %v846 = vld [vmem:[#allocation5 + $0x128] sm:$0xff]
        %v847 = vld [vmem:[#allocation5 + $0x130] sm:$0xff]
        %v848 = vld [vmem:[#allocation5 + $0x138] sm:$0xff]
        %v849 = vld [vmem:[#allocation5 + $0x140] sm:$0xff]
        %v850 = vld [vmem:[#allocation5 + $0x148] sm:$0xff]
        %v851 = vld [vmem:[#allocation5 + $0x150] sm:$0xff]
        %v852 = vld [vmem:[#allocation5 + $0x158] sm:$0xff]
        %v853 = vld [vmem:[#allocation5 + $0x160] sm:$0xff]
        %v854 = vld [vmem:[#allocation5 + $0x168] sm:$0xff]
        %v855 = vld [vmem:[#allocation5 + $0x170] sm:$0xff]
        %v856 = vld [vmem:[#allocation5 + $0x178] sm:$0xff]
        %v857 = vld [vmem:[#allocation5 + $0x180] sm:$0xff]
        %v858 = vld [vmem:[#allocation5 + $0x188] sm:$0xff]
        %v859 = vld [vmem:[#allocation5 + $0x190] sm:$0xff]
        %v860 = vld [vmem:[#allocation5 + $0x198] sm:$0xff]
        %v861 = vld [vmem:[#allocation5 + $0x1a0] sm:$0xff]
        %v862 = vld [vmem:[#allocation5 + $0x1a8] sm:$0xff]
        %v863 = vld [vmem:[#allocation5 + $0x1b0] sm:$0xff]
        %v864 = vld [vmem:[#allocation5 + $0x1b8] sm:$0xff]
        %v865 = vld [vmem:[#allocation5 + $0x1c0] sm:$0xff]
        %v866 = vld [vmem:[#allocation5 + $0x1c8] sm:$0xff]
        %v867 = vld [vmem:[#allocation5 + $0x1d0] sm:$0xff]
        %v868 = vld [vmem:[#allocation5 + $0x1d8] sm:$0xff]
        %v869 = vld [vmem:[#allocation5 + $0x1e0] sm:$0xff]
        %v870 = vld [vmem:[#allocation5 + $0x1e8] sm:$0xff]
        %v871 = vld [vmem:[#allocation5 + $0x1f0] sm:$0xff]
        %v872 = vld [vmem:[#allocation5 + $0x1f8] sm:$0xff]
        %v873 = vld [vmem:[#allocation5 + $0x200] sm:$0xff]
        %v874 = vld [vmem:[#allocation5 + $0x208] sm:$0xff]
        %v875 = vld [vmem:[#allocation5 + $0x210] sm:$0xff]
        %v876 = vld [vmem:[#allocation5 + $0x218] sm:$0xff]
        %v877 = vld [vmem:[#allocation5 + $0x220] sm:$0xff]
        %v878 = vld [vmem:[#allocation5 + $0x228] sm:$0xff]
        %v879 = vld [vmem:[#allocation5 + $0x230] sm:$0xff]
        %v880 = vld [vmem:[#allocation5 + $0x238] sm:$0xff]
        %v881 = vld [vmem:[#allocation5 + $0x240] sm:$0xff]
        %v882 = vld [vmem:[#allocation5 + $0x248] sm:$0xff]
        %v883 = vld [vmem:[#allocation5 + $0x250] sm:$0xff]
        %v884 = vld [vmem:[#allocation5 + $0x258] sm:$0xff]
        %v885 = vld [vmem:[#allocation5 + $0x260] sm:$0xff]
        %v886 = vld [vmem:[#allocation5 + $0x268] sm:$0xff]
        %v887 = vld [vmem:[#allocation5 + $0x270] sm:$0xff]
        %v888 = vld [vmem:[#allocation5 + $0x278] sm:$0xff]
        %v889 = vld [vmem:[#allocation5 + $0x280] sm:$0xff]
        %v890 = vld [vmem:[#allocation5 + $0x288] sm:$0xff]
        %v891 = vld [vmem:[#allocation5 + $0x290] sm:$0xff]
        %v892 = vld [vmem:[#allocation5 + $0x298] sm:$0xff]
        %v893 = vld [vmem:[#allocation5 + $0x2a0] sm:$0xff]
        %v894 = vld [vmem:[#allocation5 + $0x2a8] sm:$0xff]
        %v895 = vld [vmem:[#allocation5 + $0x2b0] sm:$0xff]
        %v896 = vld [vmem:[#allocation5 + $0x2b8] sm:$0xff]
        %v897 = vld [vmem:[#allocation5 + $0x2c0] sm:$0xff]
        %v898 = vld [vmem:[#allocation5 + $0x2c8] sm:$0xff]
        %v899 = vld [vmem:[#allocation5 + $0x2d0] sm:$0xff]
        %v900 = vld [vmem:[#allocation5 + $0x2d8] sm:$0xff]
        %v901 = vld [vmem:[#allocation5 + $0x2e0] sm:$0xff]
        %v902 = vld [vmem:[#allocation5 + $0x2e8] sm:$0xff]
        %v903 = vld [vmem:[#allocation5 + $0x2f0] sm:$0xff]
        %v904 = vld [vmem:[#allocation5 + $0x2f8] sm:$0xff]
        %v905 = vld [vmem:[#allocation5 + $0x300] sm:$0xff]
        %v906 = vld [vmem:[#allocation5 + $0x308] sm:$0xff]
        %v907 = vld [vmem:[#allocation5 + $0x310] sm:$0xff]
        %v908 = vld [vmem:[#allocation5 + $0x318] sm:$0xff]
        %v909 = vld [vmem:[#allocation5 + $0x320] sm:$0xff]
        %v910 = vld [vmem:[#allocation5 + $0x328] sm:$0xff]
        %v911 = vld [vmem:[#allocation5 + $0x330] sm:$0xff]
        %v912 = vld [vmem:[#allocation5 + $0x338] sm:$0xff]
        %v913 = vld [vmem:[#allocation5 + $0x340] sm:$0xff]
        %v914 = vld [vmem:[#allocation5 + $0x348] sm:$0xff]
        %v915 = vld [vmem:[#allocation5 + $0x350] sm:$0xff]
        %v916 = vld [vmem:[#allocation5 + $0x358] sm:$0xff]
        %v917 = vld [vmem:[#allocation5 + $0x360] sm:$0xff]
        %v918 = vld [vmem:[#allocation5 + $0x368] sm:$0xff]
        %v919 = vld [vmem:[#allocation5 + $0x370] sm:$0xff]
        %v920 = vld [vmem:[#allocation5 + $0x378] sm:$0xff]
        %v921 = vld [vmem:[#allocation5 + $0x380] sm:$0xff]
        %v922 = vld [vmem:[#allocation5 + $0x388] sm:$0xff]
        %v923 = vld [vmem:[#allocation5 + $0x390] sm:$0xff]
        %v924 = vld [vmem:[#allocation5 + $0x398] sm:$0xff]
        %v925 = vld [vmem:[#allocation5 + $0x3a0] sm:$0xff]
        %v926 = vld [vmem:[#allocation5 + $0x3a8] sm:$0xff]
        %v927 = vld [vmem:[#allocation5 + $0x3b0] sm:$0xff]
        %v928 = vld [vmem:[#allocation5 + $0x3b8] sm:$0xff]
        %v929 = vld [vmem:[#allocation5 + $0x3c0] sm:$0xff]
        %v930 = vld [vmem:[#allocation5 + $0x3c8] sm:$0xff]
        %v931 = vld [vmem:[#allocation5 + $0x3d0] sm:$0xff]
        %v932 = vld [vmem:[#allocation5 + $0x3d8] sm:$0xff]
        %v933 = vld [vmem:[#allocation5 + $0x3e0] sm:$0xff]
        %v934 = vld [vmem:[#allocation5 + $0x3e8] sm:$0xff]
        %v935 = vld [vmem:[#allocation5 + $0x3f0] sm:$0xff]
        %v936 = vld [vmem:[#allocation5 + $0x3f8] sm:$0xff]
        %v937 = vld [vmem:[#allocation5 + $0x400] sm:$0xff]
        %v938 = vld [vmem:[#allocation5 + $0x408] sm:$0xff]
        %v939 = vld [vmem:[#allocation5 + $0x410] sm:$0xff]
        %v940 = vld [vmem:[#allocation5 + $0x418] sm:$0xff]
        %v941 = vld [vmem:[#allocation5 + $0x420] sm:$0xff]
        %v942 = vld [vmem:[#allocation5 + $0x428] sm:$0xff]
        %v943 = vld [vmem:[#allocation5 + $0x430] sm:$0xff]
        %v944 = vld [vmem:[#allocation5 + $0x438] sm:$0xff]
        %v945 = vld [vmem:[#allocation5 + $0x440] sm:$0xff]
        %v946 = vld [vmem:[#allocation5 + $0x448] sm:$0xff]
        %v947 = vld [vmem:[#allocation5 + $0x450] sm:$0xff]
        %v948 = vld [vmem:[#allocation5 + $0x458] sm:$0xff]
        %v949 = vld [vmem:[#allocation5 + $0x460] sm:$0xff]
        %v950 = vld [vmem:[#allocation5 + $0x468] sm:$0xff]
        %v951 = vld [vmem:[#allocation5 + $0x470] sm:$0xff]
        %v952 = vld [vmem:[#allocation5 + $0x478] sm:$0xff]
        %v953 = vld [vmem:[#allocation5 + $0x480] sm:$0xff]
        %v954 = vld [vmem:[#allocation5 + $0x488] sm:$0xff]
        %v955 = vld [vmem:[#allocation5 + $0x490] sm:$0xff]
        %v956 = vld [vmem:[#allocation5 + $0x498] sm:$0xff]
        %v957 = vld [vmem:[#allocation5 + $0x4a0] sm:$0xff]
        %v958 = vld [vmem:[#allocation5 + $0x4a8] sm:$0xff]
        %v959 = vld [vmem:[#allocation5 + $0x4b0] sm:$0xff]
        %v960 = vld [vmem:[#allocation5 + $0x4b8] sm:$0xff]
        %v961 = vld [vmem:[#allocation5 + $0x4c0] sm:$0xff]
        %v962 = vld [vmem:[#allocation5 + $0x4c8] sm:$0xff]
        %v963 = vld [vmem:[#allocation5 + $0x4d0] sm:$0xff]
        %v964 = vld [vmem:[#allocation5 + $0x4d8] sm:$0xff]
        %v965 = vld [vmem:[#allocation5 + $0x4e0] sm:$0xff]
        %v966 = vld [vmem:[#allocation5 + $0x4e8] sm:$0xff]
        %v967 = vld [vmem:[#allocation5 + $0x4f0] sm:$0xff]
        %v968 = vld [vmem:[#allocation5 + $0x4f8] sm:$0xff]
        %v969 = vld [vmem:[#allocation5 + $0x500] sm:$0xff]
        %v970 = vld [vmem:[#allocation5 + $0x508] sm:$0xff]
        %v971 = vld [vmem:[#allocation5 + $0x510] sm:$0xff]
        %v972 = vld [vmem:[#allocation5 + $0x518] sm:$0xff]
        %v973 = vld [vmem:[#allocation5 + $0x520] sm:$0xff]
        %v974 = vld [vmem:[#allocation5 + $0x528] sm:$0xff]
        %v975 = vld [vmem:[#allocation5 + $0x530] sm:$0xff]
        %v976 = vld [vmem:[#allocation5 + $0x538] sm:$0xff]
        %v977 = vld [vmem:[#allocation5 + $0x540] sm:$0xff]
        %v978 = vld [vmem:[#allocation5 + $0x548] sm:$0xff]
        %v979 = vld [vmem:[#allocation5 + $0x550] sm:$0xff]
        %v980 = vld [vmem:[#allocation5 + $0x558] sm:$0xff]
        %v981 = vld [vmem:[#allocation5 + $0x560] sm:$0xff]
        %v982 = vld [vmem:[#allocation5 + $0x568] sm:$0xff]
        %v983 = vld [vmem:[#allocation5 + $0x570] sm:$0xff]
        %v984 = vld [vmem:[#allocation5 + $0x578] sm:$0xff]
        %v985 = vld [vmem:[#allocation5 + $0x580] sm:$0xff]
        %v986 = vld [vmem:[#allocation5 + $0x588] sm:$0xff]
        %v987 = vld [vmem:[#allocation5 + $0x590] sm:$0xff]
        %v988 = vld [vmem:[#allocation5 + $0x598] sm:$0xff]
        %v989 = vld [vmem:[#allocation5 + $0x5a0] sm:$0xff]
        %v990 = vld [vmem:[#allocation5 + $0x5a8] sm:$0xff]
        %v991 = vld [vmem:[#allocation5 + $0x5b0] sm:$0xff]
        %v992 = vld [vmem:[#allocation5 + $0x5b8] sm:$0xff]
        %v993 = vld [vmem:[#allocation5 + $0x5c0] sm:$0xff]
        %v994 = vld [vmem:[#allocation5 + $0x5c8] sm:$0xff]
        %v995 = vld [vmem:[#allocation5 + $0x5d0] sm:$0xff]
        %v996 = vld [vmem:[#allocation5 + $0x5d8] sm:$0xff]
        %v997 = vld [vmem:[#allocation5 + $0x5e0] sm:$0xff]
        %v998 = vld [vmem:[#allocation5 + $0x5e8] sm:$0xff]
        %v999 = vld [vmem:[#allocation5 + $0x5f0] sm:$0xff]
        %v1000 = vld [vmem:[#allocation5 + $0x5f8] sm:$0xff]
        %v1001 = vld [vmem:[#allocation5 + $0x600] sm:$0xff]
        %v1002 = vld [vmem:[#allocation5 + $0x608] sm:$0xff]
        %v1003 = vld [vmem:[#allocation5 + $0x610] sm:$0xff]
        %v1004 = vld [vmem:[#allocation5 + $0x618] sm:$0xff]
        %v1005 = vld [vmem:[#allocation5 + $0x620] sm:$0xff]
        %v1006 = vld [vmem:[#allocation5 + $0x628] sm:$0xff]
        %v1007 = vld [vmem:[#allocation5 + $0x630] sm:$0xff]
        %v1008 = vld [vmem:[#allocation5 + $0x638] sm:$0xff]
        %v1009 = vld [vmem:[#allocation5 + $0x640] sm:$0xff]
        %v1010 = vld [vmem:[#allocation5 + $0x648] sm:$0xff]
        %v1011 = vld [vmem:[#allocation5 + $0x650] sm:$0xff]
        %v1012 = vld [vmem:[#allocation5 + $0x658] sm:$0xff]
        %v1013 = vld [vmem:[#allocation5 + $0x660] sm:$0xff]
        %v1014 = vld [vmem:[#allocation5 + $0x668] sm:$0xff]
        %v1015 = vld [vmem:[#allocation5 + $0x670] sm:$0xff]
        %v1016 = vld [vmem:[#allocation5 + $0x678] sm:$0xff]
        %v1017 = vld [vmem:[#allocation5 + $0x680] sm:$0xff]
        %v1018 = vld [vmem:[#allocation5 + $0x688] sm:$0xff]
        %v1019 = vld [vmem:[#allocation5 + $0x690] sm:$0xff]
        %v1020 = vld [vmem:[#allocation5 + $0x698] sm:$0xff]
        %v1021 = vld [vmem:[#allocation5 + $0x6a0] sm:$0xff]
        %v1022 = vld [vmem:[#allocation5 + $0x6a8] sm:$0xff]
        %v1023 = vld [vmem:[#allocation5 + $0x6b0] sm:$0xff]
        %v1024 = vld [vmem:[#allocation5 + $0x6b8] sm:$0xff]
        %v1025 = vld [vmem:[#allocation5 + $0x6c0] sm:$0xff]
        %v1026 = vld [vmem:[#allocation5 + $0x6c8] sm:$0xff]
        %v1027 = vld [vmem:[#allocation5 + $0x6d0] sm:$0xff]
        %v1028 = vld [vmem:[#allocation5 + $0x6d8] sm:$0xff]
        %v1029 = vld [vmem:[#allocation5 + $0x6e0] sm:$0xff]
        %v1030 = vld [vmem:[#allocation5 + $0x6e8] sm:$0xff]
        %v1031 = vld [vmem:[#allocation5 + $0x6f0] sm:$0xff]
        %v1032 = vld [vmem:[#allocation5 + $0x6f8] sm:$0xff]
        %v1033 = vld [vmem:[#allocation7] sm:$0xf]
        %v1035 = vperm.slane %v1033, 0
        %v1036 = vperm.slane %v1033, 1
        %v1037 = vperm.slane %v1033, 2
        %v1038 = vperm.slane %v1033, 3
        %v1051 = vunpack.c.l.b16 %v801
        %v1052 = vunpack.c.h.b16 %v801
        %v1053 = vunpack.c.l.b16 %v802
        %v1054 = vunpack.c.h.b16 %v802
        %v1055 = vunpack.c.l.b16 %v803
        %v1056 = vunpack.c.h.b16 %v803
        %v1057 = vunpack.c.l.b16 %v804
        %v1058 = vunpack.c.l.b16 %v805
        %v1059 = vunpack.c.h.b16 %v805
        %v1060 = vunpack.c.l.b16 %v806
        %v1061 = vunpack.c.h.b16 %v806
        %v1062 = vunpack.c.l.b16 %v807
        %v1063 = vunpack.c.h.b16 %v807
        %v1064 = vunpack.c.l.b16 %v808
        %v1065 = vpack.c.b16 %v1058, %v1051
        %v1066 = vpack.c.b16 %v1059, %v1052
        %v1067 = vpack.c.b16 %v1060, %v1053
        %v1068 = vpack.c.b16 %v1061, %v1054
        %v1069 = vpack.c.b16 %v1062, %v1055
        %v1070 = vpack.c.b16 %v1063, %v1056
        %v1071 = vpack.c.b16 %v1064, %v1057
        %v1303 = vunpack.c.l.b16 %v809
        %v1304 = vunpack.c.h.b16 %v809
        %v1305 = vunpack.c.l.b16 %v810
        %v1306 = vunpack.c.h.b16 %v810
        %v1307 = vunpack.c.l.b16 %v811
        %v1308 = vunpack.c.h.b16 %v811
        %v1309 = vunpack.c.l.b16 %v812
        %v1310 = vunpack.c.h.b16 %v812
        %v1311 = vunpack.c.l.b16 %v813
        %v1312 = vunpack.c.h.b16 %v813
        %v1313 = vunpack.c.l.b16 %v814
        %v1314 = vunpack.c.h.b16 %v814
        %v1315 = vunpack.c.l.b16 %v815
        %v1316 = vunpack.c.h.b16 %v815
        %v1317 = vunpack.c.l.b16 %v816
        %v1318 = vunpack.c.h.b16 %v816
        %v1319 = vunpack.c.l.b16 %v817
        %v1320 = vunpack.c.h.b16 %v817
        %v1321 = vunpack.c.l.b16 %v818
        %v1322 = vunpack.c.h.b16 %v818
        %v1323 = vunpack.c.l.b16 %v819
        %v1324 = vunpack.c.h.b16 %v819
        %v1325 = vunpack.c.l.b16 %v820
        %v1326 = vunpack.c.h.b16 %v820
        %v1327 = vunpack.c.l.b16 %v821
        %v1328 = vunpack.c.h.b16 %v821
        %v1329 = vunpack.c.l.b16 %v822
        %v1330 = vunpack.c.h.b16 %v822
        %v1331 = vunpack.c.l.b16 %v823
        %v1332 = vunpack.c.h.b16 %v823
        %v1333 = vunpack.c.l.b16 %v824
        %v1334 = vunpack.c.h.b16 %v824
        %v1335 = vunpack.c.l.b16 %v825
        %v1336 = vunpack.c.h.b16 %v825
        %v1337 = vunpack.c.l.b16 %v826
        %v1338 = vunpack.c.h.b16 %v826
        %v1339 = vunpack.c.l.b16 %v827
        %v1340 = vunpack.c.h.b16 %v827
        %v1341 = vunpack.c.l.b16 %v828
        %v1342 = vunpack.c.h.b16 %v828
        %v1343 = vunpack.c.l.b16 %v829
        %v1344 = vunpack.c.h.b16 %v829
        %v1345 = vunpack.c.l.b16 %v830
        %v1346 = vunpack.c.h.b16 %v830
        %v1347 = vunpack.c.l.b16 %v831
        %v1348 = vunpack.c.h.b16 %v831
        %v1349 = vunpack.c.l.b16 %v832
        %v1350 = vunpack.c.h.b16 %v832
        %v1351 = vunpack.c.l.b16 %v833
        %v1352 = vunpack.c.h.b16 %v833
        %v1353 = vunpack.c.l.b16 %v834
        %v1354 = vunpack.c.h.b16 %v834
        %v1355 = vunpack.c.l.b16 %v835
        %v1356 = vunpack.c.h.b16 %v835
        %v1357 = vunpack.c.l.b16 %v836
        %v1358 = vunpack.c.h.b16 %v836
        %v1359 = vunpack.c.l.b16 %v837
        %v1360 = vunpack.c.h.b16 %v837
        %v1361 = vunpack.c.l.b16 %v838
        %v1362 = vunpack.c.h.b16 %v838
        %v1363 = vunpack.c.l.b16 %v839
        %v1364 = vunpack.c.h.b16 %v839
        %v1365 = vunpack.c.l.b16 %v840
        %v1366 = vunpack.c.h.b16 %v840
        %v1367 = vunpack.c.l.b16 %v841
        %v1368 = vunpack.c.h.b16 %v841
        %v1369 = vunpack.c.l.b16 %v842
        %v1370 = vunpack.c.h.b16 %v842
        %v1371 = vunpack.c.l.b16 %v843
        %v1372 = vunpack.c.h.b16 %v843
        %v1373 = vunpack.c.l.b16 %v844
        %v1374 = vunpack.c.h.b16 %v844
        %v1375 = vunpack.c.l.b16 %v845
        %v1376 = vunpack.c.h.b16 %v845
        %v1377 = vunpack.c.l.b16 %v846
        %v1378 = vunpack.c.h.b16 %v846
        %v1379 = vunpack.c.l.b16 %v847
        %v1380 = vunpack.c.h.b16 %v847
        %v1381 = vunpack.c.l.b16 %v848
        %v1382 = vunpack.c.h.b16 %v848
        %v1383 = vunpack.c.l.b16 %v849
        %v1384 = vunpack.c.h.b16 %v849
        %v1385 = vunpack.c.l.b16 %v850
        %v1386 = vunpack.c.h.b16 %v850
        %v1387 = vunpack.c.l.b16 %v851
        %v1388 = vunpack.c.h.b16 %v851
        %v1389 = vunpack.c.l.b16 %v852
        %v1390 = vunpack.c.h.b16 %v852
        %v1391 = vunpack.c.l.b16 %v853
        %v1392 = vunpack.c.h.b16 %v853
        %v1393 = vunpack.c.l.b16 %v854
        %v1394 = vunpack.c.h.b16 %v854
        %v1395 = vunpack.c.l.b16 %v855
        %v1396 = vunpack.c.h.b16 %v855
        %v1397 = vunpack.c.l.b16 %v856
        %v1398 = vunpack.c.h.b16 %v856
        %v1399 = vunpack.c.l.b16 %v857
        %v1400 = vunpack.c.h.b16 %v857
        %v1401 = vunpack.c.l.b16 %v858
        %v1402 = vunpack.c.h.b16 %v858
        %v1403 = vunpack.c.l.b16 %v859
        %v1404 = vunpack.c.h.b16 %v859
        %v1405 = vunpack.c.l.b16 %v860
        %v1406 = vunpack.c.h.b16 %v860
        %v1407 = vunpack.c.l.b16 %v861
        %v1408 = vunpack.c.h.b16 %v861
        %v1409 = vunpack.c.l.b16 %v862
        %v1410 = vunpack.c.h.b16 %v862
        %v1411 = vunpack.c.l.b16 %v863
        %v1412 = vunpack.c.h.b16 %v863
        %v1413 = vunpack.c.l.b16 %v864
        %v1414 = vunpack.c.h.b16 %v864
        %v1415 = vunpack.c.l.b16 %v865
        %v1416 = vunpack.c.h.b16 %v865
        %v1417 = vunpack.c.l.b16 %v866
        %v1418 = vunpack.c.h.b16 %v866
        %v1419 = vunpack.c.l.b16 %v867
        %v1420 = vunpack.c.h.b16 %v867
        %v1421 = vunpack.c.l.b16 %v868
        %v1422 = vunpack.c.h.b16 %v868
        %v1423 = vunpack.c.l.b16 %v869
        %v1424 = vunpack.c.h.b16 %v869
        %v1425 = vunpack.c.l.b16 %v870
        %v1426 = vunpack.c.h.b16 %v870
        %v1427 = vunpack.c.l.b16 %v871
        %v1428 = vunpack.c.h.b16 %v871
        %v1429 = vunpack.c.l.b16 %v872
        %v1430 = vunpack.c.h.b16 %v872
        %v1431 = vunpack.c.l.b16 %v873
        %v1432 = vunpack.c.h.b16 %v873
        %v1433 = vunpack.c.l.b16 %v874
        %v1434 = vunpack.c.h.b16 %v874
        %v1435 = vunpack.c.l.b16 %v875
        %v1436 = vunpack.c.h.b16 %v875
        %v1437 = vunpack.c.l.b16 %v876
        %v1438 = vunpack.c.h.b16 %v876
        %v1439 = vunpack.c.l.b16 %v877
        %v1440 = vunpack.c.h.b16 %v877
        %v1441 = vunpack.c.l.b16 %v878
        %v1442 = vunpack.c.h.b16 %v878
        %v1443 = vunpack.c.l.b16 %v879
        %v1444 = vunpack.c.h.b16 %v879
        %v1445 = vunpack.c.l.b16 %v880
        %v1446 = vunpack.c.h.b16 %v880
        %v1447 = vunpack.c.l.b16 %v881
        %v1448 = vunpack.c.h.b16 %v881
        %v1449 = vunpack.c.l.b16 %v882
        %v1450 = vunpack.c.h.b16 %v882
        %v1451 = vunpack.c.l.b16 %v883
        %v1452 = vunpack.c.h.b16 %v883
        %v1453 = vunpack.c.l.b16 %v884
        %v1454 = vunpack.c.h.b16 %v884
        %v1455 = vunpack.c.l.b16 %v885
        %v1456 = vunpack.c.h.b16 %v885
        %v1457 = vunpack.c.l.b16 %v886
        %v1458 = vunpack.c.h.b16 %v886
        %v1459 = vunpack.c.l.b16 %v887
        %v1460 = vunpack.c.h.b16 %v887
        %v1461 = vunpack.c.l.b16 %v888
        %v1462 = vunpack.c.h.b16 %v888
        %v1463 = vunpack.c.l.b16 %v889
        %v1464 = vunpack.c.h.b16 %v889
        %v1465 = vunpack.c.l.b16 %v890
        %v1466 = vunpack.c.h.b16 %v890
        %v1467 = vunpack.c.l.b16 %v891
        %v1468 = vunpack.c.h.b16 %v891
        %v1469 = vunpack.c.l.b16 %v892
        %v1470 = vunpack.c.h.b16 %v892
        %v1471 = vunpack.c.l.b16 %v893
        %v1472 = vunpack.c.h.b16 %v893
        %v1473 = vunpack.c.l.b16 %v894
        %v1474 = vunpack.c.h.b16 %v894
        %v1475 = vunpack.c.l.b16 %v895
        %v1476 = vunpack.c.h.b16 %v895
        %v1477 = vunpack.c.l.b16 %v896
        %v1478 = vunpack.c.h.b16 %v896
        %v1479 = vunpack.c.l.b16 %v897
        %v1480 = vunpack.c.h.b16 %v897
        %v1481 = vunpack.c.l.b16 %v898
        %v1482 = vunpack.c.h.b16 %v898
        %v1483 = vunpack.c.l.b16 %v899
        %v1484 = vunpack.c.h.b16 %v899
        %v1485 = vunpack.c.l.b16 %v900
        %v1486 = vunpack.c.h.b16 %v900
        %v1487 = vunpack.c.l.b16 %v901
        %v1488 = vunpack.c.h.b16 %v901
        %v1489 = vunpack.c.l.b16 %v902
        %v1490 = vunpack.c.h.b16 %v902
        %v1491 = vunpack.c.l.b16 %v903
        %v1492 = vunpack.c.h.b16 %v903
        %v1493 = vunpack.c.l.b16 %v904
        %v1494 = vunpack.c.h.b16 %v904
        %v1495 = vunpack.c.l.b16 %v905
        %v1496 = vunpack.c.h.b16 %v905
        %v1497 = vunpack.c.l.b16 %v906
        %v1498 = vunpack.c.h.b16 %v906
        %v1499 = vunpack.c.l.b16 %v907
        %v1500 = vunpack.c.h.b16 %v907
        %v1501 = vunpack.c.l.b16 %v908
        %v1502 = vunpack.c.h.b16 %v908
        %v1503 = vunpack.c.l.b16 %v909
        %v1504 = vunpack.c.h.b16 %v909
        %v1505 = vunpack.c.l.b16 %v910
        %v1506 = vunpack.c.h.b16 %v910
        %v1507 = vunpack.c.l.b16 %v911
        %v1508 = vunpack.c.h.b16 %v911
        %v1509 = vunpack.c.l.b16 %v912
        %v1510 = vunpack.c.h.b16 %v912
        %v1511 = vunpack.c.l.b16 %v913
        %v1512 = vunpack.c.h.b16 %v913
        %v1513 = vunpack.c.l.b16 %v914
        %v1514 = vunpack.c.h.b16 %v914
        %v1515 = vunpack.c.l.b16 %v915
        %v1516 = vunpack.c.h.b16 %v915
        %v1517 = vunpack.c.l.b16 %v916
        %v1518 = vunpack.c.h.b16 %v916
        %v1519 = vunpack.c.l.b16 %v917
        %v1520 = vunpack.c.h.b16 %v917
        %v1521 = vunpack.c.l.b16 %v918
        %v1522 = vunpack.c.h.b16 %v918
        %v1523 = vunpack.c.l.b16 %v919
        %v1524 = vunpack.c.h.b16 %v919
        %v1525 = vunpack.c.l.b16 %v920
        %v1526 = vunpack.c.h.b16 %v920
        %v1527 = vunpack.c.l.b16 %v921
        %v1528 = vunpack.c.h.b16 %v921
        %v1529 = vunpack.c.l.b16 %v922
        %v1530 = vunpack.c.h.b16 %v922
        %v1531 = vunpack.c.l.b16 %v923
        %v1532 = vunpack.c.h.b16 %v923
        %v1533 = vunpack.c.l.b16 %v924
        %v1534 = vunpack.c.h.b16 %v924
        %v1535 = vunpack.c.l.b16 %v925
        %v1536 = vunpack.c.h.b16 %v925
        %v1537 = vunpack.c.l.b16 %v926
        %v1538 = vunpack.c.h.b16 %v926
        %v1539 = vunpack.c.l.b16 %v927
        %v1540 = vunpack.c.h.b16 %v927
        %v1541 = vunpack.c.l.b16 %v928
        %v1542 = vunpack.c.h.b16 %v928
        %v1543 = vunpack.c.l.b16 %v929
        %v1544 = vunpack.c.h.b16 %v929
        %v1545 = vunpack.c.l.b16 %v930
        %v1546 = vunpack.c.h.b16 %v930
        %v1547 = vunpack.c.l.b16 %v931
        %v1548 = vunpack.c.h.b16 %v931
        %v1549 = vunpack.c.l.b16 %v932
        %v1550 = vunpack.c.h.b16 %v932
        %v1551 = vunpack.c.l.b16 %v933
        %v1552 = vunpack.c.h.b16 %v933
        %v1553 = vunpack.c.l.b16 %v934
        %v1554 = vunpack.c.h.b16 %v934
        %v1555 = vunpack.c.l.b16 %v935
        %v1556 = vunpack.c.h.b16 %v935
        %v1557 = vunpack.c.l.b16 %v936
        %v1558 = vunpack.c.h.b16 %v936
        %v1559 = vunpack.c.l.b16 %v937
        %v1560 = vunpack.c.h.b16 %v937
        %v1561 = vunpack.c.l.b16 %v938
        %v1562 = vunpack.c.h.b16 %v938
        %v1563 = vunpack.c.l.b16 %v939
        %v1564 = vunpack.c.h.b16 %v939
        %v1565 = vunpack.c.l.b16 %v940
        %v1566 = vunpack.c.h.b16 %v940
        %v1567 = vunpack.c.l.b16 %v941
        %v1568 = vunpack.c.h.b16 %v941
        %v1569 = vunpack.c.l.b16 %v942
        %v1570 = vunpack.c.h.b16 %v942
        %v1571 = vunpack.c.l.b16 %v943
        %v1572 = vunpack.c.h.b16 %v943
        %v1573 = vunpack.c.l.b16 %v944
        %v1574 = vunpack.c.h.b16 %v944
        %v1575 = vunpack.c.l.b16 %v945
        %v1576 = vunpack.c.h.b16 %v945
        %v1577 = vunpack.c.l.b16 %v946
        %v1578 = vunpack.c.h.b16 %v946
        %v1579 = vunpack.c.l.b16 %v947
        %v1580 = vunpack.c.h.b16 %v947
        %v1581 = vunpack.c.l.b16 %v948
        %v1582 = vunpack.c.h.b16 %v948
        %v1583 = vunpack.c.l.b16 %v949
        %v1584 = vunpack.c.h.b16 %v949
        %v1585 = vunpack.c.l.b16 %v950
        %v1586 = vunpack.c.h.b16 %v950
        %v1587 = vunpack.c.l.b16 %v951
        %v1588 = vunpack.c.h.b16 %v951
        %v1589 = vunpack.c.l.b16 %v952
        %v1590 = vunpack.c.h.b16 %v952
        %v1591 = vunpack.c.l.b16 %v953
        %v1592 = vunpack.c.h.b16 %v953
        %v1593 = vunpack.c.l.b16 %v954
        %v1594 = vunpack.c.h.b16 %v954
        %v1595 = vunpack.c.l.b16 %v955
        %v1596 = vunpack.c.h.b16 %v955
        %v1597 = vunpack.c.l.b16 %v956
        %v1598 = vunpack.c.h.b16 %v956
        %v1599 = vunpack.c.l.b16 %v957
        %v1600 = vunpack.c.h.b16 %v957
        %v1601 = vunpack.c.l.b16 %v958
        %v1602 = vunpack.c.h.b16 %v958
        %v1603 = vunpack.c.l.b16 %v959
        %v1604 = vunpack.c.h.b16 %v959
        %v1605 = vunpack.c.l.b16 %v960
        %v1606 = vunpack.c.h.b16 %v960
        %v1607 = vunpack.c.l.b16 %v961
        %v1608 = vunpack.c.h.b16 %v961
        %v1609 = vunpack.c.l.b16 %v962
        %v1610 = vunpack.c.h.b16 %v962
        %v1611 = vunpack.c.l.b16 %v963
        %v1612 = vunpack.c.h.b16 %v963
        %v1613 = vunpack.c.l.b16 %v964
        %v1614 = vunpack.c.h.b16 %v964
        %v1615 = vunpack.c.l.b16 %v965
        %v1616 = vunpack.c.h.b16 %v965
        %v1617 = vunpack.c.l.b16 %v966
        %v1618 = vunpack.c.h.b16 %v966
        %v1619 = vunpack.c.l.b16 %v967
        %v1620 = vunpack.c.h.b16 %v967
        %v1621 = vunpack.c.l.b16 %v968
        %v1622 = vunpack.c.h.b16 %v968
        %v1623 = vunpack.c.l.b16 %v969
        %v1624 = vunpack.c.h.b16 %v969
        %v1625 = vunpack.c.l.b16 %v970
        %v1626 = vunpack.c.h.b16 %v970
        %v1627 = vunpack.c.l.b16 %v971
        %v1628 = vunpack.c.h.b16 %v971
        %v1629 = vunpack.c.l.b16 %v972
        %v1630 = vunpack.c.h.b16 %v972
        %v1631 = vunpack.c.l.b16 %v973
        %v1632 = vunpack.c.h.b16 %v973
        %v1633 = vunpack.c.l.b16 %v974
        %v1634 = vunpack.c.h.b16 %v974
        %v1635 = vunpack.c.l.b16 %v975
        %v1636 = vunpack.c.h.b16 %v975
        %v1637 = vunpack.c.l.b16 %v976
        %v1638 = vunpack.c.h.b16 %v976
        %v1639 = vunpack.c.l.b16 %v977
        %v1640 = vunpack.c.h.b16 %v977
        %v1641 = vunpack.c.l.b16 %v978
        %v1642 = vunpack.c.h.b16 %v978
        %v1643 = vunpack.c.l.b16 %v979
        %v1644 = vunpack.c.h.b16 %v979
        %v1645 = vunpack.c.l.b16 %v980
        %v1646 = vunpack.c.h.b16 %v980
        %v1647 = vunpack.c.l.b16 %v981
        %v1648 = vunpack.c.h.b16 %v981
        %v1649 = vunpack.c.l.b16 %v982
        %v1650 = vunpack.c.h.b16 %v982
        %v1651 = vunpack.c.l.b16 %v983
        %v1652 = vunpack.c.h.b16 %v983
        %v1653 = vunpack.c.l.b16 %v984
        %v1654 = vunpack.c.h.b16 %v984
        %v1655 = vunpack.c.l.b16 %v985
        %v1656 = vunpack.c.h.b16 %v985
        %v1657 = vunpack.c.l.b16 %v986
        %v1658 = vunpack.c.h.b16 %v986
        %v1659 = vunpack.c.l.b16 %v987
        %v1660 = vunpack.c.h.b16 %v987
        %v1661 = vunpack.c.l.b16 %v988
        %v1662 = vunpack.c.h.b16 %v988
        %v1663 = vunpack.c.l.b16 %v989
        %v1664 = vunpack.c.h.b16 %v989
        %v1665 = vunpack.c.l.b16 %v990
        %v1666 = vunpack.c.h.b16 %v990
        %v1667 = vunpack.c.l.b16 %v991
        %v1668 = vunpack.c.h.b16 %v991
        %v1669 = vunpack.c.l.b16 %v992
        %v1670 = vunpack.c.h.b16 %v992
        %v1671 = vunpack.c.l.b16 %v993
        %v1672 = vunpack.c.h.b16 %v993
        %v1673 = vunpack.c.l.b16 %v994
        %v1674 = vunpack.c.h.b16 %v994
        %v1675 = vunpack.c.l.b16 %v995
        %v1676 = vunpack.c.h.b16 %v995
        %v1677 = vunpack.c.l.b16 %v996
        %v1678 = vunpack.c.h.b16 %v996
        %v1679 = vunpack.c.l.b16 %v997
        %v1680 = vunpack.c.h.b16 %v997
        %v1681 = vunpack.c.l.b16 %v998
        %v1682 = vunpack.c.h.b16 %v998
        %v1683 = vunpack.c.l.b16 %v999
        %v1684 = vunpack.c.h.b16 %v999
        %v1685 = vunpack.c.l.b16 %v1000
        %v1686 = vunpack.c.h.b16 %v1000
        %v1687 = vunpack.c.l.b16 %v1001
        %v1688 = vunpack.c.h.b16 %v1001
        %v1689 = vunpack.c.l.b16 %v1002
        %v1690 = vunpack.c.h.b16 %v1002
        %v1691 = vunpack.c.l.b16 %v1003
        %v1692 = vunpack.c.h.b16 %v1003
        %v1693 = vunpack.c.l.b16 %v1004
        %v1694 = vunpack.c.h.b16 %v1004
        %v1695 = vunpack.c.l.b16 %v1005
        %v1696 = vunpack.c.h.b16 %v1005
        %v1697 = vunpack.c.l.b16 %v1006
        %v1698 = vunpack.c.h.b16 %v1006
        %v1699 = vunpack.c.l.b16 %v1007
        %v1700 = vunpack.c.h.b16 %v1007
        %v1701 = vunpack.c.l.b16 %v1008
        %v1702 = vunpack.c.h.b16 %v1008
        %v1703 = vunpack.c.l.b16 %v1009
        %v1704 = vunpack.c.h.b16 %v1009
        %v1705 = vunpack.c.l.b16 %v1010
        %v1706 = vunpack.c.h.b16 %v1010
        %v1707 = vunpack.c.l.b16 %v1011
        %v1708 = vunpack.c.h.b16 %v1011
        %v1709 = vunpack.c.l.b16 %v1012
        %v1710 = vunpack.c.h.b16 %v1012
        %v1711 = vunpack.c.l.b16 %v1013
        %v1712 = vunpack.c.h.b16 %v1013
        %v1713 = vunpack.c.l.b16 %v1014
        %v1714 = vunpack.c.h.b16 %v1014
        %v1715 = vunpack.c.l.b16 %v1015
        %v1716 = vunpack.c.h.b16 %v1015
        %v1717 = vunpack.c.l.b16 %v1016
        %v1718 = vunpack.c.h.b16 %v1016
        %v1719 = vunpack.c.l.b16 %v1017
        %v1720 = vunpack.c.h.b16 %v1017
        %v1721 = vunpack.c.l.b16 %v1018
        %v1722 = vunpack.c.h.b16 %v1018
        %v1723 = vunpack.c.l.b16 %v1019
        %v1724 = vunpack.c.h.b16 %v1019
        %v1725 = vunpack.c.l.b16 %v1020
        %v1726 = vunpack.c.h.b16 %v1020
        %v1727 = vunpack.c.l.b16 %v1021
        %v1728 = vunpack.c.h.b16 %v1021
        %v1729 = vunpack.c.l.b16 %v1022
        %v1730 = vunpack.c.h.b16 %v1022
        %v1731 = vunpack.c.l.b16 %v1023
        %v1732 = vunpack.c.h.b16 %v1023
        %v1733 = vunpack.c.l.b16 %v1024
        %v1734 = vunpack.c.h.b16 %v1024
        %v1735 = vunpack.c.l.b16 %v1025
        %v1736 = vunpack.c.h.b16 %v1025
        %v1737 = vunpack.c.l.b16 %v1026
        %v1738 = vunpack.c.h.b16 %v1026
        %v1739 = vunpack.c.l.b16 %v1027
        %v1740 = vunpack.c.h.b16 %v1027
        %v1741 = vunpack.c.l.b16 %v1028
        %v1742 = vunpack.c.h.b16 %v1028
        %v1743 = vunpack.c.l.b16 %v1029
        %v1744 = vunpack.c.h.b16 %v1029
        %v1745 = vunpack.c.l.b16 %v1030
        %v1746 = vunpack.c.h.b16 %v1030
        %v1747 = vunpack.c.l.b16 %v1031
        %v1748 = vunpack.c.h.b16 %v1031
        %v1749 = vunpack.c.l.b16 %v1032
        %v1750 = vunpack.c.h.b16 %v1032
        %v1751 = vpack.c.b16 %v1307, %v1303
        %v1752 = vpack.c.b16 %v1308, %v1304
        %v1753 = vpack.c.b16 %v1309, %v1305
        %v1754 = vpack.c.b16 %v1310, %v1306
        %v1755 = vpack.c.b16 %v1315, %v1311
        %v1756 = vpack.c.b16 %v1316, %v1312
        %v1757 = vpack.c.b16 %v1317, %v1313
        %v1758 = vpack.c.b16 %v1318, %v1314
        %v1759 = vpack.c.b16 %v1323, %v1319
        %v1760 = vpack.c.b16 %v1324, %v1320
        %v1761 = vpack.c.b16 %v1325, %v1321
        %v1762 = vpack.c.b16 %v1326, %v1322
        %v1763 = vpack.c.b16 %v1331, %v1327
        %v1764 = vpack.c.b16 %v1332, %v1328
        %v1765 = vpack.c.b16 %v1333, %v1329
        %v1766 = vpack.c.b16 %v1334, %v1330
        %v1767 = vpack.c.b16 %v1339, %v1335
        %v1768 = vpack.c.b16 %v1340, %v1336
        %v1769 = vpack.c.b16 %v1341, %v1337
        %v1770 = vpack.c.b16 %v1342, %v1338
        %v1771 = vpack.c.b16 %v1347, %v1343
        %v1772 = vpack.c.b16 %v1348, %v1344
        %v1773 = vpack.c.b16 %v1349, %v1345
        %v1774 = vpack.c.b16 %v1350, %v1346
        %v1775 = vpack.c.b16 %v1355, %v1351
        %v1776 = vpack.c.b16 %v1356, %v1352
        %v1777 = vpack.c.b16 %v1357, %v1353
        %v1778 = vpack.c.b16 %v1358, %v1354
        %v1779 = vpack.c.b16 %v1363, %v1359
        %v1780 = vpack.c.b16 %v1364, %v1360
        %v1781 = vpack.c.b16 %v1365, %v1361
        %v1782 = vpack.c.b16 %v1366, %v1362
        %v1783 = vpack.c.b16 %v1371, %v1367
        %v1784 = vpack.c.b16 %v1372, %v1368
        %v1785 = vpack.c.b16 %v1373, %v1369
        %v1786 = vpack.c.b16 %v1374, %v1370
        %v1787 = vpack.c.b16 %v1379, %v1375
        %v1788 = vpack.c.b16 %v1380, %v1376
        %v1789 = vpack.c.b16 %v1381, %v1377
        %v1790 = vpack.c.b16 %v1382, %v1378
        %v1791 = vpack.c.b16 %v1387, %v1383
        %v1792 = vpack.c.b16 %v1388, %v1384
        %v1793 = vpack.c.b16 %v1389, %v1385
        %v1794 = vpack.c.b16 %v1390, %v1386
        %v1795 = vpack.c.b16 %v1395, %v1391
        %v1796 = vpack.c.b16 %v1396, %v1392
        %v1797 = vpack.c.b16 %v1397, %v1393
        %v1798 = vpack.c.b16 %v1398, %v1394
        %v1799 = vpack.c.b16 %v1403, %v1399
        %v1800 = vpack.c.b16 %v1404, %v1400
        %v1801 = vpack.c.b16 %v1405, %v1401
        %v1802 = vpack.c.b16 %v1406, %v1402
        %v1803 = vpack.c.b16 %v1411, %v1407
        %v1804 = vpack.c.b16 %v1412, %v1408
        %v1805 = vpack.c.b16 %v1413, %v1409
        %v1806 = vpack.c.b16 %v1414, %v1410
        %v1807 = vpack.c.b16 %v1419, %v1415
        %v1808 = vpack.c.b16 %v1420, %v1416
        %v1809 = vpack.c.b16 %v1421, %v1417
        %v1810 = vpack.c.b16 %v1422, %v1418
        %v1811 = vpack.c.b16 %v1427, %v1423
        %v1812 = vpack.c.b16 %v1428, %v1424
        %v1813 = vpack.c.b16 %v1429, %v1425
        %v1814 = vpack.c.b16 %v1430, %v1426
        %v1815 = vpack.c.b16 %v1435, %v1431
        %v1816 = vpack.c.b16 %v1436, %v1432
        %v1817 = vpack.c.b16 %v1437, %v1433
        %v1818 = vpack.c.b16 %v1438, %v1434
        %v1819 = vpack.c.b16 %v1443, %v1439
        %v1820 = vpack.c.b16 %v1444, %v1440
        %v1821 = vpack.c.b16 %v1445, %v1441
        %v1822 = vpack.c.b16 %v1446, %v1442
        %v1823 = vpack.c.b16 %v1451, %v1447
        %v1824 = vpack.c.b16 %v1452, %v1448
        %v1825 = vpack.c.b16 %v1453, %v1449
        %v1826 = vpack.c.b16 %v1454, %v1450
        %v1827 = vpack.c.b16 %v1459, %v1455
        %v1828 = vpack.c.b16 %v1460, %v1456
        %v1829 = vpack.c.b16 %v1461, %v1457
        %v1830 = vpack.c.b16 %v1462, %v1458
        %v1831 = vpack.c.b16 %v1467, %v1463
        %v1832 = vpack.c.b16 %v1468, %v1464
        %v1833 = vpack.c.b16 %v1469, %v1465
        %v1834 = vpack.c.b16 %v1470, %v1466
        %v1835 = vpack.c.b16 %v1475, %v1471
        %v1836 = vpack.c.b16 %v1476, %v1472
        %v1837 = vpack.c.b16 %v1477, %v1473
        %v1838 = vpack.c.b16 %v1478, %v1474
        %v1839 = vpack.c.b16 %v1483, %v1479
        %v1840 = vpack.c.b16 %v1484, %v1480
        %v1841 = vpack.c.b16 %v1485, %v1481
        %v1842 = vpack.c.b16 %v1486, %v1482
        %v1843 = vpack.c.b16 %v1491, %v1487
        %v1844 = vpack.c.b16 %v1492, %v1488
        %v1845 = vpack.c.b16 %v1493, %v1489
        %v1846 = vpack.c.b16 %v1494, %v1490
        %v1847 = vpack.c.b16 %v1499, %v1495
        %v1848 = vpack.c.b16 %v1500, %v1496
        %v1849 = vpack.c.b16 %v1501, %v1497
        %v1850 = vpack.c.b16 %v1502, %v1498
        %v1851 = vpack.c.b16 %v1507, %v1503
        %v1852 = vpack.c.b16 %v1508, %v1504
        %v1853 = vpack.c.b16 %v1509, %v1505
        %v1854 = vpack.c.b16 %v1510, %v1506
        %v1855 = vpack.c.b16 %v1515, %v1511
        %v1856 = vpack.c.b16 %v1516, %v1512
        %v1857 = vpack.c.b16 %v1517, %v1513
        %v1858 = vpack.c.b16 %v1518, %v1514
        %v1859 = vpack.c.b16 %v1523, %v1519
        %v1860 = vpack.c.b16 %v1524, %v1520
        %v1861 = vpack.c.b16 %v1525, %v1521
        %v1862 = vpack.c.b16 %v1526, %v1522
        %v1863 = vpack.c.b16 %v1531, %v1527
        %v1864 = vpack.c.b16 %v1532, %v1528
        %v1865 = vpack.c.b16 %v1533, %v1529
        %v1866 = vpack.c.b16 %v1534, %v1530
        %v1867 = vpack.c.b16 %v1539, %v1535
        %v1868 = vpack.c.b16 %v1540, %v1536
        %v1869 = vpack.c.b16 %v1541, %v1537
        %v1870 = vpack.c.b16 %v1542, %v1538
        %v1871 = vpack.c.b16 %v1547, %v1543
        %v1872 = vpack.c.b16 %v1548, %v1544
        %v1873 = vpack.c.b16 %v1549, %v1545
        %v1874 = vpack.c.b16 %v1550, %v1546
        %v1875 = vpack.c.b16 %v1555, %v1551
        %v1876 = vpack.c.b16 %v1556, %v1552
        %v1877 = vpack.c.b16 %v1557, %v1553
        %v1878 = vpack.c.b16 %v1558, %v1554
        %v1879 = vpack.c.b16 %v1563, %v1559
        %v1880 = vpack.c.b16 %v1564, %v1560
        %v1881 = vpack.c.b16 %v1565, %v1561
        %v1882 = vpack.c.b16 %v1566, %v1562
        %v1883 = vpack.c.b16 %v1571, %v1567
        %v1884 = vpack.c.b16 %v1572, %v1568
        %v1885 = vpack.c.b16 %v1573, %v1569
        %v1886 = vpack.c.b16 %v1574, %v1570
        %v1887 = vpack.c.b16 %v1579, %v1575
        %v1888 = vpack.c.b16 %v1580, %v1576
        %v1889 = vpack.c.b16 %v1581, %v1577
        %v1890 = vpack.c.b16 %v1582, %v1578
        %v1891 = vpack.c.b16 %v1587, %v1583
        %v1892 = vpack.c.b16 %v1588, %v1584
        %v1893 = vpack.c.b16 %v1589, %v1585
        %v1894 = vpack.c.b16 %v1590, %v1586
        %v1895 = vpack.c.b16 %v1595, %v1591
        %v1896 = vpack.c.b16 %v1596, %v1592
        %v1897 = vpack.c.b16 %v1597, %v1593
        %v1898 = vpack.c.b16 %v1598, %v1594
        %v1899 = vpack.c.b16 %v1603, %v1599
        %v1900 = vpack.c.b16 %v1604, %v1600
        %v1901 = vpack.c.b16 %v1605, %v1601
        %v1902 = vpack.c.b16 %v1606, %v1602
        %v1903 = vpack.c.b16 %v1611, %v1607
        %v1904 = vpack.c.b16 %v1612, %v1608
        %v1905 = vpack.c.b16 %v1613, %v1609
        %v1906 = vpack.c.b16 %v1614, %v1610
        %v1907 = vpack.c.b16 %v1619, %v1615
        %v1908 = vpack.c.b16 %v1620, %v1616
        %v1909 = vpack.c.b16 %v1621, %v1617
        %v1910 = vpack.c.b16 %v1622, %v1618
        %v1911 = vpack.c.b16 %v1627, %v1623
        %v1912 = vpack.c.b16 %v1628, %v1624
        %v1913 = vpack.c.b16 %v1629, %v1625
        %v1914 = vpack.c.b16 %v1630, %v1626
        %v1915 = vpack.c.b16 %v1635, %v1631
        %v1916 = vpack.c.b16 %v1636, %v1632
        %v1917 = vpack.c.b16 %v1637, %v1633
        %v1918 = vpack.c.b16 %v1638, %v1634
        %v1919 = vpack.c.b16 %v1643, %v1639
        %v1920 = vpack.c.b16 %v1644, %v1640
        %v1921 = vpack.c.b16 %v1645, %v1641
        %v1922 = vpack.c.b16 %v1646, %v1642
        %v1923 = vpack.c.b16 %v1651, %v1647
        %v1924 = vpack.c.b16 %v1652, %v1648
        %v1925 = vpack.c.b16 %v1653, %v1649
        %v1926 = vpack.c.b16 %v1654, %v1650
        %v1927 = vpack.c.b16 %v1659, %v1655
        %v1928 = vpack.c.b16 %v1660, %v1656
        %v1929 = vpack.c.b16 %v1661, %v1657
        %v1930 = vpack.c.b16 %v1662, %v1658
        %v1931 = vpack.c.b16 %v1667, %v1663
        %v1932 = vpack.c.b16 %v1668, %v1664
        %v1933 = vpack.c.b16 %v1669, %v1665
        %v1934 = vpack.c.b16 %v1670, %v1666
        %v1935 = vpack.c.b16 %v1675, %v1671
        %v1936 = vpack.c.b16 %v1676, %v1672
        %v1937 = vpack.c.b16 %v1677, %v1673
        %v1938 = vpack.c.b16 %v1678, %v1674
        %v1939 = vpack.c.b16 %v1683, %v1679
        %v1940 = vpack.c.b16 %v1684, %v1680
        %v1941 = vpack.c.b16 %v1685, %v1681
        %v1942 = vpack.c.b16 %v1686, %v1682
        %v1943 = vpack.c.b16 %v1691, %v1687
        %v1944 = vpack.c.b16 %v1692, %v1688
        %v1945 = vpack.c.b16 %v1693, %v1689
        %v1946 = vpack.c.b16 %v1694, %v1690
        %v1947 = vpack.c.b16 %v1699, %v1695
        %v1948 = vpack.c.b16 %v1700, %v1696
        %v1949 = vpack.c.b16 %v1701, %v1697
        %v1950 = vpack.c.b16 %v1702, %v1698
        %v1951 = vpack.c.b16 %v1707, %v1703
        %v1952 = vpack.c.b16 %v1708, %v1704
        %v1953 = vpack.c.b16 %v1709, %v1705
        %v1954 = vpack.c.b16 %v1710, %v1706
        %v1955 = vpack.c.b16 %v1715, %v1711
        %v1956 = vpack.c.b16 %v1716, %v1712
        %v1957 = vpack.c.b16 %v1717, %v1713
        %v1958 = vpack.c.b16 %v1718, %v1714
        %v1959 = vpack.c.b16 %v1723, %v1719
        %v1960 = vpack.c.b16 %v1724, %v1720
        %v1961 = vpack.c.b16 %v1725, %v1721
        %v1962 = vpack.c.b16 %v1726, %v1722
        %v1963 = vpack.c.b16 %v1731, %v1727
        %v1964 = vpack.c.b16 %v1732, %v1728
        %v1965 = vpack.c.b16 %v1733, %v1729
        %v1966 = vpack.c.b16 %v1734, %v1730
        %v1967 = vpack.c.b16 %v1739, %v1735
        %v1968 = vpack.c.b16 %v1740, %v1736
        %v1969 = vpack.c.b16 %v1741, %v1737
        %v1970 = vpack.c.b16 %v1742, %v1738
        %v1971 = vpack.c.b16 %v1747, %v1743
        %v1972 = vpack.c.b16 %v1748, %v1744
        %v1973 = vpack.c.b16 %v1749, %v1745
        %v1974 = vpack.c.b16 %v1750, %v1746
        %2199 = vmatpush.bf16.msra.mxu0 %v1779
        %2200 = vmatpush.bf16.msra.mxu0 %v1775
        %2201 = vmatpush.bf16.msra.mxu0 %v1771
        %2202 = vmatpush.bf16.msra.mxu0 %v1767
        %2203 = vmatpush.bf16.msra.mxu0 %v1763
        %2204 = vmatpush.bf16.msra.mxu0 %v1759
        %2205 = vmatpush.bf16.msra.mxu0 %v1755
        %2206 = vmatpush.bf16.msra.mxu0 %v1751
        %2207 = vmatmul.bf16.gmra.mxu0 %v1065
        %v2208 = vpop.f32.mrf.mxu0
        %v2209 = vadd.f32 %v1035, %v2208
        %v2210 = vpop.f32.mrf.mxu0
        %v2211 = vadd.f32 %v1035, %v2210
        %2212 = vdwg.mxu0
        %2213 = vmatpush.bf16.msra.mxu0 %v1811
        %2214 = vmatpush.bf16.msra.mxu0 %v1807
        %2215 = vmatpush.bf16.msra.mxu0 %v1803
        %2216 = vmatpush.bf16.msra.mxu0 %v1799
        %2217 = vmatpush.bf16.msra.mxu0 %v1795
        %2218 = vmatpush.bf16.msra.mxu0 %v1791
        %2219 = vmatpush.bf16.msra.mxu0 %v1787
        %2220 = vmatpush.bf16.msra.mxu0 %v1783
        %2221 = vmatmul.bf16.gmra.mxu0 %v1066
        %v2222 = vpop.f32.mrf.mxu0
        %v2223 = vadd.f32 %v2209, %v2222
        %v2224 = vpop.f32.mrf.mxu0
        %v2225 = vadd.f32 %v2211, %v2224
        %2226 = vdwg.mxu0
        %2227 = vmatpush.bf16.msra.mxu0 %v1843
        %2228 = vmatpush.bf16.msra.mxu0 %v1839
        %2229 = vmatpush.bf16.msra.mxu0 %v1835
        %2230 = vmatpush.bf16.msra.mxu0 %v1831
        %2231 = vmatpush.bf16.msra.mxu0 %v1827
        %2232 = vmatpush.bf16.msra.mxu0 %v1823
        %2233 = vmatpush.bf16.msra.mxu0 %v1819
        %2234 = vmatpush.bf16.msra.mxu0 %v1815
        %2235 = vmatmul.bf16.gmra.mxu0 %v1067
        %v2236 = vpop.f32.mrf.mxu0
        %v2237 = vadd.f32 %v2223, %v2236
        %v2238 = vpop.f32.mrf.mxu0
        %v2239 = vadd.f32 %v2225, %v2238
        %2240 = vdwg.mxu0
        %2241 = vmatpush.bf16.msra.mxu0 %v1875
        %2242 = vmatpush.bf16.msra.mxu0 %v1871
        %2243 = vmatpush.bf16.msra.mxu0 %v1867
        %2244 = vmatpush.bf16.msra.mxu0 %v1863
        %2245 = vmatpush.bf16.msra.mxu0 %v1859
        %2246 = vmatpush.bf16.msra.mxu0 %v1855
        %2247 = vmatpush.bf16.msra.mxu0 %v1851
        %2248 = vmatpush.bf16.msra.mxu0 %v1847
        %2249 = vmatmul.bf16.gmra.mxu0 %v1068
        %v2250 = vpop.f32.mrf.mxu0
        %v2251 = vadd.f32 %v2237, %v2250
        %v2252 = vpop.f32.mrf.mxu0
        %v2253 = vadd.f32 %v2239, %v2252
        %2254 = vdwg.mxu0
        %2255 = vmatpush.bf16.msra.mxu0 %v1907
        %2256 = vmatpush.bf16.msra.mxu0 %v1903
        %2257 = vmatpush.bf16.msra.mxu0 %v1899
        %2258 = vmatpush.bf16.msra.mxu0 %v1895
        %2259 = vmatpush.bf16.msra.mxu0 %v1891
        %2260 = vmatpush.bf16.msra.mxu0 %v1887
        %2261 = vmatpush.bf16.msra.mxu0 %v1883
        %2262 = vmatpush.bf16.msra.mxu0 %v1879
        %2263 = vmatmul.bf16.gmra.mxu0 %v1069
        %v2264 = vpop.f32.mrf.mxu0
        %v2265 = vadd.f32 %v2251, %v2264
        %v2266 = vpop.f32.mrf.mxu0
        %v2267 = vadd.f32 %v2253, %v2266
        %2268 = vdwg.mxu0
        %2269 = vmatpush.bf16.msra.mxu0 %v1939
        %2270 = vmatpush.bf16.msra.mxu0 %v1935
        %2271 = vmatpush.bf16.msra.mxu0 %v1931
        %2272 = vmatpush.bf16.msra.mxu0 %v1927
        %2273 = vmatpush.bf16.msra.mxu0 %v1923
        %2274 = vmatpush.bf16.msra.mxu0 %v1919
        %2275 = vmatpush.bf16.msra.mxu0 %v1915
        %2276 = vmatpush.bf16.msra.mxu0 %v1911
        %2277 = vmatmul.bf16.gmra.mxu0 %v1070
        %v2278 = vpop.f32.mrf.mxu0
        %v2279 = vadd.f32 %v2265, %v2278
        %v2280 = vpop.f32.mrf.mxu0
        %v2281 = vadd.f32 %v2267, %v2280
        %2282 = vdwg.mxu0
        %2283 = vmatpush.bf16.msra.mxu0 %v1971
        %2284 = vmatpush.bf16.msra.mxu0 %v1967
        %2285 = vmatpush.bf16.msra.mxu0 %v1963
        %2286 = vmatpush.bf16.msra.mxu0 %v1959
        %2287 = vmatpush.bf16.msra.mxu0 %v1955
        %2288 = vmatpush.bf16.msra.mxu0 %v1951
        %2289 = vmatpush.bf16.msra.mxu0 %v1947
        %2290 = vmatpush.bf16.msra.mxu0 %v1943
        %2291 = vmatmul.bf16.gmra.mxu0 %v1071
        %v2292 = vpop.f32.mrf.mxu0
        %v2293 = vadd.f32 %v2279, %v2292
        %v2294 = vpop.f32.mrf.mxu0
        %v2295 = vadd.f32 %v2281, %v2294
        %2296 = vdwg.mxu0
        %2297 = vmatpush.bf16.msra.mxu0 %v1780
        %2298 = vmatpush.bf16.msra.mxu0 %v1776
        %2299 = vmatpush.bf16.msra.mxu0 %v1772
        %2300 = vmatpush.bf16.msra.mxu0 %v1768
        %2301 = vmatpush.bf16.msra.mxu0 %v1764
        %2302 = vmatpush.bf16.msra.mxu0 %v1760
        %2303 = vmatpush.bf16.msra.mxu0 %v1756
        %2304 = vmatpush.bf16.msra.mxu0 %v1752
        %2305 = vmatmul.bf16.gmra.mxu0 %v1065
        %v2306 = vpop.f32.mrf.mxu0
        %v2307 = vadd.f32 %v1036, %v2306
        %v2308 = vpop.f32.mrf.mxu0
        %v2309 = vadd.f32 %v1036, %v2308
        %2310 = vdwg.mxu0
        %2311 = vmatpush.bf16.msra.mxu0 %v1812
        %2312 = vmatpush.bf16.msra.mxu0 %v1808
        %2313 = vmatpush.bf16.msra.mxu0 %v1804
        %2314 = vmatpush.bf16.msra.mxu0 %v1800
        %2315 = vmatpush.bf16.msra.mxu0 %v1796
        %2316 = vmatpush.bf16.msra.mxu0 %v1792
        %2317 = vmatpush.bf16.msra.mxu0 %v1788
        %2318 = vmatpush.bf16.msra.mxu0 %v1784
        %2319 = vmatmul.bf16.gmra.mxu0 %v1066
        %v2320 = vpop.f32.mrf.mxu0
        %v2321 = vadd.f32 %v2307, %v2320
        %v2322 = vpop.f32.mrf.mxu0
        %v2323 = vadd.f32 %v2309, %v2322
        %2324 = vdwg.mxu0
        %2325 = vmatpush.bf16.msra.mxu0 %v1844
        %2326 = vmatpush.bf16.msra.mxu0 %v1840
        %2327 = vmatpush.bf16.msra.mxu0 %v1836
        %2328 = vmatpush.bf16.msra.mxu0 %v1832
        %2329 = vmatpush.bf16.msra.mxu0 %v1828
        %2330 = vmatpush.bf16.msra.mxu0 %v1824
        %2331 = vmatpush.bf16.msra.mxu0 %v1820
        %2332 = vmatpush.bf16.msra.mxu0 %v1816
        %2333 = vmatmul.bf16.gmra.mxu0 %v1067
        %v2334 = vpop.f32.mrf.mxu0
        %v2335 = vadd.f32 %v2321, %v2334
        %v2336 = vpop.f32.mrf.mxu0
        %v2337 = vadd.f32 %v2323, %v2336
        %2338 = vdwg.mxu0
        %2339 = vmatpush.bf16.msra.mxu0 %v1876
        %2340 = vmatpush.bf16.msra.mxu0 %v1872
        %2341 = vmatpush.bf16.msra.mxu0 %v1868
        %2342 = vmatpush.bf16.msra.mxu0 %v1864
        %2343 = vmatpush.bf16.msra.mxu0 %v1860
        %2344 = vmatpush.bf16.msra.mxu0 %v1856
        %2345 = vmatpush.bf16.msra.mxu0 %v1852
        %2346 = vmatpush.bf16.msra.mxu0 %v1848
        %2347 = vmatmul.bf16.gmra.mxu0 %v1068
        %v2348 = vpop.f32.mrf.mxu0
        %v2349 = vadd.f32 %v2335, %v2348
        %v2350 = vpop.f32.mrf.mxu0
        %v2351 = vadd.f32 %v2337, %v2350
        %2352 = vdwg.mxu0
        %2353 = vmatpush.bf16.msra.mxu0 %v1908
        %2354 = vmatpush.bf16.msra.mxu0 %v1904
        %2355 = vmatpush.bf16.msra.mxu0 %v1900
        %2356 = vmatpush.bf16.msra.mxu0 %v1896
        %2357 = vmatpush.bf16.msra.mxu0 %v1892
        %2358 = vmatpush.bf16.msra.mxu0 %v1888
        %2359 = vmatpush.bf16.msra.mxu0 %v1884
        %2360 = vmatpush.bf16.msra.mxu0 %v1880
        %2361 = vmatmul.bf16.gmra.mxu0 %v1069
        %v2362 = vpop.f32.mrf.mxu0
        %v2363 = vadd.f32 %v2349, %v2362
        %v2364 = vpop.f32.mrf.mxu0
        %v2365 = vadd.f32 %v2351, %v2364
        %2366 = vdwg.mxu0
        %2367 = vmatpush.bf16.msra.mxu0 %v1940
        %2368 = vmatpush.bf16.msra.mxu0 %v1936
        %2369 = vmatpush.bf16.msra.mxu0 %v1932
        %2370 = vmatpush.bf16.msra.mxu0 %v1928
        %2371 = vmatpush.bf16.msra.mxu0 %v1924
        %2372 = vmatpush.bf16.msra.mxu0 %v1920
        %2373 = vmatpush.bf16.msra.mxu0 %v1916
        %2374 = vmatpush.bf16.msra.mxu0 %v1912
        %2375 = vmatmul.bf16.gmra.mxu0 %v1070
        %v2376 = vpop.f32.mrf.mxu0
        %v2377 = vadd.f32 %v2363, %v2376
        %v2378 = vpop.f32.mrf.mxu0
        %v2379 = vadd.f32 %v2365, %v2378
        %2380 = vdwg.mxu0
        %2381 = vmatpush.bf16.msra.mxu0 %v1972
        %2382 = vmatpush.bf16.msra.mxu0 %v1968
        %2383 = vmatpush.bf16.msra.mxu0 %v1964
        %2384 = vmatpush.bf16.msra.mxu0 %v1960
        %2385 = vmatpush.bf16.msra.mxu0 %v1956
        %2386 = vmatpush.bf16.msra.mxu0 %v1952
        %2387 = vmatpush.bf16.msra.mxu0 %v1948
        %2388 = vmatpush.bf16.msra.mxu0 %v1944
        %2389 = vmatmul.bf16.gmra.mxu0 %v1071
        %v2390 = vpop.f32.mrf.mxu0
        %v2391 = vadd.f32 %v2377, %v2390
        %v2392 = vpop.f32.mrf.mxu0
        %v2393 = vadd.f32 %v2379, %v2392
        %2394 = vdwg.mxu0
        %2395 = vmatpush.bf16.msra.mxu0 %v1781
        %2396 = vmatpush.bf16.msra.mxu0 %v1777
        %2397 = vmatpush.bf16.msra.mxu0 %v1773
        %2398 = vmatpush.bf16.msra.mxu0 %v1769
        %2399 = vmatpush.bf16.msra.mxu0 %v1765
        %2400 = vmatpush.bf16.msra.mxu0 %v1761
        %2401 = vmatpush.bf16.msra.mxu0 %v1757
        %2402 = vmatpush.bf16.msra.mxu0 %v1753
        %2403 = vmatmul.bf16.gmra.mxu0 %v1065
        %v2404 = vpop.f32.mrf.mxu0
        %v2405 = vadd.f32 %v1037, %v2404
        %v2406 = vpop.f32.mrf.mxu0
        %v2407 = vadd.f32 %v1037, %v2406
        %2408 = vdwg.mxu0
        %2409 = vmatpush.bf16.msra.mxu0 %v1813
        %2410 = vmatpush.bf16.msra.mxu0 %v1809
        %2411 = vmatpush.bf16.msra.mxu0 %v1805
        %2412 = vmatpush.bf16.msra.mxu0 %v1801
        %2413 = vmatpush.bf16.msra.mxu0 %v1797
        %2414 = vmatpush.bf16.msra.mxu0 %v1793
        %2415 = vmatpush.bf16.msra.mxu0 %v1789
        %2416 = vmatpush.bf16.msra.mxu0 %v1785
        %2417 = vmatmul.bf16.gmra.mxu0 %v1066
        %v2418 = vpop.f32.mrf.mxu0
        %v2419 = vadd.f32 %v2405, %v2418
        %v2420 = vpop.f32.mrf.mxu0
        %v2421 = vadd.f32 %v2407, %v2420
        %2422 = vdwg.mxu0
        %2423 = vmatpush.bf16.msra.mxu0 %v1845
        %2424 = vmatpush.bf16.msra.mxu0 %v1841
        %2425 = vmatpush.bf16.msra.mxu0 %v1837
        %2426 = vmatpush.bf16.msra.mxu0 %v1833
        %2427 = vmatpush.bf16.msra.mxu0 %v1829
        %2428 = vmatpush.bf16.msra.mxu0 %v1825
        %2429 = vmatpush.bf16.msra.mxu0 %v1821
        %2430 = vmatpush.bf16.msra.mxu0 %v1817
        %2431 = vmatmul.bf16.gmra.mxu0 %v1067
        %v2432 = vpop.f32.mrf.mxu0
        %v2433 = vadd.f32 %v2419, %v2432
        %v2434 = vpop.f32.mrf.mxu0
        %v2435 = vadd.f32 %v2421, %v2434
        %2436 = vdwg.mxu0
        %2437 = vmatpush.bf16.msra.mxu0 %v1877
        %2438 = vmatpush.bf16.msra.mxu0 %v1873
        %2439 = vmatpush.bf16.msra.mxu0 %v1869
        %2440 = vmatpush.bf16.msra.mxu0 %v1865
        %2441 = vmatpush.bf16.msra.mxu0 %v1861
        %2442 = vmatpush.bf16.msra.mxu0 %v1857
        %2443 = vmatpush.bf16.msra.mxu0 %v1853
        %2444 = vmatpush.bf16.msra.mxu0 %v1849
        %2445 = vmatmul.bf16.gmra.mxu0 %v1068
        %v2446 = vpop.f32.mrf.mxu0
        %v2447 = vadd.f32 %v2433, %v2446
        %v2448 = vpop.f32.mrf.mxu0
        %v2449 = vadd.f32 %v2435, %v2448
        %2450 = vdwg.mxu0
        %2451 = vmatpush.bf16.msra.mxu0 %v1909
        %2452 = vmatpush.bf16.msra.mxu0 %v1905
        %2453 = vmatpush.bf16.msra.mxu0 %v1901
        %2454 = vmatpush.bf16.msra.mxu0 %v1897
        %2455 = vmatpush.bf16.msra.mxu0 %v1893
        %2456 = vmatpush.bf16.msra.mxu0 %v1889
        %2457 = vmatpush.bf16.msra.mxu0 %v1885
        %2458 = vmatpush.bf16.msra.mxu0 %v1881
        %2459 = vmatmul.bf16.gmra.mxu0 %v1069
        %v2460 = vpop.f32.mrf.mxu0
        %v2461 = vadd.f32 %v2447, %v2460
        %v2462 = vpop.f32.mrf.mxu0
        %v2463 = vadd.f32 %v2449, %v2462
        %2464 = vdwg.mxu0
        %2465 = vmatpush.bf16.msra.mxu0 %v1941
        %2466 = vmatpush.bf16.msra.mxu0 %v1937
        %2467 = vmatpush.bf16.msra.mxu0 %v1933
        %2468 = vmatpush.bf16.msra.mxu0 %v1929
        %2469 = vmatpush.bf16.msra.mxu0 %v1925
        %2470 = vmatpush.bf16.msra.mxu0 %v1921
        %2471 = vmatpush.bf16.msra.mxu0 %v1917
        %2472 = vmatpush.bf16.msra.mxu0 %v1913
        %2473 = vmatmul.bf16.gmra.mxu0 %v1070
        %v2474 = vpop.f32.mrf.mxu0
        %v2475 = vadd.f32 %v2461, %v2474
        %v2476 = vpop.f32.mrf.mxu0
        %v2477 = vadd.f32 %v2463, %v2476
        %2478 = vdwg.mxu0
        %2479 = vmatpush.bf16.msra.mxu0 %v1973
        %2480 = vmatpush.bf16.msra.mxu0 %v1969
        %2481 = vmatpush.bf16.msra.mxu0 %v1965
        %2482 = vmatpush.bf16.msra.mxu0 %v1961
        %2483 = vmatpush.bf16.msra.mxu0 %v1957
        %2484 = vmatpush.bf16.msra.mxu0 %v1953
        %2485 = vmatpush.bf16.msra.mxu0 %v1949
        %2486 = vmatpush.bf16.msra.mxu0 %v1945
        %2487 = vmatmul.bf16.gmra.mxu0 %v1071
        %v2488 = vpop.f32.mrf.mxu0
        %v2489 = vadd.f32 %v2475, %v2488
        %v2490 = vpop.f32.mrf.mxu0
        %v2491 = vadd.f32 %v2477, %v2490
        %2492 = vdwg.mxu0
        %2493 = vmatpush.bf16.msra.mxu0 %v1782
        %2494 = vmatpush.bf16.msra.mxu0 %v1778
        %2495 = vmatpush.bf16.msra.mxu0 %v1774
        %2496 = vmatpush.bf16.msra.mxu0 %v1770
        %2497 = vmatpush.bf16.msra.mxu0 %v1766
        %2498 = vmatpush.bf16.msra.mxu0 %v1762
        %2499 = vmatpush.bf16.msra.mxu0 %v1758
        %2500 = vmatpush.bf16.msra.mxu0 %v1754
        %2501 = vmatmul.bf16.gmra.mxu0 %v1065
        %v2502 = vpop.f32.mrf.mxu0
        %v2503 = vadd.f32 %v1038, %v2502
        %v2504 = vpop.f32.mrf.mxu0
        %v2505 = vadd.f32 %v1038, %v2504
        %2506 = vdwg.mxu0
        %2507 = vmatpush.bf16.msra.mxu0 %v1814
        %2508 = vmatpush.bf16.msra.mxu0 %v1810
        %2509 = vmatpush.bf16.msra.mxu0 %v1806
        %2510 = vmatpush.bf16.msra.mxu0 %v1802
        %2511 = vmatpush.bf16.msra.mxu0 %v1798
        %2512 = vmatpush.bf16.msra.mxu0 %v1794
        %2513 = vmatpush.bf16.msra.mxu0 %v1790
        %2514 = vmatpush.bf16.msra.mxu0 %v1786
        %2515 = vmatmul.bf16.gmra.mxu0 %v1066
        %v2516 = vpop.f32.mrf.mxu0
        %v2517 = vadd.f32 %v2503, %v2516
        %v2518 = vpop.f32.mrf.mxu0
        %v2519 = vadd.f32 %v2505, %v2518
        %2520 = vdwg.mxu0
        %2521 = vmatpush.bf16.msra.mxu0 %v1846
        %2522 = vmatpush.bf16.msra.mxu0 %v1842
        %2523 = vmatpush.bf16.msra.mxu0 %v1838
        %2524 = vmatpush.bf16.msra.mxu0 %v1834
        %2525 = vmatpush.bf16.msra.mxu0 %v1830
        %2526 = vmatpush.bf16.msra.mxu0 %v1826
        %2527 = vmatpush.bf16.msra.mxu0 %v1822
        %2528 = vmatpush.bf16.msra.mxu0 %v1818
        %2529 = vmatmul.bf16.gmra.mxu0 %v1067
        %v2530 = vpop.f32.mrf.mxu0
        %v2531 = vadd.f32 %v2517, %v2530
        %v2532 = vpop.f32.mrf.mxu0
        %v2533 = vadd.f32 %v2519, %v2532
        %2534 = vdwg.mxu0
        %2535 = vmatpush.bf16.msra.mxu0 %v1878
        %2536 = vmatpush.bf16.msra.mxu0 %v1874
        %2537 = vmatpush.bf16.msra.mxu0 %v1870
        %2538 = vmatpush.bf16.msra.mxu0 %v1866
        %2539 = vmatpush.bf16.msra.mxu0 %v1862
        %2540 = vmatpush.bf16.msra.mxu0 %v1858
        %2541 = vmatpush.bf16.msra.mxu0 %v1854
        %2542 = vmatpush.bf16.msra.mxu0 %v1850
        %2543 = vmatmul.bf16.gmra.mxu0 %v1068
        %v2544 = vpop.f32.mrf.mxu0
        %v2545 = vadd.f32 %v2531, %v2544
        %v2546 = vpop.f32.mrf.mxu0
        %v2547 = vadd.f32 %v2533, %v2546
        %2548 = vdwg.mxu0
        %2549 = vmatpush.bf16.msra.mxu0 %v1910
        %2550 = vmatpush.bf16.msra.mxu0 %v1906
        %2551 = vmatpush.bf16.msra.mxu0 %v1902
        %2552 = vmatpush.bf16.msra.mxu0 %v1898
        %2553 = vmatpush.bf16.msra.mxu0 %v1894
        %2554 = vmatpush.bf16.msra.mxu0 %v1890
        %2555 = vmatpush.bf16.msra.mxu0 %v1886
        %2556 = vmatpush.bf16.msra.mxu0 %v1882
        %2557 = vmatmul.bf16.gmra.mxu0 %v1069
        %v2558 = vpop.f32.mrf.mxu0
        %v2559 = vadd.f32 %v2545, %v2558
        %v2560 = vpop.f32.mrf.mxu0
        %v2561 = vadd.f32 %v2547, %v2560
        %2562 = vdwg.mxu0
        %2563 = vmatpush.bf16.msra.mxu0 %v1942
        %2564 = vmatpush.bf16.msra.mxu0 %v1938
        %2565 = vmatpush.bf16.msra.mxu0 %v1934
        %2566 = vmatpush.bf16.msra.mxu0 %v1930
        %2567 = vmatpush.bf16.msra.mxu0 %v1926
        %2568 = vmatpush.bf16.msra.mxu0 %v1922
        %2569 = vmatpush.bf16.msra.mxu0 %v1918
        %2570 = vmatpush.bf16.msra.mxu0 %v1914
        %2571 = vmatmul.bf16.gmra.mxu0 %v1070
        %v2572 = vpop.f32.mrf.mxu0
        %v2573 = vadd.f32 %v2559, %v2572
        %v2574 = vpop.f32.mrf.mxu0
        %v2575 = vadd.f32 %v2561, %v2574
        %2576 = vdwg.mxu0
        %2577 = vmatpush.bf16.msra.mxu0 %v1974
        %2578 = vmatpush.bf16.msra.mxu0 %v1970
        %2579 = vmatpush.bf16.msra.mxu0 %v1966
        %2580 = vmatpush.bf16.msra.mxu0 %v1962
        %2581 = vmatpush.bf16.msra.mxu0 %v1958
        %2582 = vmatpush.bf16.msra.mxu0 %v1954
        %2583 = vmatpush.bf16.msra.mxu0 %v1950
        %2584 = vmatpush.bf16.msra.mxu0 %v1946
        %2585 = vmatmul.bf16.gmra.mxu0 %v1071
        %v2586 = vpop.f32.mrf.mxu0
        %v2587 = vadd.f32 %v2573, %v2586
        %v2588 = vpop.f32.mrf.mxu0
        %v2589 = vadd.f32 %v2575, %v2588
        %2590 = vdwg.mxu0
        %v2591 = vmax.f32 %v2293, 0.0
        %v2592 = vmax.f32 %v2391, 0.0
        %v2593 = vmax.f32 %v2489, 0.0
        %v2594 = vmax.f32 %v2587, 0.0
        %v2595 = vmax.f32 %v2295, 0.0
        %v2596 = vmax.f32 %v2393, 0.0
        %v2597 = vmax.f32 %v2491, 0.0
        %v2598 = vmax.f32 %v2589, 0.0
        %v2599 = vpack.c.bf16 %v2595, %v2591
        %v2600 = vpack.c.bf16 %v2596, %v2592
        %v2601 = vpack.c.bf16 %v2597, %v2593
        %v2602 = vpack.c.bf16 %v2598, %v2594
        %v2603 = vld [vmem:[#allocation8] sm:$0xff]
        %v2604 = vld [vmem:[#allocation8 + $0x8] sm:$0xff]
        %v2605 = vld [vmem:[#allocation8 + $0x10] sm:$0xff]
        %v2606 = vld [vmem:[#allocation8 + $0x18] sm:$0xff]
        %v2607 = vld [vmem:[#allocation8 + $0x20] sm:$0xff]
        %v2608 = vld [vmem:[#allocation8 + $0x28] sm:$0xff]
        %v2609 = vld [vmem:[#allocation8 + $0x30] sm:$0xff]
        %v2610 = vld [vmem:[#allocation8 + $0x38] sm:$0xff]
        %v2611 = vld [vmem:[#allocation8 + $0x40] sm:$0xff]
        %v2612 = vld [vmem:[#allocation8 + $0x48] sm:$0xff]
        %v2613 = vld [vmem:[#allocation8 + $0x50] sm:$0xff]
        %v2614 = vld [vmem:[#allocation8 + $0x58] sm:$0xff]
        %v2615 = vld [vmem:[#allocation8 + $0x60] sm:$0xff]
        %v2616 = vld [vmem:[#allocation8 + $0x68] sm:$0xff]
        %v2617 = vld [vmem:[#allocation8 + $0x70] sm:$0xff]
        %v2618 = vld [vmem:[#allocation8 + $0x78] sm:$0xff]
        %v2619 = vld [vmem:[#allocation8 + $0x80] sm:$0xff]
        %v2620 = vld [vmem:[#allocation8 + $0x88] sm:$0xff]
        %v2621 = vld [vmem:[#allocation8 + $0x90] sm:$0xff]
        %v2622 = vld [vmem:[#allocation8 + $0x98] sm:$0xff]
        %v2623 = vld [vmem:[#allocation8 + $0xa0] sm:$0xff]
        %v2624 = vld [vmem:[#allocation8 + $0xa8] sm:$0xff]
        %v2625 = vld [vmem:[#allocation8 + $0xb0] sm:$0xff]
        %v2626 = vld [vmem:[#allocation8 + $0xb8] sm:$0xff]
        %v2627 = vld [vmem:[#allocation8 + $0xc0] sm:$0xff]
        %v2628 = vld [vmem:[#allocation8 + $0xc8] sm:$0xff]
        %v2629 = vld [vmem:[#allocation8 + $0xd0] sm:$0xff]
        %v2630 = vld [vmem:[#allocation8 + $0xd8] sm:$0xff]
        %v2631 = vld [vmem:[#allocation8 + $0xe0] sm:$0xff]
        %v2632 = vld [vmem:[#allocation8 + $0xe8] sm:$0xff]
        %v2633 = vld [vmem:[#allocation8 + $0xf0] sm:$0xff]
        %v2634 = vld [vmem:[#allocation8 + $0xf8] sm:$0xff]
        %v2635 = vld [vmem:[#allocation8 + $0x100] sm:$0xff]
        %v2636 = vld [vmem:[#allocation8 + $0x108] sm:$0xff]
        %v2637 = vld [vmem:[#allocation8 + $0x110] sm:$0xff]
        %v2638 = vld [vmem:[#allocation8 + $0x118] sm:$0xff]
        %v2639 = vld [vmem:[#allocation8 + $0x120] sm:$0xff]
        %v2640 = vld [vmem:[#allocation8 + $0x128] sm:$0xff]
        %v2641 = vld [vmem:[#allocation8 + $0x130] sm:$0xff]
        %v2642 = vld [vmem:[#allocation8 + $0x138] sm:$0xff]
        %v2643 = vld [vmem:[#allocation8 + $0x140] sm:$0xff]
        %v2644 = vld [vmem:[#allocation8 + $0x148] sm:$0xff]
        %v2645 = vld [vmem:[#allocation8 + $0x150] sm:$0xff]
        %v2646 = vld [vmem:[#allocation8 + $0x158] sm:$0xff]
        %v2647 = vld [vmem:[#allocation8 + $0x160] sm:$0xff]
        %v2648 = vld [vmem:[#allocation8 + $0x168] sm:$0xff]
        %v2649 = vld [vmem:[#allocation8 + $0x170] sm:$0xff]
        %v2650 = vld [vmem:[#allocation8 + $0x178] sm:$0xff]
        %v2651 = vld [vmem:[#allocation8 + $0x180] sm:$0xff]
        %v2652 = vld [vmem:[#allocation8 + $0x188] sm:$0xff]
        %v2653 = vld [vmem:[#allocation8 + $0x190] sm:$0xff]
        %v2654 = vld [vmem:[#allocation8 + $0x198] sm:$0xff]
        %v2655 = vld [vmem:[#allocation8 + $0x1a0] sm:$0xff]
        %v2656 = vld [vmem:[#allocation8 + $0x1a8] sm:$0xff]
        %v2657 = vld [vmem:[#allocation8 + $0x1b0] sm:$0xff]
        %v2658 = vld [vmem:[#allocation8 + $0x1b8] sm:$0xff]
        %v2659 = vld [vmem:[#allocation8 + $0x1c0] sm:$0xff]
        %v2660 = vld [vmem:[#allocation8 + $0x1c8] sm:$0xff]
        %v2661 = vld [vmem:[#allocation8 + $0x1d0] sm:$0xff]
        %v2662 = vld [vmem:[#allocation8 + $0x1d8] sm:$0xff]
        %v2663 = vld [vmem:[#allocation8 + $0x1e0] sm:$0xff]
        %v2664 = vld [vmem:[#allocation8 + $0x1e8] sm:$0xff]
        %v2665 = vld [vmem:[#allocation8 + $0x1f0] sm:$0xff]
        %v2666 = vld [vmem:[#allocation8 + $0x1f8] sm:$0xff]
        %v2667 = vld [vmem:[%s4] sm:$0x3]
        %v2669 = vperm.slane %v2667, 0
        %v2670 = vperm.slane %v2667, 1
        %v2737 = vunpack.c.l.b16 %v2603
        %v2738 = vunpack.c.h.b16 %v2603
        %v2739 = vunpack.c.l.b16 %v2604
        %v2740 = vunpack.c.h.b16 %v2604
        %v2741 = vunpack.c.l.b16 %v2605
        %v2742 = vunpack.c.h.b16 %v2605
        %v2743 = vunpack.c.l.b16 %v2606
        %v2744 = vunpack.c.h.b16 %v2606
        %v2745 = vunpack.c.l.b16 %v2607
        %v2746 = vunpack.c.h.b16 %v2607
        %v2747 = vunpack.c.l.b16 %v2608
        %v2748 = vunpack.c.h.b16 %v2608
        %v2749 = vunpack.c.l.b16 %v2609
        %v2750 = vunpack.c.h.b16 %v2609
        %v2751 = vunpack.c.l.b16 %v2610
        %v2752 = vunpack.c.h.b16 %v2610
        %v2753 = vunpack.c.l.b16 %v2611
        %v2754 = vunpack.c.h.b16 %v2611
        %v2755 = vunpack.c.l.b16 %v2612
        %v2756 = vunpack.c.h.b16 %v2612
        %v2757 = vunpack.c.l.b16 %v2613
        %v2758 = vunpack.c.h.b16 %v2613
        %v2759 = vunpack.c.l.b16 %v2614
        %v2760 = vunpack.c.h.b16 %v2614
        %v2761 = vunpack.c.l.b16 %v2615
        %v2762 = vunpack.c.h.b16 %v2615
        %v2763 = vunpack.c.l.b16 %v2616
        %v2764 = vunpack.c.h.b16 %v2616
        %v2765 = vunpack.c.l.b16 %v2617
        %v2766 = vunpack.c.h.b16 %v2617
        %v2767 = vunpack.c.l.b16 %v2618
        %v2768 = vunpack.c.h.b16 %v2618
        %v2769 = vunpack.c.l.b16 %v2619
        %v2770 = vunpack.c.h.b16 %v2619
        %v2771 = vunpack.c.l.b16 %v2620
        %v2772 = vunpack.c.h.b16 %v2620
        %v2773 = vunpack.c.l.b16 %v2621
        %v2774 = vunpack.c.h.b16 %v2621
        %v2775 = vunpack.c.l.b16 %v2622
        %v2776 = vunpack.c.h.b16 %v2622
        %v2777 = vunpack.c.l.b16 %v2623
        %v2778 = vunpack.c.h.b16 %v2623
        %v2779 = vunpack.c.l.b16 %v2624
        %v2780 = vunpack.c.h.b16 %v2624
        %v2781 = vunpack.c.l.b16 %v2625
        %v2782 = vunpack.c.h.b16 %v2625
        %v2783 = vunpack.c.l.b16 %v2626
        %v2784 = vunpack.c.h.b16 %v2626
        %v2785 = vunpack.c.l.b16 %v2627
        %v2786 = vunpack.c.h.b16 %v2627
        %v2787 = vunpack.c.l.b16 %v2628
        %v2788 = vunpack.c.h.b16 %v2628
        %v2789 = vunpack.c.l.b16 %v2629
        %v2790 = vunpack.c.h.b16 %v2629
        %v2791 = vunpack.c.l.b16 %v2630
        %v2792 = vunpack.c.h.b16 %v2630
        %v2793 = vunpack.c.l.b16 %v2631
        %v2794 = vunpack.c.h.b16 %v2631
        %v2795 = vunpack.c.l.b16 %v2632
        %v2796 = vunpack.c.h.b16 %v2632
        %v2797 = vunpack.c.l.b16 %v2633
        %v2798 = vunpack.c.h.b16 %v2633
        %v2799 = vunpack.c.l.b16 %v2634
        %v2800 = vunpack.c.h.b16 %v2634
        %v2801 = vunpack.c.l.b16 %v2635
        %v2802 = vunpack.c.h.b16 %v2635
        %v2803 = vunpack.c.l.b16 %v2636
        %v2804 = vunpack.c.h.b16 %v2636
        %v2805 = vunpack.c.l.b16 %v2637
        %v2806 = vunpack.c.h.b16 %v2637
        %v2807 = vunpack.c.l.b16 %v2638
        %v2808 = vunpack.c.h.b16 %v2638
        %v2809 = vunpack.c.l.b16 %v2639
        %v2810 = vunpack.c.h.b16 %v2639
        %v2811 = vunpack.c.l.b16 %v2640
        %v2812 = vunpack.c.h.b16 %v2640
        %v2813 = vunpack.c.l.b16 %v2641
        %v2814 = vunpack.c.h.b16 %v2641
        %v2815 = vunpack.c.l.b16 %v2642
        %v2816 = vunpack.c.h.b16 %v2642
        %v2817 = vunpack.c.l.b16 %v2643
        %v2818 = vunpack.c.h.b16 %v2643
        %v2819 = vunpack.c.l.b16 %v2644
        %v2820 = vunpack.c.h.b16 %v2644
        %v2821 = vunpack.c.l.b16 %v2645
        %v2822 = vunpack.c.h.b16 %v2645
        %v2823 = vunpack.c.l.b16 %v2646
        %v2824 = vunpack.c.h.b16 %v2646
        %v2825 = vunpack.c.l.b16 %v2647
        %v2826 = vunpack.c.h.b16 %v2647
        %v2827 = vunpack.c.l.b16 %v2648
        %v2828 = vunpack.c.h.b16 %v2648
        %v2829 = vunpack.c.l.b16 %v2649
        %v2830 = vunpack.c.h.b16 %v2649
        %v2831 = vunpack.c.l.b16 %v2650
        %v2832 = vunpack.c.h.b16 %v2650
        %v2833 = vunpack.c.l.b16 %v2651
        %v2834 = vunpack.c.h.b16 %v2651
        %v2835 = vunpack.c.l.b16 %v2652
        %v2836 = vunpack.c.h.b16 %v2652
        %v2837 = vunpack.c.l.b16 %v2653
        %v2838 = vunpack.c.h.b16 %v2653
        %v2839 = vunpack.c.l.b16 %v2654
        %v2840 = vunpack.c.h.b16 %v2654
        %v2841 = vunpack.c.l.b16 %v2655
        %v2842 = vunpack.c.h.b16 %v2655
        %v2843 = vunpack.c.l.b16 %v2656
        %v2844 = vunpack.c.h.b16 %v2656
        %v2845 = vunpack.c.l.b16 %v2657
        %v2846 = vunpack.c.h.b16 %v2657
        %v2847 = vunpack.c.l.b16 %v2658
        %v2848 = vunpack.c.h.b16 %v2658
        %v2849 = vunpack.c.l.b16 %v2659
        %v2850 = vunpack.c.h.b16 %v2659
        %v2851 = vunpack.c.l.b16 %v2660
        %v2852 = vunpack.c.h.b16 %v2660
        %v2853 = vunpack.c.l.b16 %v2661
        %v2854 = vunpack.c.h.b16 %v2661
        %v2855 = vunpack.c.l.b16 %v2662
        %v2856 = vunpack.c.h.b16 %v2662
        %v2857 = vunpack.c.l.b16 %v2663
        %v2858 = vunpack.c.h.b16 %v2663
        %v2859 = vunpack.c.l.b16 %v2664
        %v2860 = vunpack.c.h.b16 %v2664
        %v2861 = vunpack.c.l.b16 %v2665
        %v2862 = vunpack.c.h.b16 %v2665
        %v2863 = vunpack.c.l.b16 %v2666
        %v2864 = vunpack.c.h.b16 %v2666
        %v2865 = vpack.c.b16 %v2739, %v2737
        %v2866 = vpack.c.b16 %v2740, %v2738
        %v2867 = vpack.c.b16 %v2743, %v2741
        %v2868 = vpack.c.b16 %v2744, %v2742
        %v2869 = vpack.c.b16 %v2747, %v2745
        %v2870 = vpack.c.b16 %v2748, %v2746
        %v2871 = vpack.c.b16 %v2751, %v2749
        %v2872 = vpack.c.b16 %v2752, %v2750
        %v2873 = vpack.c.b16 %v2755, %v2753
        %v2874 = vpack.c.b16 %v2756, %v2754
        %v2875 = vpack.c.b16 %v2759, %v2757
        %v2876 = vpack.c.b16 %v2760, %v2758
        %v2877 = vpack.c.b16 %v2763, %v2761
        %v2878 = vpack.c.b16 %v2764, %v2762
        %v2879 = vpack.c.b16 %v2767, %v2765
        %v2880 = vpack.c.b16 %v2768, %v2766
        %v2881 = vpack.c.b16 %v2771, %v2769
        %v2882 = vpack.c.b16 %v2772, %v2770
        %v2883 = vpack.c.b16 %v2775, %v2773
        %v2884 = vpack.c.b16 %v2776, %v2774
        %v2885 = vpack.c.b16 %v2779, %v2777
        %v2886 = vpack.c.b16 %v2780, %v2778
        %v2887 = vpack.c.b16 %v2783, %v2781
        %v2888 = vpack.c.b16 %v2784, %v2782
        %v2889 = vpack.c.b16 %v2787, %v2785
        %v2890 = vpack.c.b16 %v2788, %v2786
        %v2891 = vpack.c.b16 %v2791, %v2789
        %v2892 = vpack.c.b16 %v2792, %v2790
        %v2893 = vpack.c.b16 %v2795, %v2793
        %v2894 = vpack.c.b16 %v2796, %v2794
        %v2895 = vpack.c.b16 %v2799, %v2797
        %v2896 = vpack.c.b16 %v2800, %v2798
        %v2897 = vpack.c.b16 %v2803, %v2801
        %v2898 = vpack.c.b16 %v2804, %v2802
        %v2899 = vpack.c.b16 %v2807, %v2805
        %v2900 = vpack.c.b16 %v2808, %v2806
        %v2901 = vpack.c.b16 %v2811, %v2809
        %v2902 = vpack.c.b16 %v2812, %v2810
        %v2903 = vpack.c.b16 %v2815, %v2813
        %v2904 = vpack.c.b16 %v2816, %v2814
        %v2905 = vpack.c.b16 %v2819, %v2817
        %v2906 = vpack.c.b16 %v2820, %v2818
        %v2907 = vpack.c.b16 %v2823, %v2821
        %v2908 = vpack.c.b16 %v2824, %v2822
        %v2909 = vpack.c.b16 %v2827, %v2825
        %v2910 = vpack.c.b16 %v2828, %v2826
        %v2911 = vpack.c.b16 %v2831, %v2829
        %v2912 = vpack.c.b16 %v2832, %v2830
        %v2913 = vpack.c.b16 %v2835, %v2833
        %v2914 = vpack.c.b16 %v2836, %v2834
        %v2915 = vpack.c.b16 %v2839, %v2837
        %v2916 = vpack.c.b16 %v2840, %v2838
        %v2917 = vpack.c.b16 %v2843, %v2841
        %v2918 = vpack.c.b16 %v2844, %v2842
        %v2919 = vpack.c.b16 %v2847, %v2845
        %v2920 = vpack.c.b16 %v2848, %v2846
        %v2921 = vpack.c.b16 %v2851, %v2849
        %v2922 = vpack.c.b16 %v2852, %v2850
        %v2923 = vpack.c.b16 %v2855, %v2853
        %v2924 = vpack.c.b16 %v2856, %v2854
        %v2925 = vpack.c.b16 %v2859, %v2857
        %v2926 = vpack.c.b16 %v2860, %v2858
        %v2927 = vpack.c.b16 %v2863, %v2861
        %v2928 = vpack.c.b16 %v2864, %v2862
        %2993 = vmatpush.bf16.msra.mxu0 %v2879
        %2994 = vmatpush.bf16.msra.mxu0 %v2877
        %2995 = vmatpush.bf16.msra.mxu0 %v2875
        %2996 = vmatpush.bf16.msra.mxu0 %v2873
        %2997 = vmatpush.bf16.msra.mxu0 %v2871
        %2998 = vmatpush.bf16.msra.mxu0 %v2869
        %2999 = vmatpush.bf16.msra.mxu0 %v2867
        %3000 = vmatpush.bf16.msra.mxu0 %v2865
        %3001 = vmatmul.bf16.gmra.mxu0 %v2599
        %v3002 = vpop.f32.mrf.mxu0
        %v3003 = vadd.f32 %v2669, %v3002
        %v3004 = vpop.f32.mrf.mxu0
        %v3005 = vadd.f32 %v2669, %v3004
        %3006 = vdwg.mxu0
        %3007 = vmatpush.bf16.msra.mxu0 %v2895
        %3008 = vmatpush.bf16.msra.mxu0 %v2893
        %3009 = vmatpush.bf16.msra.mxu0 %v2891
        %3010 = vmatpush.bf16.msra.mxu0 %v2889
        %3011 = vmatpush.bf16.msra.mxu0 %v2887
        %3012 = vmatpush.bf16.msra.mxu0 %v2885
        %3013 = vmatpush.bf16.msra.mxu0 %v2883
        %3014 = vmatpush.bf16.msra.mxu0 %v2881
        %3015 = vmatmul.bf16.gmra.mxu0 %v2600
        %v3016 = vpop.f32.mrf.mxu0
        %v3017 = vadd.f32 %v3003, %v3016
        %v3018 = vpop.f32.mrf.mxu0
        %v3019 = vadd.f32 %v3005, %v3018
        %3020 = vdwg.mxu0
        %3021 = vmatpush.bf16.msra.mxu0 %v2911
        %3022 = vmatpush.bf16.msra.mxu0 %v2909
        %3023 = vmatpush.bf16.msra.mxu0 %v2907
        %3024 = vmatpush.bf16.msra.mxu0 %v2905
        %3025 = vmatpush.bf16.msra.mxu0 %v2903
        %3026 = vmatpush.bf16.msra.mxu0 %v2901
        %3027 = vmatpush.bf16.msra.mxu0 %v2899
        %3028 = vmatpush.bf16.msra.mxu0 %v2897
        %3029 = vmatmul.bf16.gmra.mxu0 %v2601
        %v3030 = vpop.f32.mrf.mxu0
        %v3031 = vadd.f32 %v3017, %v3030
        %v3032 = vpop.f32.mrf.mxu0
        %v3033 = vadd.f32 %v3019, %v3032
        %3034 = vdwg.mxu0
        %3035 = vmatpush.bf16.msra.mxu0 %v2927
        %3036 = vmatpush.bf16.msra.mxu0 %v2925
        %3037 = vmatpush.bf16.msra.mxu0 %v2923
        %3038 = vmatpush.bf16.msra.mxu0 %v2921
        %3039 = vmatpush.bf16.msra.mxu0 %v2919
        %3040 = vmatpush.bf16.msra.mxu0 %v2917
        %3041 = vmatpush.bf16.msra.mxu0 %v2915
        %3042 = vmatpush.bf16.msra.mxu0 %v2913
        %3043 = vmatmul.bf16.gmra.mxu0 %v2602
        %v3044 = vpop.f32.mrf.mxu0
        %v3045 = vadd.f32 %v3031, %v3044
        %v3046 = vpop.f32.mrf.mxu0
        %v3047 = vadd.f32 %v3033, %v3046
        %3048 = vdwg.mxu0
        %3049 = vmatpush.bf16.msra.mxu0 %v2880
        %3050 = vmatpush.bf16.msra.mxu0 %v2878
        %3051 = vmatpush.bf16.msra.mxu0 %v2876
        %3052 = vmatpush.bf16.msra.mxu0 %v2874
        %3053 = vmatpush.bf16.msra.mxu0 %v2872
        %3054 = vmatpush.bf16.msra.mxu0 %v2870
        %3055 = vmatpush.bf16.msra.mxu0 %v2868
        %3056 = vmatpush.bf16.msra.mxu0 %v2866
        %3057 = vmatmul.bf16.gmra.mxu0 %v2599
        %v3058 = vpop.f32.mrf.mxu0
        %v3059 = vadd.f32 %v2670, %v3058
        %v3060 = vpop.f32.mrf.mxu0
        %v3061 = vadd.f32 %v2670, %v3060
        %3062 = vdwg.mxu0
        %3063 = vmatpush.bf16.msra.mxu0 %v2896
        %3064 = vmatpush.bf16.msra.mxu0 %v2894
        %3065 = vmatpush.bf16.msra.mxu0 %v2892
        %3066 = vmatpush.bf16.msra.mxu0 %v2890
        %3067 = vmatpush.bf16.msra.mxu0 %v2888
        %3068 = vmatpush.bf16.msra.mxu0 %v2886
        %3069 = vmatpush.bf16.msra.mxu0 %v2884
        %3070 = vmatpush.bf16.msra.mxu0 %v2882
        %3071 = vmatmul.bf16.gmra.mxu0 %v2600
        %v3072 = vpop.f32.mrf.mxu0
        %v3073 = vadd.f32 %v3059, %v3072
        %v3074 = vpop.f32.mrf.mxu0
        %v3075 = vadd.f32 %v3061, %v3074
        %3076 = vdwg.mxu0
        %3077 = vmatpush.bf16.msra.mxu0 %v2912
        %3078 = vmatpush.bf16.msra.mxu0 %v2910
        %3079 = vmatpush.bf16.msra.mxu0 %v2908
        %3080 = vmatpush.bf16.msra.mxu0 %v2906
        %3081 = vmatpush.bf16.msra.mxu0 %v2904
        %3082 = vmatpush.bf16.msra.mxu0 %v2902
        %3083 = vmatpush.bf16.msra.mxu0 %v2900
        %3084 = vmatpush.bf16.msra.mxu0 %v2898
        %3085 = vmatmul.bf16.gmra.mxu0 %v2601
        %v3086 = vpop.f32.mrf.mxu0
        %v3087 = vadd.f32 %v3073, %v3086
        %v3088 = vpop.f32.mrf.mxu0
        %v3089 = vadd.f32 %v3075, %v3088
        %3090 = vdwg.mxu0
        %3091 = vmatpush.bf16.msra.mxu0 %v2928
        %3092 = vmatpush.bf16.msra.mxu0 %v2926
        %3093 = vmatpush.bf16.msra.mxu0 %v2924
        %3094 = vmatpush.bf16.msra.mxu0 %v2922
        %3095 = vmatpush.bf16.msra.mxu0 %v2920
        %3096 = vmatpush.bf16.msra.mxu0 %v2918
        %3097 = vmatpush.bf16.msra.mxu0 %v2916
        %3098 = vmatpush.bf16.msra.mxu0 %v2914
        %3099 = vmatmul.bf16.gmra.mxu0 %v2602
        %v3100 = vpop.f32.mrf.mxu0
        %v3101 = vadd.f32 %v3087, %v3100
        %v3102 = vpop.f32.mrf.mxu0
        %v3103 = vadd.f32 %v3089, %v3102
        %3104 = vdwg.mxu0
        %v3105 = vmax.f32 %v3045, 0.0
        %v3106 = vmax.f32 %v3101, 0.0
        %v3107 = vmax.f32 %v3047, 0.0
        %v3108 = vmax.f32 %v3103, 0.0
        %v3109 = vpack.c.bf16 %v3107, %v3105
        %v3110 = vpack.c.bf16 %v3108, %v3106
        %v3111 = vld [vmem:[#allocation10] sm:$0xf]
        %v3112 = vld [vmem:[#allocation10 + $0x4] sm:$0xf]
        %v3113 = vld [vmem:[#allocation10 + $0x8] sm:$0xf]
        %v3114 = vld [vmem:[#allocation10 + $0xc] sm:$0xf]
        %v3115 = vld [vmem:[#allocation10 + $0x10] sm:$0xf]
        %v3116 = vld [vmem:[#allocation10 + $0x14] sm:$0xf]
        %v3117 = vld [vmem:[#allocation10 + $0x18] sm:$0xf]
        %v3118 = vld [vmem:[#allocation10 + $0x1c] sm:$0xf]
        %v3119 = vld [vmem:[#allocation10 + $0x20] sm:$0xf]
        %v3120 = vld [vmem:[#allocation10 + $0x24] sm:$0xf]
        %v3121 = vld [vmem:[#allocation10 + $0x28] sm:$0xf]
        %v3122 = vld [vmem:[#allocation10 + $0x2c] sm:$0xf]
        %v3123 = vld [vmem:[#allocation10 + $0x30] sm:$0xf]
        %v3124 = vld [vmem:[#allocation10 + $0x34] sm:$0xf]
        %v3125 = vld [vmem:[#allocation10 + $0x38] sm:$0xf]
        %v3126 = vld [vmem:[#allocation10 + $0x3c] sm:$0xf]
        %v3127 = vld [vmem:[#allocation10 + $0x40] sm:$0xf]
        %v3128 = vld [vmem:[#allocation10 + $0x44] sm:$0xf]
        %v3129 = vld [vmem:[#allocation10 + $0x48] sm:$0xf]
        %v3130 = vld [vmem:[#allocation10 + $0x4c] sm:$0xf]
        %v3131 = vld [vmem:[#allocation10 + $0x50] sm:$0xf]
        %v3132 = vld [vmem:[#allocation10 + $0x54] sm:$0xf]
        %v3133 = vld [vmem:[#allocation10 + $0x58] sm:$0xf]
        %v3134 = vld [vmem:[#allocation10 + $0x5c] sm:$0xf]
        %v3135 = vld [vmem:[#allocation10 + $0x60] sm:$0xf]
        %v3136 = vld [vmem:[#allocation10 + $0x64] sm:$0xf]
        %v3137 = vld [vmem:[#allocation10 + $0x68] sm:$0xf]
        %v3138 = vld [vmem:[#allocation10 + $0x6c] sm:$0xf]
        %v3139 = vld [vmem:[#allocation10 + $0x70] sm:$0xf]
        %v3140 = vld [vmem:[#allocation10 + $0x74] sm:$0xf]
        %v3141 = vld [vmem:[#allocation10 + $0x78] sm:$0xf]
        %v3142 = vld [vmem:[#allocation10 + $0x7c] sm:$0xf]
        %v3143 = vld [vmem:[%s6] sm:$0x1]
        %v3145 = vperm.slane %v3143, 0
        %v3179 = vunpack.c.l.b16 %v3111
        %v3180 = vunpack.c.l.b16 %v3112
        %v3181 = vunpack.c.l.b16 %v3113
        %v3182 = vunpack.c.l.b16 %v3114
        %v3183 = vunpack.c.l.b16 %v3115
        %v3184 = vunpack.c.l.b16 %v3116
        %v3185 = vunpack.c.l.b16 %v3117
        %v3186 = vunpack.c.l.b16 %v3118
        %v3187 = vunpack.c.l.b16 %v3119
        %v3188 = vunpack.c.l.b16 %v3120
        %v3189 = vunpack.c.l.b16 %v3121
        %v3190 = vunpack.c.l.b16 %v3122
        %v3191 = vunpack.c.l.b16 %v3123
        %v3192 = vunpack.c.l.b16 %v3124
        %v3193 = vunpack.c.l.b16 %v3125
        %v3194 = vunpack.c.l.b16 %v3126
        %v3195 = vunpack.c.l.b16 %v3127
        %v3196 = vunpack.c.l.b16 %v3128
        %v3197 = vunpack.c.l.b16 %v3129
        %v3198 = vunpack.c.l.b16 %v3130
        %v3199 = vunpack.c.l.b16 %v3131
        %v3200 = vunpack.c.l.b16 %v3132
        %v3201 = vunpack.c.l.b16 %v3133
        %v3202 = vunpack.c.l.b16 %v3134
        %v3203 = vunpack.c.l.b16 %v3135
        %v3204 = vunpack.c.l.b16 %v3136
        %v3205 = vunpack.c.l.b16 %v3137
        %v3206 = vunpack.c.l.b16 %v3138
        %v3207 = vunpack.c.l.b16 %v3139
        %v3208 = vunpack.c.l.b16 %v3140
        %v3209 = vunpack.c.l.b16 %v3141
        %v3210 = vunpack.c.l.b16 %v3142
        %v3211 = vpack.c.b16 %v3180, %v3179
        %v3212 = vpack.c.b16 %v3182, %v3181
        %v3213 = vpack.c.b16 %v3184, %v3183
        %v3214 = vpack.c.b16 %v3186, %v3185
        %v3215 = vpack.c.b16 %v3188, %v3187
        %v3216 = vpack.c.b16 %v3190, %v3189
        %v3217 = vpack.c.b16 %v3192, %v3191
        %v3218 = vpack.c.b16 %v3194, %v3193
        %v3219 = vpack.c.b16 %v3196, %v3195
        %v3220 = vpack.c.b16 %v3198, %v3197
        %v3221 = vpack.c.b16 %v3200, %v3199
        %v3222 = vpack.c.b16 %v3202, %v3201
        %v3223 = vpack.c.b16 %v3204, %v3203
        %v3224 = vpack.c.b16 %v3206, %v3205
        %v3225 = vpack.c.b16 %v3208, %v3207
        %v3226 = vpack.c.b16 %v3210, %v3209
        %3243 = vmatpush.bf16.msra.mxu0 %v3218
        %3244 = vmatpush.bf16.msra.mxu0 %v3217
        %3245 = vmatpush.bf16.msra.mxu0 %v3216
        %3246 = vmatpush.bf16.msra.mxu0 %v3215
        %3247 = vmatpush.bf16.msra.mxu0 %v3214
        %3248 = vmatpush.bf16.msra.mxu0 %v3213
        %3249 = vmatpush.bf16.msra.mxu0 %v3212
        %3250 = vmatpush.bf16.msra.mxu0 %v3211
        %3251 = vmatmul.bf16.gmra.mxu0 %v3109
        %v3252 = vpop.f32.mrf.mxu0
        %v3253 = vadd.f32 %v3145, %v3252
        %v3254 = vpop.f32.mrf.mxu0
        %v3255 = vadd.f32 %v3145, %v3254
        %3256 = vdwg.mxu0
        %3257 = vmatpush.bf16.msra.mxu0 %v3226
        %3258 = vmatpush.bf16.msra.mxu0 %v3225
        %3259 = vmatpush.bf16.msra.mxu0 %v3224
        %3260 = vmatpush.bf16.msra.mxu0 %v3223
        %3261 = vmatpush.bf16.msra.mxu0 %v3222
        %3262 = vmatpush.bf16.msra.mxu0 %v3221
        %3263 = vmatpush.bf16.msra.mxu0 %v3220
        %3264 = vmatpush.bf16.msra.mxu0 %v3219
        %3265 = vmatmul.bf16.gmra.mxu0 %v3110
        %v3266 = vpop.f32.mrf.mxu0
        %v3267 = vadd.f32 %v3253, %v3266
        %v3268 = vpop.f32.mrf.mxu0
        %v3269 = vadd.f32 %v3255, %v3268
        %3270 = vdwg.mxu0
        %v3271 = vmax.f32 %v3267, 0.0
        %v3272 = vmax.f32 %v3269, 0.0
        %v3273 = vpack.c.bf16 %v3272, %v3271
        %v3274 = vld [vmem:[#allocation11] sm:$0xf]
        %v3275 = vld [vmem:[#allocation11 + $0x4] sm:$0xf]
        %v3276 = vld [vmem:[#allocation11 + $0x8] sm:$0xf]
        %v3277 = vld [vmem:[#allocation11 + $0xc] sm:$0xf]
        %v3278 = vld [vmem:[#allocation11 + $0x10] sm:$0xf]
        %v3279 = vld [vmem:[#allocation11 + $0x14] sm:$0xf]
        %v3280 = vld [vmem:[#allocation11 + $0x18] sm:$0xf]
        %v3281 = vld [vmem:[#allocation11 + $0x1c] sm:$0xf]
        %v3282 = vld [vmem:[#allocation11 + $0x20] sm:$0xf]
        %v3283 = vld [vmem:[#allocation11 + $0x24] sm:$0xf]
        %v3284 = vld [vmem:[#allocation11 + $0x28] sm:$0xf]
        %v3285 = vld [vmem:[#allocation11 + $0x2c] sm:$0xf]
        %v3286 = vld [vmem:[#allocation11 + $0x30] sm:$0xf]
        %v3287 = vld [vmem:[#allocation11 + $0x34] sm:$0xf]
        %v3288 = vld [vmem:[#allocation11 + $0x38] sm:$0xf]
        %v3289 = vld [vmem:[#allocation11 + $0x3c] sm:$0xf]
        %v3290 = vld [vmem:[#allocation13] sm:$0x1]
        %v3292 = vperm.slane %v3290, 0
        %v3310 = vunpack.c.l.b16 %v3274
        %v3311 = vunpack.c.l.b16 %v3275
        %v3312 = vunpack.c.l.b16 %v3276
        %v3313 = vunpack.c.l.b16 %v3277
        %v3314 = vunpack.c.l.b16 %v3278
        %v3315 = vunpack.c.l.b16 %v3279
        %v3316 = vunpack.c.l.b16 %v3280
        %v3317 = vunpack.c.l.b16 %v3281
        %v3318 = vunpack.c.l.b16 %v3282
        %v3319 = vunpack.c.l.b16 %v3283
        %v3320 = vunpack.c.l.b16 %v3284
        %v3321 = vunpack.c.l.b16 %v3285
        %v3322 = vunpack.c.l.b16 %v3286
        %v3323 = vunpack.c.l.b16 %v3287
        %v3324 = vunpack.c.l.b16 %v3288
        %v3325 = vunpack.c.l.b16 %v3289
        %v3326 = vpack.c.b16 %v3311, %v3310
        %v3327 = vpack.c.b16 %v3313, %v3312
        %v3328 = vpack.c.b16 %v3315, %v3314
        %v3329 = vpack.c.b16 %v3317, %v3316
        %v3330 = vpack.c.b16 %v3319, %v3318
        %v3331 = vpack.c.b16 %v3321, %v3320
        %v3332 = vpack.c.b16 %v3323, %v3322
        %v3333 = vpack.c.b16 %v3325, %v3324
        %3342 = vmatpush.bf16.msra.mxu0 %v3333
        %3343 = vmatpush.bf16.msra.mxu0 %v3332
        %3344 = vmatpush.bf16.msra.mxu0 %v3331
        %3345 = vmatpush.bf16.msra.mxu0 %v3330
        %3346 = vmatpush.bf16.msra.mxu0 %v3329
        %3347 = vmatpush.bf16.msra.mxu0 %v3328
        %3348 = vmatpush.bf16.msra.mxu0 %v3327
        %3349 = vmatpush.bf16.msra.mxu0 %v3326
        %3350 = vmatmul.bf16.gmra.mxu0 %v3273
        %v3351 = vpop.f32.mrf.mxu0
        %v3352 = vadd.f32 %v3292, %v3351
        %v3353 = vpop.f32.mrf.mxu0
        %v3354 = vadd.f32 %v3292, %v3353
        %3355 = vdwg.mxu0
        %v3356 = vpack.c.bf16 %v3352, %v3352
        %v3357 = vpack.c.bf16 %v3354, %v3354
        %3358 = vst [vmem:[%s797] sm:$0xf] %v3356
        %3359 = vst [vmem:[%s797 + $0x4] sm:$0xf] %v3357
        %v3360 = vld [vmem:[#allocation14] sm:$0xf]
        %v3361 = vld [vmem:[#allocation14 + $0x4] sm:$0xf]
        %v3362 = vld [vmem:[#allocation14 + $0x8] sm:$0xf]
        %v3363 = vld [vmem:[#allocation14 + $0xc] sm:$0xf]
        %v3364 = vld [vmem:[#allocation14 + $0x10] sm:$0xf]
        %v3365 = vld [vmem:[#allocation14 + $0x14] sm:$0xf]
        %v3366 = vld [vmem:[#allocation14 + $0x18] sm:$0xf]
        %v3367 = vld [vmem:[#allocation14 + $0x1c] sm:$0xf]
        %v3368 = vld [vmem:[#allocation14 + $0x20] sm:$0xf]
        %v3369 = vld [vmem:[#allocation14 + $0x24] sm:$0xf]
        %v3370 = vld [vmem:[#allocation14 + $0x28] sm:$0xf]
        %v3371 = vld [vmem:[#allocation14 + $0x2c] sm:$0xf]
        %v3372 = vld [vmem:[#allocation14 + $0x30] sm:$0xf]
        %v3373 = vld [vmem:[#allocation14 + $0x34] sm:$0xf]
        %v3374 = vld [vmem:[#allocation14 + $0x38] sm:$0xf]
        %v3375 = vld [vmem:[#allocation14 + $0x3c] sm:$0xf]
        %v3376 = vld [vmem:[#allocation16] sm:$0x1]
        %v3378 = vperm.slane %v3376, 0
        %v3396 = vunpack.c.l.b16 %v3360
        %v3397 = vunpack.c.l.b16 %v3361
        %v3398 = vunpack.c.l.b16 %v3362
        %v3399 = vunpack.c.l.b16 %v3363
        %v3400 = vunpack.c.l.b16 %v3364
        %v3401 = vunpack.c.l.b16 %v3365
        %v3402 = vunpack.c.l.b16 %v3366
        %v3403 = vunpack.c.l.b16 %v3367
        %v3404 = vunpack.c.l.b16 %v3368
        %v3405 = vunpack.c.l.b16 %v3369
        %v3406 = vunpack.c.l.b16 %v3370
        %v3407 = vunpack.c.l.b16 %v3371
        %v3408 = vunpack.c.l.b16 %v3372
        %v3409 = vunpack.c.l.b16 %v3373
        %v3410 = vunpack.c.l.b16 %v3374
        %v3411 = vunpack.c.l.b16 %v3375
        %v3412 = vpack.c.b16 %v3397, %v3396
        %v3413 = vpack.c.b16 %v3399, %v3398
        %v3414 = vpack.c.b16 %v3401, %v3400
        %v3415 = vpack.c.b16 %v3403, %v3402
        %v3416 = vpack.c.b16 %v3405, %v3404
        %v3417 = vpack.c.b16 %v3407, %v3406
        %v3418 = vpack.c.b16 %v3409, %v3408
        %v3419 = vpack.c.b16 %v3411, %v3410
        %3428 = vmatpush.bf16.msra.mxu0 %v3419
        %3429 = vmatpush.bf16.msra.mxu0 %v3418
        %3430 = vmatpush.bf16.msra.mxu0 %v3417
        %3431 = vmatpush.bf16.msra.mxu0 %v3416
        %3432 = vmatpush.bf16.msra.mxu0 %v3415
        %3433 = vmatpush.bf16.msra.mxu0 %v3414
        %3434 = vmatpush.bf16.msra.mxu0 %v3413
        %3435 = vmatpush.bf16.msra.mxu0 %v3412
        %3436 = vmatmul.bf16.gmra.mxu0 %v3273
        %v3437 = vpop.f32.mrf.mxu0
        %v3438 = vadd.f32 %v3378, %v3437
        %v3439 = vpop.f32.mrf.mxu0
        %v3440 = vadd.f32 %v3378, %v3439
        %3441 = vdwg.mxu0
        %v3442 = vmax.f32 %v3438, 0.0
        %v3443 = vmax.f32 %v3440, 0.0
        %v3444 = vpack.c.bf16 %v3443, %v3442
        %v3445 = vld [vmem:[#allocation17] sm:$0xff]
        %v3446 = vld [vmem:[#allocation17 + $0x8] sm:$0xff]
        %v3447 = vld [vmem:[#allocation17 + $0x10] sm:$0xff]
        %v3448 = vld [vmem:[#allocation17 + $0x18] sm:$0xff]
        %v3449 = vld [vmem:[#allocation17 + $0x20] sm:$0xff]
        %v3450 = vld [vmem:[#allocation17 + $0x28] sm:$0xff]
        %v3451 = vld [vmem:[#allocation17 + $0x30] sm:$0xff]
        %v3452 = vld [vmem:[#allocation17 + $0x38] sm:$0xff]
        %v3453 = vld [vmem:[#allocation17 + $0x40] sm:$0xff]
        %v3454 = vld [vmem:[#allocation17 + $0x48] sm:$0xff]
        %v3455 = vld [vmem:[#allocation17 + $0x50] sm:$0xff]
        %v3456 = vld [vmem:[#allocation17 + $0x58] sm:$0xff]
        %v3457 = vld [vmem:[#allocation17 + $0x60] sm:$0xff]
        %v3458 = vld [vmem:[#allocation17 + $0x68] sm:$0xff]
        %v3459 = vld [vmem:[#allocation17 + $0x70] sm:$0xff]
        %v3460 = vld [vmem:[#allocation17 + $0x78] sm:$0xff]
        %v3461 = vld [vmem:[#allocation19] sm:$0x3]
        %v3463 = vperm.slane %v3461, 0
        %v3464 = vperm.slane %v3461, 1
        %v3483 = vunpack.c.l.b16 %v3445
        %v3484 = vunpack.c.h.b16 %v3445
        %v3485 = vunpack.c.l.b16 %v3446
        %v3486 = vunpack.c.h.b16 %v3446
        %v3487 = vunpack.c.l.b16 %v3447
        %v3488 = vunpack.c.h.b16 %v3447
        %v3489 = vunpack.c.l.b16 %v3448
        %v3490 = vunpack.c.h.b16 %v3448
        %v3491 = vunpack.c.l.b16 %v3449
        %v3492 = vunpack.c.h.b16 %v3449
        %v3493 = vunpack.c.l.b16 %v3450
        %v3494 = vunpack.c.h.b16 %v3450
        %v3495 = vunpack.c.l.b16 %v3451
        %v3496 = vunpack.c.h.b16 %v3451
        %v3497 = vunpack.c.l.b16 %v3452
        %v3498 = vunpack.c.h.b16 %v3452
        %v3499 = vunpack.c.l.b16 %v3453
        %v3500 = vunpack.c.h.b16 %v3453
        %v3501 = vunpack.c.l.b16 %v3454
        %v3502 = vunpack.c.h.b16 %v3454
        %v3503 = vunpack.c.l.b16 %v3455
        %v3504 = vunpack.c.h.b16 %v3455
        %v3505 = vunpack.c.l.b16 %v3456
        %v3506 = vunpack.c.h.b16 %v3456
        %v3507 = vunpack.c.l.b16 %v3457
        %v3508 = vunpack.c.h.b16 %v3457
        %v3509 = vunpack.c.l.b16 %v3458
        %v3510 = vunpack.c.h.b16 %v3458
        %v3511 = vunpack.c.l.b16 %v3459
        %v3512 = vunpack.c.h.b16 %v3459
        %v3513 = vunpack.c.l.b16 %v3460
        %v3514 = vunpack.c.h.b16 %v3460
        %v3515 = vpack.c.b16 %v3485, %v3483
        %v3516 = vpack.c.b16 %v3486, %v3484
        %v3517 = vpack.c.b16 %v3489, %v3487
        %v3518 = vpack.c.b16 %v3490, %v3488
        %v3519 = vpack.c.b16 %v3493, %v3491
        %v3520 = vpack.c.b16 %v3494, %v3492
        %v3521 = vpack.c.b16 %v3497, %v3495
        %v3522 = vpack.c.b16 %v3498, %v3496
        %v3523 = vpack.c.b16 %v3501, %v3499
        %v3524 = vpack.c.b16 %v3502, %v3500
        %v3525 = vpack.c.b16 %v3505, %v3503
        %v3526 = vpack.c.b16 %v3506, %v3504
        %v3527 = vpack.c.b16 %v3509, %v3507
        %v3528 = vpack.c.b16 %v3510, %v3508
        %v3529 = vpack.c.b16 %v3513, %v3511
        %v3530 = vpack.c.b16 %v3514, %v3512
        %3547 = vmatpush.bf16.msra.mxu0 %v3529
        %3548 = vmatpush.bf16.msra.mxu0 %v3527
        %3549 = vmatpush.bf16.msra.mxu0 %v3525
        %3550 = vmatpush.bf16.msra.mxu0 %v3523
        %3551 = vmatpush.bf16.msra.mxu0 %v3521
        %3552 = vmatpush.bf16.msra.mxu0 %v3519
        %3553 = vmatpush.bf16.msra.mxu0 %v3517
        %3554 = vmatpush.bf16.msra.mxu0 %v3515
        %3555 = vmatmul.bf16.gmra.mxu0 %v3444
        %v3556 = vpop.f32.mrf.mxu0
        %v3557 = vadd.f32 %v3463, %v3556
        %v3558 = vpop.f32.mrf.mxu0
        %v3559 = vadd.f32 %v3463, %v3558
        %3560 = vdwg.mxu0
        %3561 = vmatpush.bf16.msra.mxu0 %v3530
        %3562 = vmatpush.bf16.msra.mxu0 %v3528
        %3563 = vmatpush.bf16.msra.mxu0 %v3526
        %3564 = vmatpush.bf16.msra.mxu0 %v3524
        %3565 = vmatpush.bf16.msra.mxu0 %v3522
        %3566 = vmatpush.bf16.msra.mxu0 %v3520
        %3567 = vmatpush.bf16.msra.mxu0 %v3518
        %3568 = vmatpush.bf16.msra.mxu0 %v3516
        %3569 = vmatmul.bf16.gmra.mxu0 %v3444
        %v3570 = vpop.f32.mrf.mxu0
        %v3571 = vadd.f32 %v3464, %v3570
        %v3572 = vpop.f32.mrf.mxu0
        %v3573 = vadd.f32 %v3464, %v3572
        %3574 = vdwg.mxu0
        %v3575 = vmax.f32 %v3557, 0.0
        %v3576 = vmax.f32 %v3571, 0.0
        %v3577 = vmax.f32 %v3559, 0.0
        %v3578 = vmax.f32 %v3573, 0.0
        %v3579 = vpack.c.bf16 %v3577, %v3575
        %v3580 = vpack.c.bf16 %v3578, %v3576
        %v3581 = vld [vmem:[#allocation20] sm:$0xff]
        %v3582 = vld [vmem:[#allocation20 + $0x8] sm:$0xff]
        %v3583 = vld [vmem:[#allocation20 + $0x10] sm:$0xff]
        %v3584 = vld [vmem:[#allocation20 + $0x18] sm:$0xff]
        %v3585 = vld [vmem:[#allocation20 + $0x20] sm:$0xff]
        %v3586 = vld [vmem:[#allocation20 + $0x28] sm:$0xff]
        %v3587 = vld [vmem:[#allocation20 + $0x30] sm:$0xff]
        %v3588 = vld [vmem:[#allocation20 + $0x38] sm:$0xff]
        %v3589 = vld [vmem:[#allocation20 + $0x40] sm:$0xff]
        %v3590 = vld [vmem:[#allocation20 + $0x48] sm:$0xff]
        %v3591 = vld [vmem:[#allocation20 + $0x50] sm:$0xff]
        %v3592 = vld [vmem:[#allocation20 + $0x58] sm:$0xff]
        %v3593 = vld [vmem:[#allocation20 + $0x60] sm:$0xff]
        %v3594 = vld [vmem:[#allocation20 + $0x68] sm:$0xff]
        %v3595 = vld [vmem:[#allocation20 + $0x70] sm:$0xff]
        %v3596 = vld [vmem:[#allocation20 + $0x78] sm:$0xff]
        %v3597 = vld [vmem:[#allocation20 + $0x80] sm:$0xff]
        %v3598 = vld [vmem:[#allocation20 + $0x88] sm:$0xff]
        %v3599 = vld [vmem:[#allocation20 + $0x90] sm:$0xff]
        %v3600 = vld [vmem:[#allocation20 + $0x98] sm:$0xff]
        %v3601 = vld [vmem:[#allocation20 + $0xa0] sm:$0xff]
        %v3602 = vld [vmem:[#allocation20 + $0xa8] sm:$0xff]
        %v3603 = vld [vmem:[#allocation20 + $0xb0] sm:$0xff]
        %v3604 = vld [vmem:[#allocation20 + $0xb8] sm:$0xff]
        %v3605 = vld [vmem:[#allocation20 + $0xc0] sm:$0xff]
        %v3606 = vld [vmem:[#allocation20 + $0xc8] sm:$0xff]
        %v3607 = vld [vmem:[#allocation20 + $0xd0] sm:$0xff]
        %v3608 = vld [vmem:[#allocation20 + $0xd8] sm:$0xff]
        %v3609 = vld [vmem:[#allocation20 + $0xe0] sm:$0xff]
        %v3610 = vld [vmem:[#allocation20 + $0xe8] sm:$0xff]
        %v3611 = vld [vmem:[#allocation20 + $0xf0] sm:$0xff]
        %v3612 = vld [vmem:[#allocation20 + $0xf8] sm:$0xff]
        %v3613 = vld [vmem:[#allocation20 + $0x100] sm:$0xff]
        %v3614 = vld [vmem:[#allocation20 + $0x108] sm:$0xff]
        %v3615 = vld [vmem:[#allocation20 + $0x110] sm:$0xff]
        %v3616 = vld [vmem:[#allocation20 + $0x118] sm:$0xff]
        %v3617 = vld [vmem:[#allocation20 + $0x120] sm:$0xff]
        %v3618 = vld [vmem:[#allocation20 + $0x128] sm:$0xff]
        %v3619 = vld [vmem:[#allocation20 + $0x130] sm:$0xff]
        %v3620 = vld [vmem:[#allocation20 + $0x138] sm:$0xff]
        %v3621 = vld [vmem:[#allocation20 + $0x140] sm:$0xff]
        %v3622 = vld [vmem:[#allocation20 + $0x148] sm:$0xff]
        %v3623 = vld [vmem:[#allocation20 + $0x150] sm:$0xff]
        %v3624 = vld [vmem:[#allocation20 + $0x158] sm:$0xff]
        %v3625 = vld [vmem:[#allocation20 + $0x160] sm:$0xff]
        %v3626 = vld [vmem:[#allocation20 + $0x168] sm:$0xff]
        %v3627 = vld [vmem:[#allocation20 + $0x170] sm:$0xff]
        %v3628 = vld [vmem:[#allocation20 + $0x178] sm:$0xff]
        %v3629 = vld [vmem:[#allocation20 + $0x180] sm:$0xff]
        %v3630 = vld [vmem:[#allocation20 + $0x188] sm:$0xff]
        %v3631 = vld [vmem:[#allocation20 + $0x190] sm:$0xff]
        %v3632 = vld [vmem:[#allocation20 + $0x198] sm:$0xff]
        %v3633 = vld [vmem:[#allocation20 + $0x1a0] sm:$0xff]
        %v3634 = vld [vmem:[#allocation20 + $0x1a8] sm:$0xff]
        %v3635 = vld [vmem:[#allocation20 + $0x1b0] sm:$0xff]
        %v3636 = vld [vmem:[#allocation20 + $0x1b8] sm:$0xff]
        %v3637 = vld [vmem:[#allocation20 + $0x1c0] sm:$0xff]
        %v3638 = vld [vmem:[#allocation20 + $0x1c8] sm:$0xff]
        %v3639 = vld [vmem:[#allocation20 + $0x1d0] sm:$0xff]
        %v3640 = vld [vmem:[#allocation20 + $0x1d8] sm:$0xff]
        %v3641 = vld [vmem:[#allocation20 + $0x1e0] sm:$0xff]
        %v3642 = vld [vmem:[#allocation20 + $0x1e8] sm:$0xff]
        %v3643 = vld [vmem:[#allocation20 + $0x1f0] sm:$0xff]
        %v3644 = vld [vmem:[#allocation20 + $0x1f8] sm:$0xff]
        %v3645 = vld [vmem:[%s14] sm:$0xf]
        %v3647 = vperm.slane %v3645, 0
        %v3648 = vperm.slane %v3645, 1
        %v3649 = vperm.slane %v3645, 2
        %v3650 = vperm.slane %v3645, 3
        %v3719 = vunpack.c.l.b16 %v3581
        %v3720 = vunpack.c.h.b16 %v3581
        %v3721 = vunpack.c.l.b16 %v3582
        %v3722 = vunpack.c.h.b16 %v3582
        %v3723 = vunpack.c.l.b16 %v3583
        %v3724 = vunpack.c.h.b16 %v3583
        %v3725 = vunpack.c.l.b16 %v3584
        %v3726 = vunpack.c.h.b16 %v3584
        %v3727 = vunpack.c.l.b16 %v3585
        %v3728 = vunpack.c.h.b16 %v3585
        %v3729 = vunpack.c.l.b16 %v3586
        %v3730 = vunpack.c.h.b16 %v3586
        %v3731 = vunpack.c.l.b16 %v3587
        %v3732 = vunpack.c.h.b16 %v3587
        %v3733 = vunpack.c.l.b16 %v3588
        %v3734 = vunpack.c.h.b16 %v3588
        %v3735 = vunpack.c.l.b16 %v3589
        %v3736 = vunpack.c.h.b16 %v3589
        %v3737 = vunpack.c.l.b16 %v3590
        %v3738 = vunpack.c.h.b16 %v3590
        %v3739 = vunpack.c.l.b16 %v3591
        %v3740 = vunpack.c.h.b16 %v3591
        %v3741 = vunpack.c.l.b16 %v3592
        %v3742 = vunpack.c.h.b16 %v3592
        %v3743 = vunpack.c.l.b16 %v3593
        %v3744 = vunpack.c.h.b16 %v3593
        %v3745 = vunpack.c.l.b16 %v3594
        %v3746 = vunpack.c.h.b16 %v3594
        %v3747 = vunpack.c.l.b16 %v3595
        %v3748 = vunpack.c.h.b16 %v3595
        %v3749 = vunpack.c.l.b16 %v3596
        %v3750 = vunpack.c.h.b16 %v3596
        %v3751 = vunpack.c.l.b16 %v3597
        %v3752 = vunpack.c.h.b16 %v3597
        %v3753 = vunpack.c.l.b16 %v3598
        %v3754 = vunpack.c.h.b16 %v3598
        %v3755 = vunpack.c.l.b16 %v3599
        %v3756 = vunpack.c.h.b16 %v3599
        %v3757 = vunpack.c.l.b16 %v3600
        %v3758 = vunpack.c.h.b16 %v3600
        %v3759 = vunpack.c.l.b16 %v3601
        %v3760 = vunpack.c.h.b16 %v3601
        %v3761 = vunpack.c.l.b16 %v3602
        %v3762 = vunpack.c.h.b16 %v3602
        %v3763 = vunpack.c.l.b16 %v3603
        %v3764 = vunpack.c.h.b16 %v3603
        %v3765 = vunpack.c.l.b16 %v3604
        %v3766 = vunpack.c.h.b16 %v3604
        %v3767 = vunpack.c.l.b16 %v3605
        %v3768 = vunpack.c.h.b16 %v3605
        %v3769 = vunpack.c.l.b16 %v3606
        %v3770 = vunpack.c.h.b16 %v3606
        %v3771 = vunpack.c.l.b16 %v3607
        %v3772 = vunpack.c.h.b16 %v3607
        %v3773 = vunpack.c.l.b16 %v3608
        %v3774 = vunpack.c.h.b16 %v3608
        %v3775 = vunpack.c.l.b16 %v3609
        %v3776 = vunpack.c.h.b16 %v3609
        %v3777 = vunpack.c.l.b16 %v3610
        %v3778 = vunpack.c.h.b16 %v3610
        %v3779 = vunpack.c.l.b16 %v3611
        %v3780 = vunpack.c.h.b16 %v3611
        %v3781 = vunpack.c.l.b16 %v3612
        %v3782 = vunpack.c.h.b16 %v3612
        %v3783 = vunpack.c.l.b16 %v3613
        %v3784 = vunpack.c.h.b16 %v3613
        %v3785 = vunpack.c.l.b16 %v3614
        %v3786 = vunpack.c.h.b16 %v3614
        %v3787 = vunpack.c.l.b16 %v3615
        %v3788 = vunpack.c.h.b16 %v3615
        %v3789 = vunpack.c.l.b16 %v3616
        %v3790 = vunpack.c.h.b16 %v3616
        %v3791 = vunpack.c.l.b16 %v3617
        %v3792 = vunpack.c.h.b16 %v3617
        %v3793 = vunpack.c.l.b16 %v3618
        %v3794 = vunpack.c.h.b16 %v3618
        %v3795 = vunpack.c.l.b16 %v3619
        %v3796 = vunpack.c.h.b16 %v3619
        %v3797 = vunpack.c.l.b16 %v3620
        %v3798 = vunpack.c.h.b16 %v3620
        %v3799 = vunpack.c.l.b16 %v3621
        %v3800 = vunpack.c.h.b16 %v3621
        %v3801 = vunpack.c.l.b16 %v3622
        %v3802 = vunpack.c.h.b16 %v3622
        %v3803 = vunpack.c.l.b16 %v3623
        %v3804 = vunpack.c.h.b16 %v3623
        %v3805 = vunpack.c.l.b16 %v3624
        %v3806 = vunpack.c.h.b16 %v3624
        %v3807 = vunpack.c.l.b16 %v3625
        %v3808 = vunpack.c.h.b16 %v3625
        %v3809 = vunpack.c.l.b16 %v3626
        %v3810 = vunpack.c.h.b16 %v3626
        %v3811 = vunpack.c.l.b16 %v3627
        %v3812 = vunpack.c.h.b16 %v3627
        %v3813 = vunpack.c.l.b16 %v3628
        %v3814 = vunpack.c.h.b16 %v3628
        %v3815 = vunpack.c.l.b16 %v3629
        %v3816 = vunpack.c.h.b16 %v3629
        %v3817 = vunpack.c.l.b16 %v3630
        %v3818 = vunpack.c.h.b16 %v3630
        %v3819 = vunpack.c.l.b16 %v3631
        %v3820 = vunpack.c.h.b16 %v3631
        %v3821 = vunpack.c.l.b16 %v3632
        %v3822 = vunpack.c.h.b16 %v3632
        %v3823 = vunpack.c.l.b16 %v3633
        %v3824 = vunpack.c.h.b16 %v3633
        %v3825 = vunpack.c.l.b16 %v3634
        %v3826 = vunpack.c.h.b16 %v3634
        %v3827 = vunpack.c.l.b16 %v3635
        %v3828 = vunpack.c.h.b16 %v3635
        %v3829 = vunpack.c.l.b16 %v3636
        %v3830 = vunpack.c.h.b16 %v3636
        %v3831 = vunpack.c.l.b16 %v3637
        %v3832 = vunpack.c.h.b16 %v3637
        %v3833 = vunpack.c.l.b16 %v3638
        %v3834 = vunpack.c.h.b16 %v3638
        %v3835 = vunpack.c.l.b16 %v3639
        %v3836 = vunpack.c.h.b16 %v3639
        %v3837 = vunpack.c.l.b16 %v3640
        %v3838 = vunpack.c.h.b16 %v3640
        %v3839 = vunpack.c.l.b16 %v3641
        %v3840 = vunpack.c.h.b16 %v3641
        %v3841 = vunpack.c.l.b16 %v3642
        %v3842 = vunpack.c.h.b16 %v3642
        %v3843 = vunpack.c.l.b16 %v3643
        %v3844 = vunpack.c.h.b16 %v3643
        %v3845 = vunpack.c.l.b16 %v3644
        %v3846 = vunpack.c.h.b16 %v3644
        %v3847 = vpack.c.b16 %v3723, %v3719
        %v3848 = vpack.c.b16 %v3724, %v3720
        %v3849 = vpack.c.b16 %v3725, %v3721
        %v3850 = vpack.c.b16 %v3726, %v3722
        %v3851 = vpack.c.b16 %v3731, %v3727
        %v3852 = vpack.c.b16 %v3732, %v3728
        %v3853 = vpack.c.b16 %v3733, %v3729
        %v3854 = vpack.c.b16 %v3734, %v3730
        %v3855 = vpack.c.b16 %v3739, %v3735
        %v3856 = vpack.c.b16 %v3740, %v3736
        %v3857 = vpack.c.b16 %v3741, %v3737
        %v3858 = vpack.c.b16 %v3742, %v3738
        %v3859 = vpack.c.b16 %v3747, %v3743
        %v3860 = vpack.c.b16 %v3748, %v3744
        %v3861 = vpack.c.b16 %v3749, %v3745
        %v3862 = vpack.c.b16 %v3750, %v3746
        %v3863 = vpack.c.b16 %v3755, %v3751
        %v3864 = vpack.c.b16 %v3756, %v3752
        %v3865 = vpack.c.b16 %v3757, %v3753
        %v3866 = vpack.c.b16 %v3758, %v3754
        %v3867 = vpack.c.b16 %v3763, %v3759
        %v3868 = vpack.c.b16 %v3764, %v3760
        %v3869 = vpack.c.b16 %v3765, %v3761
        %v3870 = vpack.c.b16 %v3766, %v3762
        %v3871 = vpack.c.b16 %v3771, %v3767
        %v3872 = vpack.c.b16 %v3772, %v3768
        %v3873 = vpack.c.b16 %v3773, %v3769
        %v3874 = vpack.c.b16 %v3774, %v3770
        %v3875 = vpack.c.b16 %v3779, %v3775
        %v3876 = vpack.c.b16 %v3780, %v3776
        %v3877 = vpack.c.b16 %v3781, %v3777
        %v3878 = vpack.c.b16 %v3782, %v3778
        %v3879 = vpack.c.b16 %v3787, %v3783
        %v3880 = vpack.c.b16 %v3788, %v3784
        %v3881 = vpack.c.b16 %v3789, %v3785
        %v3882 = vpack.c.b16 %v3790, %v3786
        %v3883 = vpack.c.b16 %v3795, %v3791
        %v3884 = vpack.c.b16 %v3796, %v3792
        %v3885 = vpack.c.b16 %v3797, %v3793
        %v3886 = vpack.c.b16 %v3798, %v3794
        %v3887 = vpack.c.b16 %v3803, %v3799
        %v3888 = vpack.c.b16 %v3804, %v3800
        %v3889 = vpack.c.b16 %v3805, %v3801
        %v3890 = vpack.c.b16 %v3806, %v3802
        %v3891 = vpack.c.b16 %v3811, %v3807
        %v3892 = vpack.c.b16 %v3812, %v3808
        %v3893 = vpack.c.b16 %v3813, %v3809
        %v3894 = vpack.c.b16 %v3814, %v3810
        %v3895 = vpack.c.b16 %v3819, %v3815
        %v3896 = vpack.c.b16 %v3820, %v3816
        %v3897 = vpack.c.b16 %v3821, %v3817
        %v3898 = vpack.c.b16 %v3822, %v3818
        %v3899 = vpack.c.b16 %v3827, %v3823
        %v3900 = vpack.c.b16 %v3828, %v3824
        %v3901 = vpack.c.b16 %v3829, %v3825
        %v3902 = vpack.c.b16 %v3830, %v3826
        %v3903 = vpack.c.b16 %v3835, %v3831
        %v3904 = vpack.c.b16 %v3836, %v3832
        %v3905 = vpack.c.b16 %v3837, %v3833
        %v3906 = vpack.c.b16 %v3838, %v3834
        %v3907 = vpack.c.b16 %v3843, %v3839
        %v3908 = vpack.c.b16 %v3844, %v3840
        %v3909 = vpack.c.b16 %v3845, %v3841
        %v3910 = vpack.c.b16 %v3846, %v3842
        %3975 = vmatpush.bf16.msra.mxu0 %v3875
        %3976 = vmatpush.bf16.msra.mxu0 %v3871
        %3977 = vmatpush.bf16.msra.mxu0 %v3867
        %3978 = vmatpush.bf16.msra.mxu0 %v3863
        %3979 = vmatpush.bf16.msra.mxu0 %v3859
        %3980 = vmatpush.bf16.msra.mxu0 %v3855
        %3981 = vmatpush.bf16.msra.mxu0 %v3851
        %3982 = vmatpush.bf16.msra.mxu0 %v3847
        %3983 = vmatmul.bf16.gmra.mxu0 %v3579
        %v3984 = vpop.f32.mrf.mxu0
        %v3985 = vadd.f32 %v3647, %v3984
        %v3986 = vpop.f32.mrf.mxu0
        %v3987 = vadd.f32 %v3647, %v3986
        %3988 = vdwg.mxu0
        %3989 = vmatpush.bf16.msra.mxu0 %v3907
        %3990 = vmatpush.bf16.msra.mxu0 %v3903
        %3991 = vmatpush.bf16.msra.mxu0 %v3899
        %3992 = vmatpush.bf16.msra.mxu0 %v3895
        %3993 = vmatpush.bf16.msra.mxu0 %v3891
        %3994 = vmatpush.bf16.msra.mxu0 %v3887
        %3995 = vmatpush.bf16.msra.mxu0 %v3883
        %3996 = vmatpush.bf16.msra.mxu0 %v3879
        %3997 = vmatmul.bf16.gmra.mxu0 %v3580
        %v3998 = vpop.f32.mrf.mxu0
        %v3999 = vadd.f32 %v3985, %v3998
        %v4000 = vpop.f32.mrf.mxu0
        %v4001 = vadd.f32 %v3987, %v4000
        %4002 = vdwg.mxu0
        %4003 = vmatpush.bf16.msra.mxu0 %v3876
        %4004 = vmatpush.bf16.msra.mxu0 %v3872
        %4005 = vmatpush.bf16.msra.mxu0 %v3868
        %4006 = vmatpush.bf16.msra.mxu0 %v3864
        %4007 = vmatpush.bf16.msra.mxu0 %v3860
        %4008 = vmatpush.bf16.msra.mxu0 %v3856
        %4009 = vmatpush.bf16.msra.mxu0 %v3852
        %4010 = vmatpush.bf16.msra.mxu0 %v3848
        %4011 = vmatmul.bf16.gmra.mxu0 %v3579
        %v4012 = vpop.f32.mrf.mxu0
        %v4013 = vadd.f32 %v3648, %v4012
        %v4014 = vpop.f32.mrf.mxu0
        %v4015 = vadd.f32 %v3648, %v4014
        %4016 = vdwg.mxu0
        %4017 = vmatpush.bf16.msra.mxu0 %v3908
        %4018 = vmatpush.bf16.msra.mxu0 %v3904
        %4019 = vmatpush.bf16.msra.mxu0 %v3900
        %4020 = vmatpush.bf16.msra.mxu0 %v3896
        %4021 = vmatpush.bf16.msra.mxu0 %v3892
        %4022 = vmatpush.bf16.msra.mxu0 %v3888
        %4023 = vmatpush.bf16.msra.mxu0 %v3884
        %4024 = vmatpush.bf16.msra.mxu0 %v3880
        %4025 = vmatmul.bf16.gmra.mxu0 %v3580
        %v4026 = vpop.f32.mrf.mxu0
        %v4027 = vadd.f32 %v4013, %v4026
        %v4028 = vpop.f32.mrf.mxu0
        %v4029 = vadd.f32 %v4015, %v4028
        %4030 = vdwg.mxu0
        %4031 = vmatpush.bf16.msra.mxu0 %v3877
        %4032 = vmatpush.bf16.msra.mxu0 %v3873
        %4033 = vmatpush.bf16.msra.mxu0 %v3869
        %4034 = vmatpush.bf16.msra.mxu0 %v3865
        %4035 = vmatpush.bf16.msra.mxu0 %v3861
        %4036 = vmatpush.bf16.msra.mxu0 %v3857
        %4037 = vmatpush.bf16.msra.mxu0 %v3853
        %4038 = vmatpush.bf16.msra.mxu0 %v3849
        %4039 = vmatmul.bf16.gmra.mxu0 %v3579
        %v4040 = vpop.f32.mrf.mxu0
        %v4041 = vadd.f32 %v3649, %v4040
        %v4042 = vpop.f32.mrf.mxu0
        %v4043 = vadd.f32 %v3649, %v4042
        %4044 = vdwg.mxu0
        %4045 = vmatpush.bf16.msra.mxu0 %v3909
        %4046 = vmatpush.bf16.msra.mxu0 %v3905
        %4047 = vmatpush.bf16.msra.mxu0 %v3901
        %4048 = vmatpush.bf16.msra.mxu0 %v3897
        %4049 = vmatpush.bf16.msra.mxu0 %v3893
        %4050 = vmatpush.bf16.msra.mxu0 %v3889
        %4051 = vmatpush.bf16.msra.mxu0 %v3885
        %4052 = vmatpush.bf16.msra.mxu0 %v3881
        %4053 = vmatmul.bf16.gmra.mxu0 %v3580
        %v4054 = vpop.f32.mrf.mxu0
        %v4055 = vadd.f32 %v4041, %v4054
        %v4056 = vpop.f32.mrf.mxu0
        %v4057 = vadd.f32 %v4043, %v4056
        %4058 = vdwg.mxu0
        %4059 = vmatpush.bf16.msra.mxu0 %v3878
        %4060 = vmatpush.bf16.msra.mxu0 %v3874
        %4061 = vmatpush.bf16.msra.mxu0 %v3870
        %4062 = vmatpush.bf16.msra.mxu0 %v3866
        %4063 = vmatpush.bf16.msra.mxu0 %v3862
        %4064 = vmatpush.bf16.msra.mxu0 %v3858
        %4065 = vmatpush.bf16.msra.mxu0 %v3854
        %4066 = vmatpush.bf16.msra.mxu0 %v3850
        %4067 = vmatmul.bf16.gmra.mxu0 %v3579
        %v4068 = vpop.f32.mrf.mxu0
        %v4069 = vadd.f32 %v3650, %v4068
        %v4070 = vpop.f32.mrf.mxu0
        %v4071 = vadd.f32 %v3650, %v4070
        %4072 = vdwg.mxu0
        %4073 = vmatpush.bf16.msra.mxu0 %v3910
        %4074 = vmatpush.bf16.msra.mxu0 %v3906
        %4075 = vmatpush.bf16.msra.mxu0 %v3902
        %4076 = vmatpush.bf16.msra.mxu0 %v3898
        %4077 = vmatpush.bf16.msra.mxu0 %v3894
        %4078 = vmatpush.bf16.msra.mxu0 %v3890
        %4079 = vmatpush.bf16.msra.mxu0 %v3886
        %4080 = vmatpush.bf16.msra.mxu0 %v3882
        %4081 = vmatmul.bf16.gmra.mxu0 %v3580
        %v4082 = vpop.f32.mrf.mxu0
        %v4083 = vadd.f32 %v4069, %v4082
        %v4084 = vpop.f32.mrf.mxu0
        %v4085 = vadd.f32 %v4071, %v4084
        %4086 = vdwg.mxu0
        %v4087 = vmax.f32 %v3999, 0.0
        %v4088 = vmax.f32 %v4027, 0.0
        %v4089 = vmax.f32 %v4055, 0.0
        %v4090 = vmax.f32 %v4083, 0.0
        %v4091 = vmax.f32 %v4001, 0.0
        %v4092 = vmax.f32 %v4029, 0.0
        %v4093 = vmax.f32 %v4057, 0.0
        %v4094 = vmax.f32 %v4085, 0.0
        %v4095 = vpack.c.bf16 %v4091, %v4087
        %v4096 = vpack.c.bf16 %v4092, %v4088
        %v4097 = vpack.c.bf16 %v4093, %v4089
        %v4098 = vpack.c.bf16 %v4094, %v4090
        %v4099 = vld [vmem:[#allocation22] sm:$0xff]
        %v4100 = vld [vmem:[#allocation22 + $0x8] sm:$0xff]
        %v4101 = vld [vmem:[#allocation22 + $0x10] sm:$0xff]
        %v4102 = vld [vmem:[#allocation22 + $0x18] sm:$0xf]
        %v4103 = vld [vmem:[#allocation22 + $0x1c] sm:$0xff]
        %v4104 = vld [vmem:[#allocation22 + $0x24] sm:$0xff]
        %v4105 = vld [vmem:[#allocation22 + $0x2c] sm:$0xff]
        %v4106 = vld [vmem:[#allocation22 + $0x34] sm:$0xf]
        %v4107 = vld [vmem:[#allocation22 + $0x38] sm:$0xff]
        %v4108 = vld [vmem:[#allocation22 + $0x40] sm:$0xff]
        %v4109 = vld [vmem:[#allocation22 + $0x48] sm:$0xff]
        %v4110 = vld [vmem:[#allocation22 + $0x50] sm:$0xf]
        %v4111 = vld [vmem:[#allocation22 + $0x54] sm:$0xff]
        %v4112 = vld [vmem:[#allocation22 + $0x5c] sm:$0xff]
        %v4113 = vld [vmem:[#allocation22 + $0x64] sm:$0xff]
        %v4114 = vld [vmem:[#allocation22 + $0x6c] sm:$0xf]
        %v4115 = vld [vmem:[#allocation22 + $0x70] sm:$0xff]
        %v4116 = vld [vmem:[#allocation22 + $0x78] sm:$0xff]
        %v4117 = vld [vmem:[#allocation22 + $0x80] sm:$0xff]
        %v4118 = vld [vmem:[#allocation22 + $0x88] sm:$0xf]
        %v4119 = vld [vmem:[#allocation22 + $0x8c] sm:$0xff]
        %v4120 = vld [vmem:[#allocation22 + $0x94] sm:$0xff]
        %v4121 = vld [vmem:[#allocation22 + $0x9c] sm:$0xff]
        %v4122 = vld [vmem:[#allocation22 + $0xa4] sm:$0xf]
        %v4123 = vld [vmem:[#allocation22 + $0xa8] sm:$0xff]
        %v4124 = vld [vmem:[#allocation22 + $0xb0] sm:$0xff]
        %v4125 = vld [vmem:[#allocation22 + $0xb8] sm:$0xff]
        %v4126 = vld [vmem:[#allocation22 + $0xc0] sm:$0xf]
        %v4127 = vld [vmem:[#allocation22 + $0xc4] sm:$0xff]
        %v4128 = vld [vmem:[#allocation22 + $0xcc] sm:$0xff]
        %v4129 = vld [vmem:[#allocation22 + $0xd4] sm:$0xff]
        %v4130 = vld [vmem:[#allocation22 + $0xdc] sm:$0xf]
        %v4131 = vld [vmem:[#allocation22 + $0xe0] sm:$0xff]
        %v4132 = vld [vmem:[#allocation22 + $0xe8] sm:$0xff]
        %v4133 = vld [vmem:[#allocation22 + $0xf0] sm:$0xff]
        %v4134 = vld [vmem:[#allocation22 + $0xf8] sm:$0xf]
        %v4135 = vld [vmem:[#allocation22 + $0xfc] sm:$0xff]
        %v4136 = vld [vmem:[#allocation22 + $0x104] sm:$0xff]
        %v4137 = vld [vmem:[#allocation22 + $0x10c] sm:$0xff]
        %v4138 = vld [vmem:[#allocation22 + $0x114] sm:$0xf]
        %v4139 = vld [vmem:[#allocation22 + $0x118] sm:$0xff]
        %v4140 = vld [vmem:[#allocation22 + $0x120] sm:$0xff]
        %v4141 = vld [vmem:[#allocation22 + $0x128] sm:$0xff]
        %v4142 = vld [vmem:[#allocation22 + $0x130] sm:$0xf]
        %v4143 = vld [vmem:[#allocation22 + $0x134] sm:$0xff]
        %v4144 = vld [vmem:[#allocation22 + $0x13c] sm:$0xff]
        %v4145 = vld [vmem:[#allocation22 + $0x144] sm:$0xff]
        %v4146 = vld [vmem:[#allocation22 + $0x14c] sm:$0xf]
        %v4147 = vld [vmem:[#allocation22 + $0x150] sm:$0xff]
        %v4148 = vld [vmem:[#allocation22 + $0x158] sm:$0xff]
        %v4149 = vld [vmem:[#allocation22 + $0x160] sm:$0xff]
        %v4150 = vld [vmem:[#allocation22 + $0x168] sm:$0xf]
        %v4151 = vld [vmem:[#allocation22 + $0x16c] sm:$0xff]
        %v4152 = vld [vmem:[#allocation22 + $0x174] sm:$0xff]
        %v4153 = vld [vmem:[#allocation22 + $0x17c] sm:$0xff]
        %v4154 = vld [vmem:[#allocation22 + $0x184] sm:$0xf]
        %v4155 = vld [vmem:[#allocation22 + $0x188] sm:$0xff]
        %v4156 = vld [vmem:[#allocation22 + $0x190] sm:$0xff]
        %v4157 = vld [vmem:[#allocation22 + $0x198] sm:$0xff]
        %v4158 = vld [vmem:[#allocation22 + $0x1a0] sm:$0xf]
        %v4159 = vld [vmem:[#allocation22 + $0x1a4] sm:$0xff]
        %v4160 = vld [vmem:[#allocation22 + $0x1ac] sm:$0xff]
        %v4161 = vld [vmem:[#allocation22 + $0x1b4] sm:$0xff]
        %v4162 = vld [vmem:[#allocation22 + $0x1bc] sm:$0xf]
        %v4163 = vld [vmem:[#allocation22 + $0x1c0] sm:$0xff]
        %v4164 = vld [vmem:[#allocation22 + $0x1c8] sm:$0xff]
        %v4165 = vld [vmem:[#allocation22 + $0x1d0] sm:$0xff]
        %v4166 = vld [vmem:[#allocation22 + $0x1d8] sm:$0xf]
        %v4167 = vld [vmem:[#allocation22 + $0x1dc] sm:$0xff]
        %v4168 = vld [vmem:[#allocation22 + $0x1e4] sm:$0xff]
        %v4169 = vld [vmem:[#allocation22 + $0x1ec] sm:$0xff]
        %v4170 = vld [vmem:[#allocation22 + $0x1f4] sm:$0xf]
        %v4171 = vld [vmem:[#allocation22 + $0x1f8] sm:$0xff]
        %v4172 = vld [vmem:[#allocation22 + $0x200] sm:$0xff]
        %v4173 = vld [vmem:[#allocation22 + $0x208] sm:$0xff]
        %v4174 = vld [vmem:[#allocation22 + $0x210] sm:$0xf]
        %v4175 = vld [vmem:[#allocation22 + $0x214] sm:$0xff]
        %v4176 = vld [vmem:[#allocation22 + $0x21c] sm:$0xff]
        %v4177 = vld [vmem:[#allocation22 + $0x224] sm:$0xff]
        %v4178 = vld [vmem:[#allocation22 + $0x22c] sm:$0xf]
        %v4179 = vld [vmem:[#allocation22 + $0x230] sm:$0xff]
        %v4180 = vld [vmem:[#allocation22 + $0x238] sm:$0xff]
        %v4181 = vld [vmem:[#allocation22 + $0x240] sm:$0xff]
        %v4182 = vld [vmem:[#allocation22 + $0x248] sm:$0xf]
        %v4183 = vld [vmem:[#allocation22 + $0x24c] sm:$0xff]
        %v4184 = vld [vmem:[#allocation22 + $0x254] sm:$0xff]
        %v4185 = vld [vmem:[#allocation22 + $0x25c] sm:$0xff]
        %v4186 = vld [vmem:[#allocation22 + $0x264] sm:$0xf]
        %v4187 = vld [vmem:[#allocation22 + $0x268] sm:$0xff]
        %v4188 = vld [vmem:[#allocation22 + $0x270] sm:$0xff]
        %v4189 = vld [vmem:[#allocation22 + $0x278] sm:$0xff]
        %v4190 = vld [vmem:[#allocation22 + $0x280] sm:$0xf]
        %v4191 = vld [vmem:[#allocation22 + $0x284] sm:$0xff]
        %v4192 = vld [vmem:[#allocation22 + $0x28c] sm:$0xff]
        %v4193 = vld [vmem:[#allocation22 + $0x294] sm:$0xff]
        %v4194 = vld [vmem:[#allocation22 + $0x29c] sm:$0xf]
        %v4195 = vld [vmem:[#allocation22 + $0x2a0] sm:$0xff]
        %v4196 = vld [vmem:[#allocation22 + $0x2a8] sm:$0xff]
        %v4197 = vld [vmem:[#allocation22 + $0x2b0] sm:$0xff]
        %v4198 = vld [vmem:[#allocation22 + $0x2b8] sm:$0xf]
        %v4199 = vld [vmem:[#allocation22 + $0x2bc] sm:$0xff]
        %v4200 = vld [vmem:[#allocation22 + $0x2c4] sm:$0xff]
        %v4201 = vld [vmem:[#allocation22 + $0x2cc] sm:$0xff]
        %v4202 = vld [vmem:[#allocation22 + $0x2d4] sm:$0xf]
        %v4203 = vld [vmem:[#allocation22 + $0x2d8] sm:$0xff]
        %v4204 = vld [vmem:[#allocation22 + $0x2e0] sm:$0xff]
        %v4205 = vld [vmem:[#allocation22 + $0x2e8] sm:$0xff]
        %v4206 = vld [vmem:[#allocation22 + $0x2f0] sm:$0xf]
        %v4207 = vld [vmem:[#allocation22 + $0x2f4] sm:$0xff]
        %v4208 = vld [vmem:[#allocation22 + $0x2fc] sm:$0xff]
        %v4209 = vld [vmem:[#allocation22 + $0x304] sm:$0xff]
        %v4210 = vld [vmem:[#allocation22 + $0x30c] sm:$0xf]
        %v4211 = vld [vmem:[#allocation22 + $0x310] sm:$0xff]
        %v4212 = vld [vmem:[#allocation22 + $0x318] sm:$0xff]
        %v4213 = vld [vmem:[#allocation22 + $0x320] sm:$0xff]
        %v4214 = vld [vmem:[#allocation22 + $0x328] sm:$0xf]
        %v4215 = vld [vmem:[#allocation22 + $0x32c] sm:$0xff]
        %v4216 = vld [vmem:[#allocation22 + $0x334] sm:$0xff]
        %v4217 = vld [vmem:[#allocation22 + $0x33c] sm:$0xff]
        %v4218 = vld [vmem:[#allocation22 + $0x344] sm:$0xf]
        %v4219 = vld [vmem:[#allocation22 + $0x348] sm:$0xff]
        %v4220 = vld [vmem:[#allocation22 + $0x350] sm:$0xff]
        %v4221 = vld [vmem:[#allocation22 + $0x358] sm:$0xff]
        %v4222 = vld [vmem:[#allocation22 + $0x360] sm:$0xf]
        %v4223 = vld [vmem:[#allocation22 + $0x364] sm:$0xff]
        %v4224 = vld [vmem:[#allocation22 + $0x36c] sm:$0xff]
        %v4225 = vld [vmem:[#allocation22 + $0x374] sm:$0xff]
        %v4226 = vld [vmem:[#allocation22 + $0x37c] sm:$0xf]
        %v4227 = vld [vmem:[#allocation22 + $0x380] sm:$0xff]
        %v4228 = vld [vmem:[#allocation22 + $0x388] sm:$0xff]
        %v4229 = vld [vmem:[#allocation22 + $0x390] sm:$0xff]
        %v4230 = vld [vmem:[#allocation22 + $0x398] sm:$0xf]
        %v4231 = vld [vmem:[#allocation22 + $0x39c] sm:$0xff]
        %v4232 = vld [vmem:[#allocation22 + $0x3a4] sm:$0xff]
        %v4233 = vld [vmem:[#allocation22 + $0x3ac] sm:$0xff]
        %v4234 = vld [vmem:[#allocation22 + $0x3b4] sm:$0xf]
        %v4235 = vld [vmem:[#allocation22 + $0x3b8] sm:$0xff]
        %v4236 = vld [vmem:[#allocation22 + $0x3c0] sm:$0xff]
        %v4237 = vld [vmem:[#allocation22 + $0x3c8] sm:$0xff]
        %v4238 = vld [vmem:[#allocation22 + $0x3d0] sm:$0xf]
        %v4239 = vld [vmem:[#allocation22 + $0x3d4] sm:$0xff]
        %v4240 = vld [vmem:[#allocation22 + $0x3dc] sm:$0xff]
        %v4241 = vld [vmem:[#allocation22 + $0x3e4] sm:$0xff]
        %v4242 = vld [vmem:[#allocation22 + $0x3ec] sm:$0xf]
        %v4243 = vld [vmem:[#allocation22 + $0x3f0] sm:$0xff]
        %v4244 = vld [vmem:[#allocation22 + $0x3f8] sm:$0xff]
        %v4245 = vld [vmem:[#allocation22 + $0x400] sm:$0xff]
        %v4246 = vld [vmem:[#allocation22 + $0x408] sm:$0xf]
        %v4247 = vld [vmem:[#allocation22 + $0x40c] sm:$0xff]
        %v4248 = vld [vmem:[#allocation22 + $0x414] sm:$0xff]
        %v4249 = vld [vmem:[#allocation22 + $0x41c] sm:$0xff]
        %v4250 = vld [vmem:[#allocation22 + $0x424] sm:$0xf]
        %v4251 = vld [vmem:[#allocation22 + $0x428] sm:$0xff]
        %v4252 = vld [vmem:[#allocation22 + $0x430] sm:$0xff]
        %v4253 = vld [vmem:[#allocation22 + $0x438] sm:$0xff]
        %v4254 = vld [vmem:[#allocation22 + $0x440] sm:$0xf]
        %v4255 = vld [vmem:[#allocation22 + $0x444] sm:$0xff]
        %v4256 = vld [vmem:[#allocation22 + $0x44c] sm:$0xff]
        %v4257 = vld [vmem:[#allocation22 + $0x454] sm:$0xff]
        %v4258 = vld [vmem:[#allocation22 + $0x45c] sm:$0xf]
        %v4259 = vld [vmem:[#allocation22 + $0x460] sm:$0xff]
        %v4260 = vld [vmem:[#allocation22 + $0x468] sm:$0xff]
        %v4261 = vld [vmem:[#allocation22 + $0x470] sm:$0xff]
        %v4262 = vld [vmem:[#allocation22 + $0x478] sm:$0xf]
        %v4263 = vld [vmem:[#allocation22 + $0x47c] sm:$0xff]
        %v4264 = vld [vmem:[#allocation22 + $0x484] sm:$0xff]
        %v4265 = vld [vmem:[#allocation22 + $0x48c] sm:$0xff]
        %v4266 = vld [vmem:[#allocation22 + $0x494] sm:$0xf]
        %v4267 = vld [vmem:[#allocation22 + $0x498] sm:$0xff]
        %v4268 = vld [vmem:[#allocation22 + $0x4a0] sm:$0xff]
        %v4269 = vld [vmem:[#allocation22 + $0x4a8] sm:$0xff]
        %v4270 = vld [vmem:[#allocation22 + $0x4b0] sm:$0xf]
        %v4271 = vld [vmem:[#allocation22 + $0x4b4] sm:$0xff]
        %v4272 = vld [vmem:[#allocation22 + $0x4bc] sm:$0xff]
        %v4273 = vld [vmem:[#allocation22 + $0x4c4] sm:$0xff]
        %v4274 = vld [vmem:[#allocation22 + $0x4cc] sm:$0xf]
        %v4275 = vld [vmem:[#allocation22 + $0x4d0] sm:$0xff]
        %v4276 = vld [vmem:[#allocation22 + $0x4d8] sm:$0xff]
        %v4277 = vld [vmem:[#allocation22 + $0x4e0] sm:$0xff]
        %v4278 = vld [vmem:[#allocation22 + $0x4e8] sm:$0xf]
        %v4279 = vld [vmem:[#allocation22 + $0x4ec] sm:$0xff]
        %v4280 = vld [vmem:[#allocation22 + $0x4f4] sm:$0xff]
        %v4281 = vld [vmem:[#allocation22 + $0x4fc] sm:$0xff]
        %v4282 = vld [vmem:[#allocation22 + $0x504] sm:$0xf]
        %v4283 = vld [vmem:[#allocation22 + $0x508] sm:$0xff]
        %v4284 = vld [vmem:[#allocation22 + $0x510] sm:$0xff]
        %v4285 = vld [vmem:[#allocation22 + $0x518] sm:$0xff]
        %v4286 = vld [vmem:[#allocation22 + $0x520] sm:$0xf]
        %v4287 = vld [vmem:[#allocation22 + $0x524] sm:$0xff]
        %v4288 = vld [vmem:[#allocation22 + $0x52c] sm:$0xff]
        %v4289 = vld [vmem:[#allocation22 + $0x534] sm:$0xff]
        %v4290 = vld [vmem:[#allocation22 + $0x53c] sm:$0xf]
        %v4291 = vld [vmem:[#allocation22 + $0x540] sm:$0xff]
        %v4292 = vld [vmem:[#allocation22 + $0x548] sm:$0xff]
        %v4293 = vld [vmem:[#allocation22 + $0x550] sm:$0xff]
        %v4294 = vld [vmem:[#allocation22 + $0x558] sm:$0xf]
        %v4295 = vld [vmem:[#allocation22 + $0x55c] sm:$0xff]
        %v4296 = vld [vmem:[#allocation22 + $0x564] sm:$0xff]
        %v4297 = vld [vmem:[#allocation22 + $0x56c] sm:$0xff]
        %v4298 = vld [vmem:[#allocation22 + $0x574] sm:$0xf]
        %v4299 = vld [vmem:[#allocation22 + $0x578] sm:$0xff]
        %v4300 = vld [vmem:[#allocation22 + $0x580] sm:$0xff]
        %v4301 = vld [vmem:[#allocation22 + $0x588] sm:$0xff]
        %v4302 = vld [vmem:[#allocation22 + $0x590] sm:$0xf]
        %v4303 = vld [vmem:[#allocation22 + $0x594] sm:$0xff]
        %v4304 = vld [vmem:[#allocation22 + $0x59c] sm:$0xff]
        %v4305 = vld [vmem:[#allocation22 + $0x5a4] sm:$0xff]
        %v4306 = vld [vmem:[#allocation22 + $0x5ac] sm:$0xf]
        %v4307 = vld [vmem:[#allocation22 + $0x5b0] sm:$0xff]
        %v4308 = vld [vmem:[#allocation22 + $0x5b8] sm:$0xff]
        %v4309 = vld [vmem:[#allocation22 + $0x5c0] sm:$0xff]
        %v4310 = vld [vmem:[#allocation22 + $0x5c8] sm:$0xf]
        %v4311 = vld [vmem:[#allocation22 + $0x5cc] sm:$0xff]
        %v4312 = vld [vmem:[#allocation22 + $0x5d4] sm:$0xff]
        %v4313 = vld [vmem:[#allocation22 + $0x5dc] sm:$0xff]
        %v4314 = vld [vmem:[#allocation22 + $0x5e4] sm:$0xf]
        %v4315 = vld [vmem:[#allocation22 + $0x5e8] sm:$0xff]
        %v4316 = vld [vmem:[#allocation22 + $0x5f0] sm:$0xff]
        %v4317 = vld [vmem:[#allocation22 + $0x5f8] sm:$0xff]
        %v4318 = vld [vmem:[#allocation22 + $0x600] sm:$0xf]
        %v4319 = vld [vmem:[#allocation22 + $0x604] sm:$0xff]
        %v4320 = vld [vmem:[#allocation22 + $0x60c] sm:$0xff]
        %v4321 = vld [vmem:[#allocation22 + $0x614] sm:$0xff]
        %v4322 = vld [vmem:[#allocation22 + $0x61c] sm:$0xf]
        %v4323 = vld [vmem:[#allocation22 + $0x620] sm:$0xff]
        %v4324 = vld [vmem:[#allocation22 + $0x628] sm:$0xff]
        %v4325 = vld [vmem:[#allocation22 + $0x630] sm:$0xff]
        %v4326 = vld [vmem:[#allocation22 + $0x638] sm:$0xf]
        %v4327 = vld [vmem:[#allocation22 + $0x63c] sm:$0xff]
        %v4328 = vld [vmem:[#allocation22 + $0x644] sm:$0xff]
        %v4329 = vld [vmem:[#allocation22 + $0x64c] sm:$0xff]
        %v4330 = vld [vmem:[#allocation22 + $0x654] sm:$0xf]
        %v4331 = vld [vmem:[#allocation22 + $0x658] sm:$0xff]
        %v4332 = vld [vmem:[#allocation22 + $0x660] sm:$0xff]
        %v4333 = vld [vmem:[#allocation22 + $0x668] sm:$0xff]
        %v4334 = vld [vmem:[#allocation22 + $0x670] sm:$0xf]
        %v4335 = vld [vmem:[#allocation22 + $0x674] sm:$0xff]
        %v4336 = vld [vmem:[#allocation22 + $0x67c] sm:$0xff]
        %v4337 = vld [vmem:[#allocation22 + $0x684] sm:$0xff]
        %v4338 = vld [vmem:[#allocation22 + $0x68c] sm:$0xf]
        %v4339 = vld [vmem:[#allocation22 + $0x690] sm:$0xff]
        %v4340 = vld [vmem:[#allocation22 + $0x698] sm:$0xff]
        %v4341 = vld [vmem:[#allocation22 + $0x6a0] sm:$0xff]
        %v4342 = vld [vmem:[#allocation22 + $0x6a8] sm:$0xf]
        %v4343 = vld [vmem:[#allocation22 + $0x6ac] sm:$0xff]
        %v4344 = vld [vmem:[#allocation22 + $0x6b4] sm:$0xff]
        %v4345 = vld [vmem:[#allocation22 + $0x6bc] sm:$0xff]
        %v4346 = vld [vmem:[#allocation22 + $0x6c4] sm:$0xf]
        %v4347 = vld [vmem:[#allocation22 + $0x6c8] sm:$0xff]
        %v4348 = vld [vmem:[#allocation22 + $0x6d0] sm:$0xff]
        %v4349 = vld [vmem:[#allocation22 + $0x6d8] sm:$0xff]
        %v4350 = vld [vmem:[#allocation22 + $0x6e0] sm:$0xf]
        %v4351 = vld [vmem:[#allocation22 + $0x6e4] sm:$0xff]
        %v4352 = vld [vmem:[#allocation22 + $0x6ec] sm:$0xff]
        %v4353 = vld [vmem:[#allocation22 + $0x6f4] sm:$0xff]
        %v4354 = vld [vmem:[#allocation22 + $0x6fc] sm:$0xf]
        %v4355 = vld [vmem:[%s16] sm:$0xff]
        %v4357 = vperm.slane %v4355, 0
        %v4358 = vperm.slane %v4355, 1
        %v4359 = vperm.slane %v4355, 2
        %v4360 = vperm.slane %v4355, 3
        %v4361 = vperm.slane %v4355, 4
        %v4362 = vperm.slane %v4355, 5
        %v4363 = vperm.slane %v4355, 6
        %v4627 = vunpack.c.l.b16 %v4099
        %v4628 = vunpack.c.h.b16 %v4099
        %v4629 = vunpack.c.l.b16 %v4100
        %v4630 = vunpack.c.h.b16 %v4100
        %v4631 = vunpack.c.l.b16 %v4101
        %v4632 = vunpack.c.h.b16 %v4101
        %v4633 = vunpack.c.l.b16 %v4102
        %v4634 = vunpack.c.l.b16 %v4103
        %v4635 = vunpack.c.h.b16 %v4103
        %v4636 = vunpack.c.l.b16 %v4104
        %v4637 = vunpack.c.h.b16 %v4104
        %v4638 = vunpack.c.l.b16 %v4105
        %v4639 = vunpack.c.h.b16 %v4105
        %v4640 = vunpack.c.l.b16 %v4106
        %v4641 = vunpack.c.l.b16 %v4107
        %v4642 = vunpack.c.h.b16 %v4107
        %v4643 = vunpack.c.l.b16 %v4108
        %v4644 = vunpack.c.h.b16 %v4108
        %v4645 = vunpack.c.l.b16 %v4109
        %v4646 = vunpack.c.h.b16 %v4109
        %v4647 = vunpack.c.l.b16 %v4110
        %v4648 = vunpack.c.l.b16 %v4111
        %v4649 = vunpack.c.h.b16 %v4111
        %v4650 = vunpack.c.l.b16 %v4112
        %v4651 = vunpack.c.h.b16 %v4112
        %v4652 = vunpack.c.l.b16 %v4113
        %v4653 = vunpack.c.h.b16 %v4113
        %v4654 = vunpack.c.l.b16 %v4114
        %v4655 = vunpack.c.l.b16 %v4115
        %v4656 = vunpack.c.h.b16 %v4115
        %v4657 = vunpack.c.l.b16 %v4116
        %v4658 = vunpack.c.h.b16 %v4116
        %v4659 = vunpack.c.l.b16 %v4117
        %v4660 = vunpack.c.h.b16 %v4117
        %v4661 = vunpack.c.l.b16 %v4118
        %v4662 = vunpack.c.l.b16 %v4119
        %v4663 = vunpack.c.h.b16 %v4119
        %v4664 = vunpack.c.l.b16 %v4120
        %v4665 = vunpack.c.h.b16 %v4120
        %v4666 = vunpack.c.l.b16 %v4121
        %v4667 = vunpack.c.h.b16 %v4121
        %v4668 = vunpack.c.l.b16 %v4122
        %v4669 = vunpack.c.l.b16 %v4123
        %v4670 = vunpack.c.h.b16 %v4123
        %v4671 = vunpack.c.l.b16 %v4124
        %v4672 = vunpack.c.h.b16 %v4124
        %v4673 = vunpack.c.l.b16 %v4125
        %v4674 = vunpack.c.h.b16 %v4125
        %v4675 = vunpack.c.l.b16 %v4126
        %v4676 = vunpack.c.l.b16 %v4127
        %v4677 = vunpack.c.h.b16 %v4127
        %v4678 = vunpack.c.l.b16 %v4128
        %v4679 = vunpack.c.h.b16 %v4128
        %v4680 = vunpack.c.l.b16 %v4129
        %v4681 = vunpack.c.h.b16 %v4129
        %v4682 = vunpack.c.l.b16 %v4130
        %v4683 = vunpack.c.l.b16 %v4131
        %v4684 = vunpack.c.h.b16 %v4131
        %v4685 = vunpack.c.l.b16 %v4132
        %v4686 = vunpack.c.h.b16 %v4132
        %v4687 = vunpack.c.l.b16 %v4133
        %v4688 = vunpack.c.h.b16 %v4133
        %v4689 = vunpack.c.l.b16 %v4134
        %v4690 = vunpack.c.l.b16 %v4135
        %v4691 = vunpack.c.h.b16 %v4135
        %v4692 = vunpack.c.l.b16 %v4136
        %v4693 = vunpack.c.h.b16 %v4136
        %v4694 = vunpack.c.l.b16 %v4137
        %v4695 = vunpack.c.h.b16 %v4137
        %v4696 = vunpack.c.l.b16 %v4138
        %v4697 = vunpack.c.l.b16 %v4139
        %v4698 = vunpack.c.h.b16 %v4139
        %v4699 = vunpack.c.l.b16 %v4140
        %v4700 = vunpack.c.h.b16 %v4140
        %v4701 = vunpack.c.l.b16 %v4141
        %v4702 = vunpack.c.h.b16 %v4141
        %v4703 = vunpack.c.l.b16 %v4142
        %v4704 = vunpack.c.l.b16 %v4143
        %v4705 = vunpack.c.h.b16 %v4143
        %v4706 = vunpack.c.l.b16 %v4144
        %v4707 = vunpack.c.h.b16 %v4144
        %v4708 = vunpack.c.l.b16 %v4145
        %v4709 = vunpack.c.h.b16 %v4145
        %v4710 = vunpack.c.l.b16 %v4146
        %v4711 = vunpack.c.l.b16 %v4147
        %v4712 = vunpack.c.h.b16 %v4147
        %v4713 = vunpack.c.l.b16 %v4148
        %v4714 = vunpack.c.h.b16 %v4148
        %v4715 = vunpack.c.l.b16 %v4149
        %v4716 = vunpack.c.h.b16 %v4149
        %v4717 = vunpack.c.l.b16 %v4150
        %v4718 = vunpack.c.l.b16 %v4151
        %v4719 = vunpack.c.h.b16 %v4151
        %v4720 = vunpack.c.l.b16 %v4152
        %v4721 = vunpack.c.h.b16 %v4152
        %v4722 = vunpack.c.l.b16 %v4153
        %v4723 = vunpack.c.h.b16 %v4153
        %v4724 = vunpack.c.l.b16 %v4154
        %v4725 = vunpack.c.l.b16 %v4155
        %v4726 = vunpack.c.h.b16 %v4155
        %v4727 = vunpack.c.l.b16 %v4156
        %v4728 = vunpack.c.h.b16 %v4156
        %v4729 = vunpack.c.l.b16 %v4157
        %v4730 = vunpack.c.h.b16 %v4157
        %v4731 = vunpack.c.l.b16 %v4158
        %v4732 = vunpack.c.l.b16 %v4159
        %v4733 = vunpack.c.h.b16 %v4159
        %v4734 = vunpack.c.l.b16 %v4160
        %v4735 = vunpack.c.h.b16 %v4160
        %v4736 = vunpack.c.l.b16 %v4161
        %v4737 = vunpack.c.h.b16 %v4161
        %v4738 = vunpack.c.l.b16 %v4162
        %v4739 = vunpack.c.l.b16 %v4163
        %v4740 = vunpack.c.h.b16 %v4163
        %v4741 = vunpack.c.l.b16 %v4164
        %v4742 = vunpack.c.h.b16 %v4164
        %v4743 = vunpack.c.l.b16 %v4165
        %v4744 = vunpack.c.h.b16 %v4165
        %v4745 = vunpack.c.l.b16 %v4166
        %v4746 = vunpack.c.l.b16 %v4167
        %v4747 = vunpack.c.h.b16 %v4167
        %v4748 = vunpack.c.l.b16 %v4168
        %v4749 = vunpack.c.h.b16 %v4168
        %v4750 = vunpack.c.l.b16 %v4169
        %v4751 = vunpack.c.h.b16 %v4169
        %v4752 = vunpack.c.l.b16 %v4170
        %v4753 = vunpack.c.l.b16 %v4171
        %v4754 = vunpack.c.h.b16 %v4171
        %v4755 = vunpack.c.l.b16 %v4172
        %v4756 = vunpack.c.h.b16 %v4172
        %v4757 = vunpack.c.l.b16 %v4173
        %v4758 = vunpack.c.h.b16 %v4173
        %v4759 = vunpack.c.l.b16 %v4174
        %v4760 = vunpack.c.l.b16 %v4175
        %v4761 = vunpack.c.h.b16 %v4175
        %v4762 = vunpack.c.l.b16 %v4176
        %v4763 = vunpack.c.h.b16 %v4176
        %v4764 = vunpack.c.l.b16 %v4177
        %v4765 = vunpack.c.h.b16 %v4177
        %v4766 = vunpack.c.l.b16 %v4178
        %v4767 = vunpack.c.l.b16 %v4179
        %v4768 = vunpack.c.h.b16 %v4179
        %v4769 = vunpack.c.l.b16 %v4180
        %v4770 = vunpack.c.h.b16 %v4180
        %v4771 = vunpack.c.l.b16 %v4181
        %v4772 = vunpack.c.h.b16 %v4181
        %v4773 = vunpack.c.l.b16 %v4182
        %v4774 = vunpack.c.l.b16 %v4183
        %v4775 = vunpack.c.h.b16 %v4183
        %v4776 = vunpack.c.l.b16 %v4184
        %v4777 = vunpack.c.h.b16 %v4184
        %v4778 = vunpack.c.l.b16 %v4185
        %v4779 = vunpack.c.h.b16 %v4185
        %v4780 = vunpack.c.l.b16 %v4186
        %v4781 = vunpack.c.l.b16 %v4187
        %v4782 = vunpack.c.h.b16 %v4187
        %v4783 = vunpack.c.l.b16 %v4188
        %v4784 = vunpack.c.h.b16 %v4188
        %v4785 = vunpack.c.l.b16 %v4189
        %v4786 = vunpack.c.h.b16 %v4189
        %v4787 = vunpack.c.l.b16 %v4190
        %v4788 = vunpack.c.l.b16 %v4191
        %v4789 = vunpack.c.h.b16 %v4191
        %v4790 = vunpack.c.l.b16 %v4192
        %v4791 = vunpack.c.h.b16 %v4192
        %v4792 = vunpack.c.l.b16 %v4193
        %v4793 = vunpack.c.h.b16 %v4193
        %v4794 = vunpack.c.l.b16 %v4194
        %v4795 = vunpack.c.l.b16 %v4195
        %v4796 = vunpack.c.h.b16 %v4195
        %v4797 = vunpack.c.l.b16 %v4196
        %v4798 = vunpack.c.h.b16 %v4196
        %v4799 = vunpack.c.l.b16 %v4197
        %v4800 = vunpack.c.h.b16 %v4197
        %v4801 = vunpack.c.l.b16 %v4198
        %v4802 = vunpack.c.l.b16 %v4199
        %v4803 = vunpack.c.h.b16 %v4199
        %v4804 = vunpack.c.l.b16 %v4200
        %v4805 = vunpack.c.h.b16 %v4200
        %v4806 = vunpack.c.l.b16 %v4201
        %v4807 = vunpack.c.h.b16 %v4201
        %v4808 = vunpack.c.l.b16 %v4202
        %v4809 = vunpack.c.l.b16 %v4203
        %v4810 = vunpack.c.h.b16 %v4203
        %v4811 = vunpack.c.l.b16 %v4204
        %v4812 = vunpack.c.h.b16 %v4204
        %v4813 = vunpack.c.l.b16 %v4205
        %v4814 = vunpack.c.h.b16 %v4205
        %v4815 = vunpack.c.l.b16 %v4206
        %v4816 = vunpack.c.l.b16 %v4207
        %v4817 = vunpack.c.h.b16 %v4207
        %v4818 = vunpack.c.l.b16 %v4208
        %v4819 = vunpack.c.h.b16 %v4208
        %v4820 = vunpack.c.l.b16 %v4209
        %v4821 = vunpack.c.h.b16 %v4209
        %v4822 = vunpack.c.l.b16 %v4210
        %v4823 = vunpack.c.l.b16 %v4211
        %v4824 = vunpack.c.h.b16 %v4211
        %v4825 = vunpack.c.l.b16 %v4212
        %v4826 = vunpack.c.h.b16 %v4212
        %v4827 = vunpack.c.l.b16 %v4213
        %v4828 = vunpack.c.h.b16 %v4213
        %v4829 = vunpack.c.l.b16 %v4214
        %v4830 = vunpack.c.l.b16 %v4215
        %v4831 = vunpack.c.h.b16 %v4215
        %v4832 = vunpack.c.l.b16 %v4216
        %v4833 = vunpack.c.h.b16 %v4216
        %v4834 = vunpack.c.l.b16 %v4217
        %v4835 = vunpack.c.h.b16 %v4217
        %v4836 = vunpack.c.l.b16 %v4218
        %v4837 = vunpack.c.l.b16 %v4219
        %v4838 = vunpack.c.h.b16 %v4219
        %v4839 = vunpack.c.l.b16 %v4220
        %v4840 = vunpack.c.h.b16 %v4220
        %v4841 = vunpack.c.l.b16 %v4221
        %v4842 = vunpack.c.h.b16 %v4221
        %v4843 = vunpack.c.l.b16 %v4222
        %v4844 = vunpack.c.l.b16 %v4223
        %v4845 = vunpack.c.h.b16 %v4223
        %v4846 = vunpack.c.l.b16 %v4224
        %v4847 = vunpack.c.h.b16 %v4224
        %v4848 = vunpack.c.l.b16 %v4225
        %v4849 = vunpack.c.h.b16 %v4225
        %v4850 = vunpack.c.l.b16 %v4226
        %v4851 = vunpack.c.l.b16 %v4227
        %v4852 = vunpack.c.h.b16 %v4227
        %v4853 = vunpack.c.l.b16 %v4228
        %v4854 = vunpack.c.h.b16 %v4228
        %v4855 = vunpack.c.l.b16 %v4229
        %v4856 = vunpack.c.h.b16 %v4229
        %v4857 = vunpack.c.l.b16 %v4230
        %v4858 = vunpack.c.l.b16 %v4231
        %v4859 = vunpack.c.h.b16 %v4231
        %v4860 = vunpack.c.l.b16 %v4232
        %v4861 = vunpack.c.h.b16 %v4232
        %v4862 = vunpack.c.l.b16 %v4233
        %v4863 = vunpack.c.h.b16 %v4233
        %v4864 = vunpack.c.l.b16 %v4234
        %v4865 = vunpack.c.l.b16 %v4235
        %v4866 = vunpack.c.h.b16 %v4235
        %v4867 = vunpack.c.l.b16 %v4236
        %v4868 = vunpack.c.h.b16 %v4236
        %v4869 = vunpack.c.l.b16 %v4237
        %v4870 = vunpack.c.h.b16 %v4237
        %v4871 = vunpack.c.l.b16 %v4238
        %v4872 = vunpack.c.l.b16 %v4239
        %v4873 = vunpack.c.h.b16 %v4239
        %v4874 = vunpack.c.l.b16 %v4240
        %v4875 = vunpack.c.h.b16 %v4240
        %v4876 = vunpack.c.l.b16 %v4241
        %v4877 = vunpack.c.h.b16 %v4241
        %v4878 = vunpack.c.l.b16 %v4242
        %v4879 = vunpack.c.l.b16 %v4243
        %v4880 = vunpack.c.h.b16 %v4243
        %v4881 = vunpack.c.l.b16 %v4244
        %v4882 = vunpack.c.h.b16 %v4244
        %v4883 = vunpack.c.l.b16 %v4245
        %v4884 = vunpack.c.h.b16 %v4245
        %v4885 = vunpack.c.l.b16 %v4246
        %v4886 = vunpack.c.l.b16 %v4247
        %v4887 = vunpack.c.h.b16 %v4247
        %v4888 = vunpack.c.l.b16 %v4248
        %v4889 = vunpack.c.h.b16 %v4248
        %v4890 = vunpack.c.l.b16 %v4249
        %v4891 = vunpack.c.h.b16 %v4249
        %v4892 = vunpack.c.l.b16 %v4250
        %v4893 = vunpack.c.l.b16 %v4251
        %v4894 = vunpack.c.h.b16 %v4251
        %v4895 = vunpack.c.l.b16 %v4252
        %v4896 = vunpack.c.h.b16 %v4252
        %v4897 = vunpack.c.l.b16 %v4253
        %v4898 = vunpack.c.h.b16 %v4253
        %v4899 = vunpack.c.l.b16 %v4254
        %v4900 = vunpack.c.l.b16 %v4255
        %v4901 = vunpack.c.h.b16 %v4255
        %v4902 = vunpack.c.l.b16 %v4256
        %v4903 = vunpack.c.h.b16 %v4256
        %v4904 = vunpack.c.l.b16 %v4257
        %v4905 = vunpack.c.h.b16 %v4257
        %v4906 = vunpack.c.l.b16 %v4258
        %v4907 = vunpack.c.l.b16 %v4259
        %v4908 = vunpack.c.h.b16 %v4259
        %v4909 = vunpack.c.l.b16 %v4260
        %v4910 = vunpack.c.h.b16 %v4260
        %v4911 = vunpack.c.l.b16 %v4261
        %v4912 = vunpack.c.h.b16 %v4261
        %v4913 = vunpack.c.l.b16 %v4262
        %v4914 = vunpack.c.l.b16 %v4263
        %v4915 = vunpack.c.h.b16 %v4263
        %v4916 = vunpack.c.l.b16 %v4264
        %v4917 = vunpack.c.h.b16 %v4264
        %v4918 = vunpack.c.l.b16 %v4265
        %v4919 = vunpack.c.h.b16 %v4265
        %v4920 = vunpack.c.l.b16 %v4266
        %v4921 = vunpack.c.l.b16 %v4267
        %v4922 = vunpack.c.h.b16 %v4267
        %v4923 = vunpack.c.l.b16 %v4268
        %v4924 = vunpack.c.h.b16 %v4268
        %v4925 = vunpack.c.l.b16 %v4269
        %v4926 = vunpack.c.h.b16 %v4269
        %v4927 = vunpack.c.l.b16 %v4270
        %v4928 = vunpack.c.l.b16 %v4271
        %v4929 = vunpack.c.h.b16 %v4271
        %v4930 = vunpack.c.l.b16 %v4272
        %v4931 = vunpack.c.h.b16 %v4272
        %v4932 = vunpack.c.l.b16 %v4273
        %v4933 = vunpack.c.h.b16 %v4273
        %v4934 = vunpack.c.l.b16 %v4274
        %v4935 = vunpack.c.l.b16 %v4275
        %v4936 = vunpack.c.h.b16 %v4275
        %v4937 = vunpack.c.l.b16 %v4276
        %v4938 = vunpack.c.h.b16 %v4276
        %v4939 = vunpack.c.l.b16 %v4277
        %v4940 = vunpack.c.h.b16 %v4277
        %v4941 = vunpack.c.l.b16 %v4278
        %v4942 = vunpack.c.l.b16 %v4279
        %v4943 = vunpack.c.h.b16 %v4279
        %v4944 = vunpack.c.l.b16 %v4280
        %v4945 = vunpack.c.h.b16 %v4280
        %v4946 = vunpack.c.l.b16 %v4281
        %v4947 = vunpack.c.h.b16 %v4281
        %v4948 = vunpack.c.l.b16 %v4282
        %v4949 = vunpack.c.l.b16 %v4283
        %v4950 = vunpack.c.h.b16 %v4283
        %v4951 = vunpack.c.l.b16 %v4284
        %v4952 = vunpack.c.h.b16 %v4284
        %v4953 = vunpack.c.l.b16 %v4285
        %v4954 = vunpack.c.h.b16 %v4285
        %v4955 = vunpack.c.l.b16 %v4286
        %v4956 = vunpack.c.l.b16 %v4287
        %v4957 = vunpack.c.h.b16 %v4287
        %v4958 = vunpack.c.l.b16 %v4288
        %v4959 = vunpack.c.h.b16 %v4288
        %v4960 = vunpack.c.l.b16 %v4289
        %v4961 = vunpack.c.h.b16 %v4289
        %v4962 = vunpack.c.l.b16 %v4290
        %v4963 = vunpack.c.l.b16 %v4291
        %v4964 = vunpack.c.h.b16 %v4291
        %v4965 = vunpack.c.l.b16 %v4292
        %v4966 = vunpack.c.h.b16 %v4292
        %v4967 = vunpack.c.l.b16 %v4293
        %v4968 = vunpack.c.h.b16 %v4293
        %v4969 = vunpack.c.l.b16 %v4294
        %v4970 = vunpack.c.l.b16 %v4295
        %v4971 = vunpack.c.h.b16 %v4295
        %v4972 = vunpack.c.l.b16 %v4296
        %v4973 = vunpack.c.h.b16 %v4296
        %v4974 = vunpack.c.l.b16 %v4297
        %v4975 = vunpack.c.h.b16 %v4297
        %v4976 = vunpack.c.l.b16 %v4298
        %v4977 = vunpack.c.l.b16 %v4299
        %v4978 = vunpack.c.h.b16 %v4299
        %v4979 = vunpack.c.l.b16 %v4300
        %v4980 = vunpack.c.h.b16 %v4300
        %v4981 = vunpack.c.l.b16 %v4301
        %v4982 = vunpack.c.h.b16 %v4301
        %v4983 = vunpack.c.l.b16 %v4302
        %v4984 = vunpack.c.l.b16 %v4303
        %v4985 = vunpack.c.h.b16 %v4303
        %v4986 = vunpack.c.l.b16 %v4304
        %v4987 = vunpack.c.h.b16 %v4304
        %v4988 = vunpack.c.l.b16 %v4305
        %v4989 = vunpack.c.h.b16 %v4305
        %v4990 = vunpack.c.l.b16 %v4306
        %v4991 = vunpack.c.l.b16 %v4307
        %v4992 = vunpack.c.h.b16 %v4307
        %v4993 = vunpack.c.l.b16 %v4308
        %v4994 = vunpack.c.h.b16 %v4308
        %v4995 = vunpack.c.l.b16 %v4309
        %v4996 = vunpack.c.h.b16 %v4309
        %v4997 = vunpack.c.l.b16 %v4310
        %v4998 = vunpack.c.l.b16 %v4311
        %v4999 = vunpack.c.h.b16 %v4311
        %v5000 = vunpack.c.l.b16 %v4312
        %v5001 = vunpack.c.h.b16 %v4312
        %v5002 = vunpack.c.l.b16 %v4313
        %v5003 = vunpack.c.h.b16 %v4313
        %v5004 = vunpack.c.l.b16 %v4314
        %v5005 = vunpack.c.l.b16 %v4315
        %v5006 = vunpack.c.h.b16 %v4315
        %v5007 = vunpack.c.l.b16 %v4316
        %v5008 = vunpack.c.h.b16 %v4316
        %v5009 = vunpack.c.l.b16 %v4317
        %v5010 = vunpack.c.h.b16 %v4317
        %v5011 = vunpack.c.l.b16 %v4318
        %v5012 = vunpack.c.l.b16 %v4319
        %v5013 = vunpack.c.h.b16 %v4319
        %v5014 = vunpack.c.l.b16 %v4320
        %v5015 = vunpack.c.h.b16 %v4320
        %v5016 = vunpack.c.l.b16 %v4321
        %v5017 = vunpack.c.h.b16 %v4321
        %v5018 = vunpack.c.l.b16 %v4322
        %v5019 = vunpack.c.l.b16 %v4323
        %v5020 = vunpack.c.h.b16 %v4323
        %v5021 = vunpack.c.l.b16 %v4324
        %v5022 = vunpack.c.h.b16 %v4324
        %v5023 = vunpack.c.l.b16 %v4325
        %v5024 = vunpack.c.h.b16 %v4325
        %v5025 = vunpack.c.l.b16 %v4326
        %v5026 = vunpack.c.l.b16 %v4327
        %v5027 = vunpack.c.h.b16 %v4327
        %v5028 = vunpack.c.l.b16 %v4328
        %v5029 = vunpack.c.h.b16 %v4328
        %v5030 = vunpack.c.l.b16 %v4329
        %v5031 = vunpack.c.h.b16 %v4329
        %v5032 = vunpack.c.l.b16 %v4330
        %v5033 = vunpack.c.l.b16 %v4331
        %v5034 = vunpack.c.h.b16 %v4331
        %v5035 = vunpack.c.l.b16 %v4332
        %v5036 = vunpack.c.h.b16 %v4332
        %v5037 = vunpack.c.l.b16 %v4333
        %v5038 = vunpack.c.h.b16 %v4333
        %v5039 = vunpack.c.l.b16 %v4334
        %v5040 = vunpack.c.l.b16 %v4335
        %v5041 = vunpack.c.h.b16 %v4335
        %v5042 = vunpack.c.l.b16 %v4336
        %v5043 = vunpack.c.h.b16 %v4336
        %v5044 = vunpack.c.l.b16 %v4337
        %v5045 = vunpack.c.h.b16 %v4337
        %v5046 = vunpack.c.l.b16 %v4338
        %v5047 = vunpack.c.l.b16 %v4339
        %v5048 = vunpack.c.h.b16 %v4339
        %v5049 = vunpack.c.l.b16 %v4340
        %v5050 = vunpack.c.h.b16 %v4340
        %v5051 = vunpack.c.l.b16 %v4341
        %v5052 = vunpack.c.h.b16 %v4341
        %v5053 = vunpack.c.l.b16 %v4342
        %v5054 = vunpack.c.l.b16 %v4343
        %v5055 = vunpack.c.h.b16 %v4343
        %v5056 = vunpack.c.l.b16 %v4344
        %v5057 = vunpack.c.h.b16 %v4344
        %v5058 = vunpack.c.l.b16 %v4345
        %v5059 = vunpack.c.h.b16 %v4345
        %v5060 = vunpack.c.l.b16 %v4346
        %v5061 = vunpack.c.l.b16 %v4347
        %v5062 = vunpack.c.h.b16 %v4347
        %v5063 = vunpack.c.l.b16 %v4348
        %v5064 = vunpack.c.h.b16 %v4348
        %v5065 = vunpack.c.l.b16 %v4349
        %v5066 = vunpack.c.h.b16 %v4349
        %v5067 = vunpack.c.l.b16 %v4350
        %v5068 = vunpack.c.l.b16 %v4351
        %v5069 = vunpack.c.h.b16 %v4351
        %v5070 = vunpack.c.l.b16 %v4352
        %v5071 = vunpack.c.h.b16 %v4352
        %v5072 = vunpack.c.l.b16 %v4353
        %v5073 = vunpack.c.h.b16 %v4353
        %v5074 = vunpack.c.l.b16 %v4354
        %v5075 = vpack.c.b16 %v4634, %v4627
        %v5076 = vpack.c.b16 %v4635, %v4628
        %v5077 = vpack.c.b16 %v4636, %v4629
        %v5078 = vpack.c.b16 %v4637, %v4630
        %v5079 = vpack.c.b16 %v4638, %v4631
        %v5080 = vpack.c.b16 %v4639, %v4632
        %v5081 = vpack.c.b16 %v4640, %v4633
        %v5082 = vpack.c.b16 %v4648, %v4641
        %v5083 = vpack.c.b16 %v4649, %v4642
        %v5084 = vpack.c.b16 %v4650, %v4643
        %v5085 = vpack.c.b16 %v4651, %v4644
        %v5086 = vpack.c.b16 %v4652, %v4645
        %v5087 = vpack.c.b16 %v4653, %v4646
        %v5088 = vpack.c.b16 %v4654, %v4647
        %v5089 = vpack.c.b16 %v4662, %v4655
        %v5090 = vpack.c.b16 %v4663, %v4656
        %v5091 = vpack.c.b16 %v4664, %v4657
        %v5092 = vpack.c.b16 %v4665, %v4658
        %v5093 = vpack.c.b16 %v4666, %v4659
        %v5094 = vpack.c.b16 %v4667, %v4660
        %v5095 = vpack.c.b16 %v4668, %v4661
        %v5096 = vpack.c.b16 %v4676, %v4669
        %v5097 = vpack.c.b16 %v4677, %v4670
        %v5098 = vpack.c.b16 %v4678, %v4671
        %v5099 = vpack.c.b16 %v4679, %v4672
        %v5100 = vpack.c.b16 %v4680, %v4673
        %v5101 = vpack.c.b16 %v4681, %v4674
        %v5102 = vpack.c.b16 %v4682, %v4675
        %v5103 = vpack.c.b16 %v4690, %v4683
        %v5104 = vpack.c.b16 %v4691, %v4684
        %v5105 = vpack.c.b16 %v4692, %v4685
        %v5106 = vpack.c.b16 %v4693, %v4686
        %v5107 = vpack.c.b16 %v4694, %v4687
        %v5108 = vpack.c.b16 %v4695, %v4688
        %v5109 = vpack.c.b16 %v4696, %v4689
        %v5110 = vpack.c.b16 %v4704, %v4697
        %v5111 = vpack.c.b16 %v4705, %v4698
        %v5112 = vpack.c.b16 %v4706, %v4699
        %v5113 = vpack.c.b16 %v4707, %v4700
        %v5114 = vpack.c.b16 %v4708, %v4701
        %v5115 = vpack.c.b16 %v4709, %v4702
        %v5116 = vpack.c.b16 %v4710, %v4703
        %v5117 = vpack.c.b16 %v4718, %v4711
        %v5118 = vpack.c.b16 %v4719, %v4712
        %v5119 = vpack.c.b16 %v4720, %v4713
        %v5120 = vpack.c.b16 %v4721, %v4714
        %v5121 = vpack.c.b16 %v4722, %v4715
        %v5122 = vpack.c.b16 %v4723, %v4716
        %v5123 = vpack.c.b16 %v4724, %v4717
        %v5124 = vpack.c.b16 %v4732, %v4725
        %v5125 = vpack.c.b16 %v4733, %v4726
        %v5126 = vpack.c.b16 %v4734, %v4727
        %v5127 = vpack.c.b16 %v4735, %v4728
        %v5128 = vpack.c.b16 %v4736, %v4729
        %v5129 = vpack.c.b16 %v4737, %v4730
        %v5130 = vpack.c.b16 %v4738, %v4731
        %v5131 = vpack.c.b16 %v4746, %v4739
        %v5132 = vpack.c.b16 %v4747, %v4740
        %v5133 = vpack.c.b16 %v4748, %v4741
        %v5134 = vpack.c.b16 %v4749, %v4742
        %v5135 = vpack.c.b16 %v4750, %v4743
        %v5136 = vpack.c.b16 %v4751, %v4744
        %v5137 = vpack.c.b16 %v4752, %v4745
        %v5138 = vpack.c.b16 %v4760, %v4753
        %v5139 = vpack.c.b16 %v4761, %v4754
        %v5140 = vpack.c.b16 %v4762, %v4755
        %v5141 = vpack.c.b16 %v4763, %v4756
        %v5142 = vpack.c.b16 %v4764, %v4757
        %v5143 = vpack.c.b16 %v4765, %v4758
        %v5144 = vpack.c.b16 %v4766, %v4759
        %v5145 = vpack.c.b16 %v4774, %v4767
        %v5146 = vpack.c.b16 %v4775, %v4768
        %v5147 = vpack.c.b16 %v4776, %v4769
        %v5148 = vpack.c.b16 %v4777, %v4770
        %v5149 = vpack.c.b16 %v4778, %v4771
        %v5150 = vpack.c.b16 %v4779, %v4772
        %v5151 = vpack.c.b16 %v4780, %v4773
        %v5152 = vpack.c.b16 %v4788, %v4781
        %v5153 = vpack.c.b16 %v4789, %v4782
        %v5154 = vpack.c.b16 %v4790, %v4783
        %v5155 = vpack.c.b16 %v4791, %v4784
        %v5156 = vpack.c.b16 %v4792, %v4785
        %v5157 = vpack.c.b16 %v4793, %v4786
        %v5158 = vpack.c.b16 %v4794, %v4787
        %v5159 = vpack.c.b16 %v4802, %v4795
        %v5160 = vpack.c.b16 %v4803, %v4796
        %v5161 = vpack.c.b16 %v4804, %v4797
        %v5162 = vpack.c.b16 %v4805, %v4798
        %v5163 = vpack.c.b16 %v4806, %v4799
        %v5164 = vpack.c.b16 %v4807, %v4800
        %v5165 = vpack.c.b16 %v4808, %v4801
        %v5166 = vpack.c.b16 %v4816, %v4809
        %v5167 = vpack.c.b16 %v4817, %v4810
        %v5168 = vpack.c.b16 %v4818, %v4811
        %v5169 = vpack.c.b16 %v4819, %v4812
        %v5170 = vpack.c.b16 %v4820, %v4813
        %v5171 = vpack.c.b16 %v4821, %v4814
        %v5172 = vpack.c.b16 %v4822, %v4815
        %v5173 = vpack.c.b16 %v4830, %v4823
        %v5174 = vpack.c.b16 %v4831, %v4824
        %v5175 = vpack.c.b16 %v4832, %v4825
        %v5176 = vpack.c.b16 %v4833, %v4826
        %v5177 = vpack.c.b16 %v4834, %v4827
        %v5178 = vpack.c.b16 %v4835, %v4828
        %v5179 = vpack.c.b16 %v4836, %v4829
        %v5180 = vpack.c.b16 %v4844, %v4837
        %v5181 = vpack.c.b16 %v4845, %v4838
        %v5182 = vpack.c.b16 %v4846, %v4839
        %v5183 = vpack.c.b16 %v4847, %v4840
        %v5184 = vpack.c.b16 %v4848, %v4841
        %v5185 = vpack.c.b16 %v4849, %v4842
        %v5186 = vpack.c.b16 %v4850, %v4843
        %v5187 = vpack.c.b16 %v4858, %v4851
        %v5188 = vpack.c.b16 %v4859, %v4852
        %v5189 = vpack.c.b16 %v4860, %v4853
        %v5190 = vpack.c.b16 %v4861, %v4854
        %v5191 = vpack.c.b16 %v4862, %v4855
        %v5192 = vpack.c.b16 %v4863, %v4856
        %v5193 = vpack.c.b16 %v4864, %v4857
        %v5194 = vpack.c.b16 %v4872, %v4865
        %v5195 = vpack.c.b16 %v4873, %v4866
        %v5196 = vpack.c.b16 %v4874, %v4867
        %v5197 = vpack.c.b16 %v4875, %v4868
        %v5198 = vpack.c.b16 %v4876, %v4869
        %v5199 = vpack.c.b16 %v4877, %v4870
        %v5200 = vpack.c.b16 %v4878, %v4871
        %v5201 = vpack.c.b16 %v4886, %v4879
        %v5202 = vpack.c.b16 %v4887, %v4880
        %v5203 = vpack.c.b16 %v4888, %v4881
        %v5204 = vpack.c.b16 %v4889, %v4882
        %v5205 = vpack.c.b16 %v4890, %v4883
        %v5206 = vpack.c.b16 %v4891, %v4884
        %v5207 = vpack.c.b16 %v4892, %v4885
        %v5208 = vpack.c.b16 %v4900, %v4893
        %v5209 = vpack.c.b16 %v4901, %v4894
        %v5210 = vpack.c.b16 %v4902, %v4895
        %v5211 = vpack.c.b16 %v4903, %v4896
        %v5212 = vpack.c.b16 %v4904, %v4897
        %v5213 = vpack.c.b16 %v4905, %v4898
        %v5214 = vpack.c.b16 %v4906, %v4899
        %v5215 = vpack.c.b16 %v4914, %v4907
        %v5216 = vpack.c.b16 %v4915, %v4908
        %v5217 = vpack.c.b16 %v4916, %v4909
        %v5218 = vpack.c.b16 %v4917, %v4910
        %v5219 = vpack.c.b16 %v4918, %v4911
        %v5220 = vpack.c.b16 %v4919, %v4912
        %v5221 = vpack.c.b16 %v4920, %v4913
        %v5222 = vpack.c.b16 %v4928, %v4921
        %v5223 = vpack.c.b16 %v4929, %v4922
        %v5224 = vpack.c.b16 %v4930, %v4923
        %v5225 = vpack.c.b16 %v4931, %v4924
        %v5226 = vpack.c.b16 %v4932, %v4925
        %v5227 = vpack.c.b16 %v4933, %v4926
        %v5228 = vpack.c.b16 %v4934, %v4927
        %v5229 = vpack.c.b16 %v4942, %v4935
        %v5230 = vpack.c.b16 %v4943, %v4936
        %v5231 = vpack.c.b16 %v4944, %v4937
        %v5232 = vpack.c.b16 %v4945, %v4938
        %v5233 = vpack.c.b16 %v4946, %v4939
        %v5234 = vpack.c.b16 %v4947, %v4940
        %v5235 = vpack.c.b16 %v4948, %v4941
        %v5236 = vpack.c.b16 %v4956, %v4949
        %v5237 = vpack.c.b16 %v4957, %v4950
        %v5238 = vpack.c.b16 %v4958, %v4951
        %v5239 = vpack.c.b16 %v4959, %v4952
        %v5240 = vpack.c.b16 %v4960, %v4953
        %v5241 = vpack.c.b16 %v4961, %v4954
        %v5242 = vpack.c.b16 %v4962, %v4955
        %v5243 = vpack.c.b16 %v4970, %v4963
        %v5244 = vpack.c.b16 %v4971, %v4964
        %v5245 = vpack.c.b16 %v4972, %v4965
        %v5246 = vpack.c.b16 %v4973, %v4966
        %v5247 = vpack.c.b16 %v4974, %v4967
        %v5248 = vpack.c.b16 %v4975, %v4968
        %v5249 = vpack.c.b16 %v4976, %v4969
        %v5250 = vpack.c.b16 %v4984, %v4977
        %v5251 = vpack.c.b16 %v4985, %v4978
        %v5252 = vpack.c.b16 %v4986, %v4979
        %v5253 = vpack.c.b16 %v4987, %v4980
        %v5254 = vpack.c.b16 %v4988, %v4981
        %v5255 = vpack.c.b16 %v4989, %v4982
        %v5256 = vpack.c.b16 %v4990, %v4983
        %v5257 = vpack.c.b16 %v4998, %v4991
        %v5258 = vpack.c.b16 %v4999, %v4992
        %v5259 = vpack.c.b16 %v5000, %v4993
        %v5260 = vpack.c.b16 %v5001, %v4994
        %v5261 = vpack.c.b16 %v5002, %v4995
        %v5262 = vpack.c.b16 %v5003, %v4996
        %v5263 = vpack.c.b16 %v5004, %v4997
        %v5264 = vpack.c.b16 %v5012, %v5005
        %v5265 = vpack.c.b16 %v5013, %v5006
        %v5266 = vpack.c.b16 %v5014, %v5007
        %v5267 = vpack.c.b16 %v5015, %v5008
        %v5268 = vpack.c.b16 %v5016, %v5009
        %v5269 = vpack.c.b16 %v5017, %v5010
        %v5270 = vpack.c.b16 %v5018, %v5011
        %v5271 = vpack.c.b16 %v5026, %v5019
        %v5272 = vpack.c.b16 %v5027, %v5020
        %v5273 = vpack.c.b16 %v5028, %v5021
        %v5274 = vpack.c.b16 %v5029, %v5022
        %v5275 = vpack.c.b16 %v5030, %v5023
        %v5276 = vpack.c.b16 %v5031, %v5024
        %v5277 = vpack.c.b16 %v5032, %v5025
        %v5278 = vpack.c.b16 %v5040, %v5033
        %v5279 = vpack.c.b16 %v5041, %v5034
        %v5280 = vpack.c.b16 %v5042, %v5035
        %v5281 = vpack.c.b16 %v5043, %v5036
        %v5282 = vpack.c.b16 %v5044, %v5037
        %v5283 = vpack.c.b16 %v5045, %v5038
        %v5284 = vpack.c.b16 %v5046, %v5039
        %v5285 = vpack.c.b16 %v5054, %v5047
        %v5286 = vpack.c.b16 %v5055, %v5048
        %v5287 = vpack.c.b16 %v5056, %v5049
        %v5288 = vpack.c.b16 %v5057, %v5050
        %v5289 = vpack.c.b16 %v5058, %v5051
        %v5290 = vpack.c.b16 %v5059, %v5052
        %v5291 = vpack.c.b16 %v5060, %v5053
        %v5292 = vpack.c.b16 %v5068, %v5061
        %v5293 = vpack.c.b16 %v5069, %v5062
        %v5294 = vpack.c.b16 %v5070, %v5063
        %v5295 = vpack.c.b16 %v5071, %v5064
        %v5296 = vpack.c.b16 %v5072, %v5065
        %v5297 = vpack.c.b16 %v5073, %v5066
        %v5298 = vpack.c.b16 %v5074, %v5067
        %5523 = vmatpush.bf16.msra.mxu0 %v5124
        %5524 = vmatpush.bf16.msra.mxu0 %v5117
        %5525 = vmatpush.bf16.msra.mxu0 %v5110
        %5526 = vmatpush.bf16.msra.mxu0 %v5103
        %5527 = vmatpush.bf16.msra.mxu0 %v5096
        %5528 = vmatpush.bf16.msra.mxu0 %v5089
        %5529 = vmatpush.bf16.msra.mxu0 %v5082
        %5530 = vmatpush.bf16.msra.mxu0 %v5075
        %5531 = vmatmul.bf16.gmra.mxu0 %v4095
        %v5532 = vpop.f32.mrf.mxu0
        %v5533 = vadd.f32 %v4357, %v5532
        %v5534 = vpop.f32.mrf.mxu0
        %v5535 = vadd.f32 %v4357, %v5534
        %5536 = vdwg.mxu0
        %5537 = vmatpush.bf16.msra.mxu0 %v5180
        %5538 = vmatpush.bf16.msra.mxu0 %v5173
        %5539 = vmatpush.bf16.msra.mxu0 %v5166
        %5540 = vmatpush.bf16.msra.mxu0 %v5159
        %5541 = vmatpush.bf16.msra.mxu0 %v5152
        %5542 = vmatpush.bf16.msra.mxu0 %v5145
        %5543 = vmatpush.bf16.msra.mxu0 %v5138
        %5544 = vmatpush.bf16.msra.mxu0 %v5131
        %5545 = vmatmul.bf16.gmra.mxu0 %v4096
        %v5546 = vpop.f32.mrf.mxu0
        %v5547 = vadd.f32 %v5533, %v5546
        %v5548 = vpop.f32.mrf.mxu0
        %v5549 = vadd.f32 %v5535, %v5548
        %5550 = vdwg.mxu0
        %5551 = vmatpush.bf16.msra.mxu0 %v5236
        %5552 = vmatpush.bf16.msra.mxu0 %v5229
        %5553 = vmatpush.bf16.msra.mxu0 %v5222
        %5554 = vmatpush.bf16.msra.mxu0 %v5215
        %5555 = vmatpush.bf16.msra.mxu0 %v5208
        %5556 = vmatpush.bf16.msra.mxu0 %v5201
        %5557 = vmatpush.bf16.msra.mxu0 %v5194
        %5558 = vmatpush.bf16.msra.mxu0 %v5187
        %5559 = vmatmul.bf16.gmra.mxu0 %v4097
        %v5560 = vpop.f32.mrf.mxu0
        %v5561 = vadd.f32 %v5547, %v5560
        %v5562 = vpop.f32.mrf.mxu0
        %v5563 = vadd.f32 %v5549, %v5562
        %5564 = vdwg.mxu0
        %5565 = vmatpush.bf16.msra.mxu0 %v5292
        %5566 = vmatpush.bf16.msra.mxu0 %v5285
        %5567 = vmatpush.bf16.msra.mxu0 %v5278
        %5568 = vmatpush.bf16.msra.mxu0 %v5271
        %5569 = vmatpush.bf16.msra.mxu0 %v5264
        %5570 = vmatpush.bf16.msra.mxu0 %v5257
        %5571 = vmatpush.bf16.msra.mxu0 %v5250
        %5572 = vmatpush.bf16.msra.mxu0 %v5243
        %5573 = vmatmul.bf16.gmra.mxu0 %v4098
        %v5574 = vpop.f32.mrf.mxu0
        %v5575 = vadd.f32 %v5561, %v5574
        %v5576 = vpop.f32.mrf.mxu0
        %v5577 = vadd.f32 %v5563, %v5576
        %5578 = vdwg.mxu0
        %5579 = vmatpush.bf16.msra.mxu0 %v5125
        %5580 = vmatpush.bf16.msra.mxu0 %v5118
        %5581 = vmatpush.bf16.msra.mxu0 %v5111
        %5582 = vmatpush.bf16.msra.mxu0 %v5104
        %5583 = vmatpush.bf16.msra.mxu0 %v5097
        %5584 = vmatpush.bf16.msra.mxu0 %v5090
        %5585 = vmatpush.bf16.msra.mxu0 %v5083
        %5586 = vmatpush.bf16.msra.mxu0 %v5076
        %5587 = vmatmul.bf16.gmra.mxu0 %v4095
        %v5588 = vpop.f32.mrf.mxu0
        %v5589 = vadd.f32 %v4358, %v5588
        %v5590 = vpop.f32.mrf.mxu0
        %v5591 = vadd.f32 %v4358, %v5590
        %5592 = vdwg.mxu0
        %5593 = vmatpush.bf16.msra.mxu0 %v5181
        %5594 = vmatpush.bf16.msra.mxu0 %v5174
        %5595 = vmatpush.bf16.msra.mxu0 %v5167
        %5596 = vmatpush.bf16.msra.mxu0 %v5160
        %5597 = vmatpush.bf16.msra.mxu0 %v5153
        %5598 = vmatpush.bf16.msra.mxu0 %v5146
        %5599 = vmatpush.bf16.msra.mxu0 %v5139
        %5600 = vmatpush.bf16.msra.mxu0 %v5132
        %5601 = vmatmul.bf16.gmra.mxu0 %v4096
        %v5602 = vpop.f32.mrf.mxu0
        %v5603 = vadd.f32 %v5589, %v5602
        %v5604 = vpop.f32.mrf.mxu0
        %v5605 = vadd.f32 %v5591, %v5604
        %5606 = vdwg.mxu0
        %5607 = vmatpush.bf16.msra.mxu0 %v5237
        %5608 = vmatpush.bf16.msra.mxu0 %v5230
        %5609 = vmatpush.bf16.msra.mxu0 %v5223
        %5610 = vmatpush.bf16.msra.mxu0 %v5216
        %5611 = vmatpush.bf16.msra.mxu0 %v5209
        %5612 = vmatpush.bf16.msra.mxu0 %v5202
        %5613 = vmatpush.bf16.msra.mxu0 %v5195
        %5614 = vmatpush.bf16.msra.mxu0 %v5188
        %5615 = vmatmul.bf16.gmra.mxu0 %v4097
        %v5616 = vpop.f32.mrf.mxu0
        %v5617 = vadd.f32 %v5603, %v5616
        %v5618 = vpop.f32.mrf.mxu0
        %v5619 = vadd.f32 %v5605, %v5618
        %5620 = vdwg.mxu0
        %5621 = vmatpush.bf16.msra.mxu0 %v5293
        %5622 = vmatpush.bf16.msra.mxu0 %v5286
        %5623 = vmatpush.bf16.msra.mxu0 %v5279
        %5624 = vmatpush.bf16.msra.mxu0 %v5272
        %5625 = vmatpush.bf16.msra.mxu0 %v5265
        %5626 = vmatpush.bf16.msra.mxu0 %v5258
        %5627 = vmatpush.bf16.msra.mxu0 %v5251
        %5628 = vmatpush.bf16.msra.mxu0 %v5244
        %5629 = vmatmul.bf16.gmra.mxu0 %v4098
        %v5630 = vpop.f32.mrf.mxu0
        %v5631 = vadd.f32 %v5617, %v5630
        %v5632 = vpop.f32.mrf.mxu0
        %v5633 = vadd.f32 %v5619, %v5632
        %5634 = vdwg.mxu0
        %5635 = vmatpush.bf16.msra.mxu0 %v5126
        %5636 = vmatpush.bf16.msra.mxu0 %v5119
        %5637 = vmatpush.bf16.msra.mxu0 %v5112
        %5638 = vmatpush.bf16.msra.mxu0 %v5105
        %5639 = vmatpush.bf16.msra.mxu0 %v5098
        %5640 = vmatpush.bf16.msra.mxu0 %v5091
        %5641 = vmatpush.bf16.msra.mxu0 %v5084
        %5642 = vmatpush.bf16.msra.mxu0 %v5077
        %5643 = vmatmul.bf16.gmra.mxu0 %v4095
        %v5644 = vpop.f32.mrf.mxu0
        %v5645 = vadd.f32 %v4359, %v5644
        %v5646 = vpop.f32.mrf.mxu0
        %v5647 = vadd.f32 %v4359, %v5646
        %5648 = vdwg.mxu0
        %5649 = vmatpush.bf16.msra.mxu0 %v5182
        %5650 = vmatpush.bf16.msra.mxu0 %v5175
        %5651 = vmatpush.bf16.msra.mxu0 %v5168
        %5652 = vmatpush.bf16.msra.mxu0 %v5161
        %5653 = vmatpush.bf16.msra.mxu0 %v5154
        %5654 = vmatpush.bf16.msra.mxu0 %v5147
        %5655 = vmatpush.bf16.msra.mxu0 %v5140
        %5656 = vmatpush.bf16.msra.mxu0 %v5133
        %5657 = vmatmul.bf16.gmra.mxu0 %v4096
        %v5658 = vpop.f32.mrf.mxu0
        %v5659 = vadd.f32 %v5645, %v5658
        %v5660 = vpop.f32.mrf.mxu0
        %v5661 = vadd.f32 %v5647, %v5660
        %5662 = vdwg.mxu0
        %5663 = vmatpush.bf16.msra.mxu0 %v5238
        %5664 = vmatpush.bf16.msra.mxu0 %v5231
        %5665 = vmatpush.bf16.msra.mxu0 %v5224
        %5666 = vmatpush.bf16.msra.mxu0 %v5217
        %5667 = vmatpush.bf16.msra.mxu0 %v5210
        %5668 = vmatpush.bf16.msra.mxu0 %v5203
        %5669 = vmatpush.bf16.msra.mxu0 %v5196
        %5670 = vmatpush.bf16.msra.mxu0 %v5189
        %5671 = vmatmul.bf16.gmra.mxu0 %v4097
        %v5672 = vpop.f32.mrf.mxu0
        %v5673 = vadd.f32 %v5659, %v5672
        %v5674 = vpop.f32.mrf.mxu0
        %v5675 = vadd.f32 %v5661, %v5674
        %5676 = vdwg.mxu0
        %5677 = vmatpush.bf16.msra.mxu0 %v5294
        %5678 = vmatpush.bf16.msra.mxu0 %v5287
        %5679 = vmatpush.bf16.msra.mxu0 %v5280
        %5680 = vmatpush.bf16.msra.mxu0 %v5273
        %5681 = vmatpush.bf16.msra.mxu0 %v5266
        %5682 = vmatpush.bf16.msra.mxu0 %v5259
        %5683 = vmatpush.bf16.msra.mxu0 %v5252
        %5684 = vmatpush.bf16.msra.mxu0 %v5245
        %5685 = vmatmul.bf16.gmra.mxu0 %v4098
        %v5686 = vpop.f32.mrf.mxu0
        %v5687 = vadd.f32 %v5673, %v5686
        %v5688 = vpop.f32.mrf.mxu0
        %v5689 = vadd.f32 %v5675, %v5688
        %5690 = vdwg.mxu0
        %5691 = vmatpush.bf16.msra.mxu0 %v5127
        %5692 = vmatpush.bf16.msra.mxu0 %v5120
        %5693 = vmatpush.bf16.msra.mxu0 %v5113
        %5694 = vmatpush.bf16.msra.mxu0 %v5106
        %5695 = vmatpush.bf16.msra.mxu0 %v5099
        %5696 = vmatpush.bf16.msra.mxu0 %v5092
        %5697 = vmatpush.bf16.msra.mxu0 %v5085
        %5698 = vmatpush.bf16.msra.mxu0 %v5078
        %5699 = vmatmul.bf16.gmra.mxu0 %v4095
        %v5700 = vpop.f32.mrf.mxu0
        %v5701 = vadd.f32 %v4360, %v5700
        %v5702 = vpop.f32.mrf.mxu0
        %v5703 = vadd.f32 %v4360, %v5702
        %5704 = vdwg.mxu0
        %5705 = vmatpush.bf16.msra.mxu0 %v5183
        %5706 = vmatpush.bf16.msra.mxu0 %v5176
        %5707 = vmatpush.bf16.msra.mxu0 %v5169
        %5708 = vmatpush.bf16.msra.mxu0 %v5162
        %5709 = vmatpush.bf16.msra.mxu0 %v5155
        %5710 = vmatpush.bf16.msra.mxu0 %v5148
        %5711 = vmatpush.bf16.msra.mxu0 %v5141
        %5712 = vmatpush.bf16.msra.mxu0 %v5134
        %5713 = vmatmul.bf16.gmra.mxu0 %v4096
        %v5714 = vpop.f32.mrf.mxu0
        %v5715 = vadd.f32 %v5701, %v5714
        %v5716 = vpop.f32.mrf.mxu0
        %v5717 = vadd.f32 %v5703, %v5716
        %5718 = vdwg.mxu0
        %5719 = vmatpush.bf16.msra.mxu0 %v5239
        %5720 = vmatpush.bf16.msra.mxu0 %v5232
        %5721 = vmatpush.bf16.msra.mxu0 %v5225
        %5722 = vmatpush.bf16.msra.mxu0 %v5218
        %5723 = vmatpush.bf16.msra.mxu0 %v5211
        %5724 = vmatpush.bf16.msra.mxu0 %v5204
        %5725 = vmatpush.bf16.msra.mxu0 %v5197
        %5726 = vmatpush.bf16.msra.mxu0 %v5190
        %5727 = vmatmul.bf16.gmra.mxu0 %v4097
        %v5728 = vpop.f32.mrf.mxu0
        %v5729 = vadd.f32 %v5715, %v5728
        %v5730 = vpop.f32.mrf.mxu0
        %v5731 = vadd.f32 %v5717, %v5730
        %5732 = vdwg.mxu0
        %5733 = vmatpush.bf16.msra.mxu0 %v5295
        %5734 = vmatpush.bf16.msra.mxu0 %v5288
        %5735 = vmatpush.bf16.msra.mxu0 %v5281
        %5736 = vmatpush.bf16.msra.mxu0 %v5274
        %5737 = vmatpush.bf16.msra.mxu0 %v5267
        %5738 = vmatpush.bf16.msra.mxu0 %v5260
        %5739 = vmatpush.bf16.msra.mxu0 %v5253
        %5740 = vmatpush.bf16.msra.mxu0 %v5246
        %5741 = vmatmul.bf16.gmra.mxu0 %v4098
        %v5742 = vpop.f32.mrf.mxu0
        %v5743 = vadd.f32 %v5729, %v5742
        %v5744 = vpop.f32.mrf.mxu0
        %v5745 = vadd.f32 %v5731, %v5744
        %5746 = vdwg.mxu0
        %5747 = vmatpush.bf16.msra.mxu0 %v5128
        %5748 = vmatpush.bf16.msra.mxu0 %v5121
        %5749 = vmatpush.bf16.msra.mxu0 %v5114
        %5750 = vmatpush.bf16.msra.mxu0 %v5107
        %5751 = vmatpush.bf16.msra.mxu0 %v5100
        %5752 = vmatpush.bf16.msra.mxu0 %v5093
        %5753 = vmatpush.bf16.msra.mxu0 %v5086
        %5754 = vmatpush.bf16.msra.mxu0 %v5079
        %5755 = vmatmul.bf16.gmra.mxu0 %v4095
        %v5756 = vpop.f32.mrf.mxu0
        %v5757 = vadd.f32 %v4361, %v5756
        %v5758 = vpop.f32.mrf.mxu0
        %v5759 = vadd.f32 %v4361, %v5758
        %5760 = vdwg.mxu0
        %5761 = vmatpush.bf16.msra.mxu0 %v5184
        %5762 = vmatpush.bf16.msra.mxu0 %v5177
        %5763 = vmatpush.bf16.msra.mxu0 %v5170
        %5764 = vmatpush.bf16.msra.mxu0 %v5163
        %5765 = vmatpush.bf16.msra.mxu0 %v5156
        %5766 = vmatpush.bf16.msra.mxu0 %v5149
        %5767 = vmatpush.bf16.msra.mxu0 %v5142
        %5768 = vmatpush.bf16.msra.mxu0 %v5135
        %5769 = vmatmul.bf16.gmra.mxu0 %v4096
        %v5770 = vpop.f32.mrf.mxu0
        %v5771 = vadd.f32 %v5757, %v5770
        %v5772 = vpop.f32.mrf.mxu0
        %v5773 = vadd.f32 %v5759, %v5772
        %5774 = vdwg.mxu0
        %5775 = vmatpush.bf16.msra.mxu0 %v5240
        %5776 = vmatpush.bf16.msra.mxu0 %v5233
        %5777 = vmatpush.bf16.msra.mxu0 %v5226
        %5778 = vmatpush.bf16.msra.mxu0 %v5219
        %5779 = vmatpush.bf16.msra.mxu0 %v5212
        %5780 = vmatpush.bf16.msra.mxu0 %v5205
        %5781 = vmatpush.bf16.msra.mxu0 %v5198
        %5782 = vmatpush.bf16.msra.mxu0 %v5191
        %5783 = vmatmul.bf16.gmra.mxu0 %v4097
        %v5784 = vpop.f32.mrf.mxu0
        %v5785 = vadd.f32 %v5771, %v5784
        %v5786 = vpop.f32.mrf.mxu0
        %v5787 = vadd.f32 %v5773, %v5786
        %5788 = vdwg.mxu0
        %5789 = vmatpush.bf16.msra.mxu0 %v5296
        %5790 = vmatpush.bf16.msra.mxu0 %v5289
        %5791 = vmatpush.bf16.msra.mxu0 %v5282
        %5792 = vmatpush.bf16.msra.mxu0 %v5275
        %5793 = vmatpush.bf16.msra.mxu0 %v5268
        %5794 = vmatpush.bf16.msra.mxu0 %v5261
        %5795 = vmatpush.bf16.msra.mxu0 %v5254
        %5796 = vmatpush.bf16.msra.mxu0 %v5247
        %5797 = vmatmul.bf16.gmra.mxu0 %v4098
        %v5798 = vpop.f32.mrf.mxu0
        %v5799 = vadd.f32 %v5785, %v5798
        %v5800 = vpop.f32.mrf.mxu0
        %v5801 = vadd.f32 %v5787, %v5800
        %5802 = vdwg.mxu0
        %5803 = vmatpush.bf16.msra.mxu0 %v5129
        %5804 = vmatpush.bf16.msra.mxu0 %v5122
        %5805 = vmatpush.bf16.msra.mxu0 %v5115
        %5806 = vmatpush.bf16.msra.mxu0 %v5108
        %5807 = vmatpush.bf16.msra.mxu0 %v5101
        %5808 = vmatpush.bf16.msra.mxu0 %v5094
        %5809 = vmatpush.bf16.msra.mxu0 %v5087
        %5810 = vmatpush.bf16.msra.mxu0 %v5080
        %5811 = vmatmul.bf16.gmra.mxu0 %v4095
        %v5812 = vpop.f32.mrf.mxu0
        %v5813 = vadd.f32 %v4362, %v5812
        %v5814 = vpop.f32.mrf.mxu0
        %v5815 = vadd.f32 %v4362, %v5814
        %5816 = vdwg.mxu0
        %5817 = vmatpush.bf16.msra.mxu0 %v5185
        %5818 = vmatpush.bf16.msra.mxu0 %v5178
        %5819 = vmatpush.bf16.msra.mxu0 %v5171
        %5820 = vmatpush.bf16.msra.mxu0 %v5164
        %5821 = vmatpush.bf16.msra.mxu0 %v5157
        %5822 = vmatpush.bf16.msra.mxu0 %v5150
        %5823 = vmatpush.bf16.msra.mxu0 %v5143
        %5824 = vmatpush.bf16.msra.mxu0 %v5136
        %5825 = vmatmul.bf16.gmra.mxu0 %v4096
        %v5826 = vpop.f32.mrf.mxu0
        %v5827 = vadd.f32 %v5813, %v5826
        %v5828 = vpop.f32.mrf.mxu0
        %v5829 = vadd.f32 %v5815, %v5828
        %5830 = vdwg.mxu0
        %5831 = vmatpush.bf16.msra.mxu0 %v5241
        %5832 = vmatpush.bf16.msra.mxu0 %v5234
        %5833 = vmatpush.bf16.msra.mxu0 %v5227
        %5834 = vmatpush.bf16.msra.mxu0 %v5220
        %5835 = vmatpush.bf16.msra.mxu0 %v5213
        %5836 = vmatpush.bf16.msra.mxu0 %v5206
        %5837 = vmatpush.bf16.msra.mxu0 %v5199
        %5838 = vmatpush.bf16.msra.mxu0 %v5192
        %5839 = vmatmul.bf16.gmra.mxu0 %v4097
        %v5840 = vpop.f32.mrf.mxu0
        %v5841 = vadd.f32 %v5827, %v5840
        %v5842 = vpop.f32.mrf.mxu0
        %v5843 = vadd.f32 %v5829, %v5842
        %5844 = vdwg.mxu0
        %5845 = vmatpush.bf16.msra.mxu0 %v5297
        %5846 = vmatpush.bf16.msra.mxu0 %v5290
        %5847 = vmatpush.bf16.msra.mxu0 %v5283
        %5848 = vmatpush.bf16.msra.mxu0 %v5276
        %5849 = vmatpush.bf16.msra.mxu0 %v5269
        %5850 = vmatpush.bf16.msra.mxu0 %v5262
        %5851 = vmatpush.bf16.msra.mxu0 %v5255
        %5852 = vmatpush.bf16.msra.mxu0 %v5248
        %5853 = vmatmul.bf16.gmra.mxu0 %v4098
        %v5854 = vpop.f32.mrf.mxu0
        %v5855 = vadd.f32 %v5841, %v5854
        %v5856 = vpop.f32.mrf.mxu0
        %v5857 = vadd.f32 %v5843, %v5856
        %5858 = vdwg.mxu0
        %5859 = vmatpush.bf16.msra.mxu0 %v5130
        %5860 = vmatpush.bf16.msra.mxu0 %v5123
        %5861 = vmatpush.bf16.msra.mxu0 %v5116
        %5862 = vmatpush.bf16.msra.mxu0 %v5109
        %5863 = vmatpush.bf16.msra.mxu0 %v5102
        %5864 = vmatpush.bf16.msra.mxu0 %v5095
        %5865 = vmatpush.bf16.msra.mxu0 %v5088
        %5866 = vmatpush.bf16.msra.mxu0 %v5081
        %5867 = vmatmul.bf16.gmra.mxu0 %v4095
        %v5868 = vpop.f32.mrf.mxu0
        %v5869 = vadd.f32 %v4363, %v5868
        %v5870 = vpop.f32.mrf.mxu0
        %v5871 = vadd.f32 %v4363, %v5870
        %5872 = vdwg.mxu0
        %5873 = vmatpush.bf16.msra.mxu0 %v5186
        %5874 = vmatpush.bf16.msra.mxu0 %v5179
        %5875 = vmatpush.bf16.msra.mxu0 %v5172
        %5876 = vmatpush.bf16.msra.mxu0 %v5165
        %5877 = vmatpush.bf16.msra.mxu0 %v5158
        %5878 = vmatpush.bf16.msra.mxu0 %v5151
        %5879 = vmatpush.bf16.msra.mxu0 %v5144
        %5880 = vmatpush.bf16.msra.mxu0 %v5137
        %5881 = vmatmul.bf16.gmra.mxu0 %v4096
        %v5882 = vpop.f32.mrf.mxu0
        %v5883 = vadd.f32 %v5869, %v5882
        %v5884 = vpop.f32.mrf.mxu0
        %v5885 = vadd.f32 %v5871, %v5884
        %5886 = vdwg.mxu0
        %5887 = vmatpush.bf16.msra.mxu0 %v5242
        %5888 = vmatpush.bf16.msra.mxu0 %v5235
        %5889 = vmatpush.bf16.msra.mxu0 %v5228
        %5890 = vmatpush.bf16.msra.mxu0 %v5221
        %5891 = vmatpush.bf16.msra.mxu0 %v5214
        %5892 = vmatpush.bf16.msra.mxu0 %v5207
        %5893 = vmatpush.bf16.msra.mxu0 %v5200
        %5894 = vmatpush.bf16.msra.mxu0 %v5193
        %5895 = vmatmul.bf16.gmra.mxu0 %v4097
        %v5896 = vpop.f32.mrf.mxu0
        %v5897 = vadd.f32 %v5883, %v5896
        %v5898 = vpop.f32.mrf.mxu0
        %v5899 = vadd.f32 %v5885, %v5898
        %5900 = vdwg.mxu0
        %5901 = vmatpush.bf16.msra.mxu0 %v5298
        %5902 = vmatpush.bf16.msra.mxu0 %v5291
        %5903 = vmatpush.bf16.msra.mxu0 %v5284
        %5904 = vmatpush.bf16.msra.mxu0 %v5277
        %5905 = vmatpush.bf16.msra.mxu0 %v5270
        %5906 = vmatpush.bf16.msra.mxu0 %v5263
        %5907 = vmatpush.bf16.msra.mxu0 %v5256
        %5908 = vmatpush.bf16.msra.mxu0 %v5249
        %5909 = vmatmul.bf16.gmra.mxu0 %v4098
        %v5910 = vpop.f32.mrf.mxu0
        %v5911 = vadd.f32 %v5897, %v5910
        %v5912 = vpop.f32.mrf.mxu0
        %v5913 = vadd.f32 %v5899, %v5912
        %5914 = vdwg.mxu0
        %v5915 = vxor.u32 %v5575, 2147483648
        %v5916 = vxor.u32 %v5631, 2147483648
        %v5917 = vxor.u32 %v5687, 2147483648
        %v5918 = vxor.u32 %v5743, 2147483648
        %v5919 = vxor.u32 %v5799, 2147483648
        %v5920 = vxor.u32 %v5855, 2147483648
        %v5921 = vxor.u32 %v5911, 2147483648
        %v5922 = vxor.u32 %v5577, 2147483648
        %v5923 = vxor.u32 %v5633, 2147483648
        %v5924 = vxor.u32 %v5689, 2147483648
        %v5925 = vxor.u32 %v5745, 2147483648
        %v5926 = vxor.u32 %v5801, 2147483648
        %v5927 = vxor.u32 %v5857, 2147483648
        %v5928 = vxor.u32 %v5913, 2147483648
        %v5929 = vmul.f32 %v5915, 1.442695
        %v5930 = vpow.pop %v5929
        %v5931 = vmul.f32 %v5916, 1.442695
        %v5932 = vpow.pop %v5931
        %v5933 = vmul.f32 %v5917, 1.442695
        %v5934 = vpow.pop %v5933
        %v5935 = vmul.f32 %v5918, 1.442695
        %v5936 = vpow.pop %v5935
        %v5937 = vmul.f32 %v5919, 1.442695
        %v5938 = vpow.pop %v5937
        %v5939 = vmul.f32 %v5920, 1.442695
        %v5940 = vpow.pop %v5939
        %v5941 = vmul.f32 %v5921, 1.442695
        %v5942 = vpow.pop %v5941
        %v5943 = vmul.f32 %v5922, 1.442695
        %v5944 = vpow.pop %v5943
        %v5945 = vmul.f32 %v5923, 1.442695
        %v5946 = vpow.pop %v5945
        %v5947 = vmul.f32 %v5924, 1.442695
        %v5948 = vpow.pop %v5947
        %v5949 = vmul.f32 %v5925, 1.442695
        %v5950 = vpow.pop %v5949
        %v5951 = vmul.f32 %v5926, 1.442695
        %v5952 = vpow.pop %v5951
        %v5953 = vmul.f32 %v5927, 1.442695
        %v5954 = vpow.pop %v5953
        %v5955 = vmul.f32 %v5928, 1.442695
        %v5956 = vpow.pop %v5955
        %v5957 = vadd.f32 %v5930, 1.0
        %v5958 = vadd.f32 %v5932, 1.0
        %v5959 = vadd.f32 %v5934, 1.0
        %v5960 = vadd.f32 %v5936, 1.0
        %v5961 = vadd.f32 %v5938, 1.0
        %v5962 = vadd.f32 %v5940, 1.0
        %v5963 = vadd.f32 %v5942, 1.0
        %v5964 = vadd.f32 %v5944, 1.0
        %v5965 = vadd.f32 %v5946, 1.0
        %v5966 = vadd.f32 %v5948, 1.0
        %v5967 = vadd.f32 %v5950, 1.0
        %v5968 = vadd.f32 %v5952, 1.0
        %v5969 = vadd.f32 %v5954, 1.0
        %v5970 = vadd.f32 %v5956, 1.0
        %v5971 = vrcp.pop %v5957
        %v5972 = vmul.f32 %v5957, %v5971
        %v5973 = vsub.f32 1.0, %v5972
        %v5974 = vmul.f32 %v5971, %v5973
        %v5975 = vadd.f32 %v5971, %v5974
        %vm5976 = vweird.f32 %v5957
        %vm5977 = vweird.f32 %v5971
        %vm5978 = vmor %vm5976, %vm5977
        %v5979 = vsel %vm5978, %v5971, %v5975
        %v5980 = vand.u32 2147483647, %v5957
        %vm5981 = vcmp.eq.f32.partialorder %v5980, 8.507059e+37
        %v5982 = vand.u32 %v5957, 2147483648
        %v5983 = vor.u32 1.1754944e-38, %v5982
        %v5984 = vsel %vm5981, %v5983, %v5979
        %v5985 = vmul.f32 1.0, %v5984
        %v5986 = vrcp.pop %v5958
        %v5987 = vmul.f32 %v5958, %v5986
        %v5988 = vsub.f32 1.0, %v5987
        %v5989 = vmul.f32 %v5986, %v5988
        %v5990 = vadd.f32 %v5986, %v5989
        %vm5991 = vweird.f32 %v5958
        %vm5992 = vweird.f32 %v5986
        %vm5993 = vmor %vm5991, %vm5992
        %v5994 = vsel %vm5993, %v5986, %v5990
        %v5995 = vand.u32 2147483647, %v5958
        %vm5996 = vcmp.eq.f32.partialorder %v5995, 8.507059e+37
        %v5997 = vand.u32 %v5958, 2147483648
        %v5998 = vor.u32 1.1754944e-38, %v5997
        %v5999 = vsel %vm5996, %v5998, %v5994
        %v6000 = vmul.f32 1.0, %v5999
        %v6001 = vrcp.pop %v5959
        %v6002 = vmul.f32 %v5959, %v6001
        %v6003 = vsub.f32 1.0, %v6002
        %v6004 = vmul.f32 %v6001, %v6003
        %v6005 = vadd.f32 %v6001, %v6004
        %vm6006 = vweird.f32 %v5959
        %vm6007 = vweird.f32 %v6001
        %vm6008 = vmor %vm6006, %vm6007
        %v6009 = vsel %vm6008, %v6001, %v6005
        %v6010 = vand.u32 2147483647, %v5959
        %vm6011 = vcmp.eq.f32.partialorder %v6010, 8.507059e+37
        %v6012 = vand.u32 %v5959, 2147483648
        %v6013 = vor.u32 1.1754944e-38, %v6012
        %v6014 = vsel %vm6011, %v6013, %v6009
        %v6015 = vmul.f32 1.0, %v6014
        %v6016 = vrcp.pop %v5960
        %v6017 = vmul.f32 %v5960, %v6016
        %v6018 = vsub.f32 1.0, %v6017
        %v6019 = vmul.f32 %v6016, %v6018
        %v6020 = vadd.f32 %v6016, %v6019
        %vm6021 = vweird.f32 %v5960
        %vm6022 = vweird.f32 %v6016
        %vm6023 = vmor %vm6021, %vm6022
        %v6024 = vsel %vm6023, %v6016, %v6020
        %v6025 = vand.u32 2147483647, %v5960
        %vm6026 = vcmp.eq.f32.partialorder %v6025, 8.507059e+37
        %v6027 = vand.u32 %v5960, 2147483648
        %v6028 = vor.u32 1.1754944e-38, %v6027
        %v6029 = vsel %vm6026, %v6028, %v6024
        %v6030 = vmul.f32 1.0, %v6029
        %v6031 = vrcp.pop %v5961
        %v6032 = vmul.f32 %v5961, %v6031
        %v6033 = vsub.f32 1.0, %v6032
        %v6034 = vmul.f32 %v6031, %v6033
        %v6035 = vadd.f32 %v6031, %v6034
        %vm6036 = vweird.f32 %v5961
        %vm6037 = vweird.f32 %v6031
        %vm6038 = vmor %vm6036, %vm6037
        %v6039 = vsel %vm6038, %v6031, %v6035
        %v6040 = vand.u32 2147483647, %v5961
        %vm6041 = vcmp.eq.f32.partialorder %v6040, 8.507059e+37
        %v6042 = vand.u32 %v5961, 2147483648
        %v6043 = vor.u32 1.1754944e-38, %v6042
        %v6044 = vsel %vm6041, %v6043, %v6039
        %v6045 = vmul.f32 1.0, %v6044
        %v6046 = vrcp.pop %v5962
        %v6047 = vmul.f32 %v5962, %v6046
        %v6048 = vsub.f32 1.0, %v6047
        %v6049 = vmul.f32 %v6046, %v6048
        %v6050 = vadd.f32 %v6046, %v6049
        %vm6051 = vweird.f32 %v5962
        %vm6052 = vweird.f32 %v6046
        %vm6053 = vmor %vm6051, %vm6052
        %v6054 = vsel %vm6053, %v6046, %v6050
        %v6055 = vand.u32 2147483647, %v5962
        %vm6056 = vcmp.eq.f32.partialorder %v6055, 8.507059e+37
        %v6057 = vand.u32 %v5962, 2147483648
        %v6058 = vor.u32 1.1754944e-38, %v6057
        %v6059 = vsel %vm6056, %v6058, %v6054
        %v6060 = vmul.f32 1.0, %v6059
        %v6061 = vrcp.pop %v5963
        %v6062 = vmul.f32 %v5963, %v6061
        %v6063 = vsub.f32 1.0, %v6062
        %v6064 = vmul.f32 %v6061, %v6063
        %v6065 = vadd.f32 %v6061, %v6064
        %vm6066 = vweird.f32 %v5963
        %vm6067 = vweird.f32 %v6061
        %vm6068 = vmor %vm6066, %vm6067
        %v6069 = vsel %vm6068, %v6061, %v6065
        %v6070 = vand.u32 2147483647, %v5963
        %vm6071 = vcmp.eq.f32.partialorder %v6070, 8.507059e+37
        %v6072 = vand.u32 %v5963, 2147483648
        %v6073 = vor.u32 1.1754944e-38, %v6072
        %v6074 = vsel %vm6071, %v6073, %v6069
        %v6075 = vmul.f32 1.0, %v6074
        %v6076 = vrcp.pop %v5964
        %v6077 = vmul.f32 %v5964, %v6076
        %v6078 = vsub.f32 1.0, %v6077
        %v6079 = vmul.f32 %v6076, %v6078
        %v6080 = vadd.f32 %v6076, %v6079
        %vm6081 = vweird.f32 %v5964
        %vm6082 = vweird.f32 %v6076
        %vm6083 = vmor %vm6081, %vm6082
        %v6084 = vsel %vm6083, %v6076, %v6080
        %v6085 = vand.u32 2147483647, %v5964
        %vm6086 = vcmp.eq.f32.partialorder %v6085, 8.507059e+37
        %v6087 = vand.u32 %v5964, 2147483648
        %v6088 = vor.u32 1.1754944e-38, %v6087
        %v6089 = vsel %vm6086, %v6088, %v6084
        %v6090 = vmul.f32 1.0, %v6089
        %v6091 = vrcp.pop %v5965
        %v6092 = vmul.f32 %v5965, %v6091
        %v6093 = vsub.f32 1.0, %v6092
        %v6094 = vmul.f32 %v6091, %v6093
        %v6095 = vadd.f32 %v6091, %v6094
        %vm6096 = vweird.f32 %v5965
        %vm6097 = vweird.f32 %v6091
        %vm6098 = vmor %vm6096, %vm6097
        %v6099 = vsel %vm6098, %v6091, %v6095
        %v6100 = vand.u32 2147483647, %v5965
        %vm6101 = vcmp.eq.f32.partialorder %v6100, 8.507059e+37
        %v6102 = vand.u32 %v5965, 2147483648
        %v6103 = vor.u32 1.1754944e-38, %v6102
        %v6104 = vsel %vm6101, %v6103, %v6099
        %v6105 = vmul.f32 1.0, %v6104
        %v6106 = vrcp.pop %v5966
        %v6107 = vmul.f32 %v5966, %v6106
        %v6108 = vsub.f32 1.0, %v6107
        %v6109 = vmul.f32 %v6106, %v6108
        %v6110 = vadd.f32 %v6106, %v6109
        %vm6111 = vweird.f32 %v5966
        %vm6112 = vweird.f32 %v6106
        %vm6113 = vmor %vm6111, %vm6112
        %v6114 = vsel %vm6113, %v6106, %v6110
        %v6115 = vand.u32 2147483647, %v5966
        %vm6116 = vcmp.eq.f32.partialorder %v6115, 8.507059e+37
        %v6117 = vand.u32 %v5966, 2147483648
        %v6118 = vor.u32 1.1754944e-38, %v6117
        %v6119 = vsel %vm6116, %v6118, %v6114
        %v6120 = vmul.f32 1.0, %v6119
        %v6121 = vrcp.pop %v5967
        %v6122 = vmul.f32 %v5967, %v6121
        %v6123 = vsub.f32 1.0, %v6122
        %v6124 = vmul.f32 %v6121, %v6123
        %v6125 = vadd.f32 %v6121, %v6124
        %vm6126 = vweird.f32 %v5967
        %vm6127 = vweird.f32 %v6121
        %vm6128 = vmor %vm6126, %vm6127
        %v6129 = vsel %vm6128, %v6121, %v6125
        %v6130 = vand.u32 2147483647, %v5967
        %vm6131 = vcmp.eq.f32.partialorder %v6130, 8.507059e+37
        %v6132 = vand.u32 %v5967, 2147483648
        %v6133 = vor.u32 1.1754944e-38, %v6132
        %v6134 = vsel %vm6131, %v6133, %v6129
        %v6135 = vmul.f32 1.0, %v6134
        %v6136 = vrcp.pop %v5968
        %v6137 = vmul.f32 %v5968, %v6136
        %v6138 = vsub.f32 1.0, %v6137
        %v6139 = vmul.f32 %v6136, %v6138
        %v6140 = vadd.f32 %v6136, %v6139
        %vm6141 = vweird.f32 %v5968
        %vm6142 = vweird.f32 %v6136
        %vm6143 = vmor %vm6141, %vm6142
        %v6144 = vsel %vm6143, %v6136, %v6140
        %v6145 = vand.u32 2147483647, %v5968
        %vm6146 = vcmp.eq.f32.partialorder %v6145, 8.507059e+37
        %v6147 = vand.u32 %v5968, 2147483648
        %v6148 = vor.u32 1.1754944e-38, %v6147
        %v6149 = vsel %vm6146, %v6148, %v6144
        %v6150 = vmul.f32 1.0, %v6149
        %v6151 = vrcp.pop %v5969
        %v6152 = vmul.f32 %v5969, %v6151
        %v6153 = vsub.f32 1.0, %v6152
        %v6154 = vmul.f32 %v6151, %v6153
        %v6155 = vadd.f32 %v6151, %v6154
        %vm6156 = vweird.f32 %v5969
        %vm6157 = vweird.f32 %v6151
        %vm6158 = vmor %vm6156, %vm6157
        %v6159 = vsel %vm6158, %v6151, %v6155
        %v6160 = vand.u32 2147483647, %v5969
        %vm6161 = vcmp.eq.f32.partialorder %v6160, 8.507059e+37
        %v6162 = vand.u32 %v5969, 2147483648
        %v6163 = vor.u32 1.1754944e-38, %v6162
        %v6164 = vsel %vm6161, %v6163, %v6159
        %v6165 = vmul.f32 1.0, %v6164
        %v6166 = vrcp.pop %v5970
        %v6167 = vmul.f32 %v5970, %v6166
        %v6168 = vsub.f32 1.0, %v6167
        %v6169 = vmul.f32 %v6166, %v6168
        %v6170 = vadd.f32 %v6166, %v6169
        %vm6171 = vweird.f32 %v5970
        %vm6172 = vweird.f32 %v6166
        %vm6173 = vmor %vm6171, %vm6172
        %v6174 = vsel %vm6173, %v6166, %v6170
        %v6175 = vand.u32 2147483647, %v5970
        %vm6176 = vcmp.eq.f32.partialorder %v6175, 8.507059e+37
        %v6177 = vand.u32 %v5970, 2147483648
        %v6178 = vor.u32 1.1754944e-38, %v6177
        %v6179 = vsel %vm6176, %v6178, %v6174
        %v6180 = vmul.f32 1.0, %v6179
        %v6181 = vpack.c.bf16 %v6000, %v5985
        %v6182 = vpack.c.bf16 %v6030, %v6015
        %v6183 = vpack.c.bf16 %v6060, %v6045
        %v6184 = vpack.c.bf16 %v6075, %v6075
        %v6185 = vpack.c.bf16 %v6105, %v6090
        %v6186 = vpack.c.bf16 %v6135, %v6120
        %v6187 = vpack.c.bf16 %v6165, %v6150
        %v6188 = vpack.c.bf16 %v6180, %v6180
        %6189 = vst [vmem:[%s790] sm:$0xff] %v6181
        %6190 = vst [vmem:[%s790 + $0x8] sm:$0xff] %v6182
        %6191 = vst [vmem:[%s790 + $0x10] sm:$0xff] %v6183
        %6192 = vst [vmem:[%s790 + $0x18] sm:$0xf] %v6184
        %6193 = vst [vmem:[%s790 + $0x1c] sm:$0xff] %v6185
        %6194 = vst [vmem:[%s790 + $0x24] sm:$0xff] %v6186
        %6195 = vst [vmem:[%s790 + $0x2c] sm:$0xff] %v6187
        %6196 = vst [vmem:[%s790 + $0x34] sm:$0xf] %v6188
        %s6197 = sand.u32 %s415, 1
        %s6198 = scalar_lea.sflag [#allocation4], %s6197
        %s6199 = sand.u32 %s415, 1
        %s6200 = smul.addr %s6199, 56
        %s6201 = scalar_lea.vmem [#allocation23], %s6200
        %s6202 = sand.u32 %s441, 1
        %s6203 = scalar_lea.sflag [#allocation25], %s6202
        %s6204 = sand.u32 %s441, 1
        %s6205 = smul.addr %s6204, 8
        %s6206 = scalar_lea.vmem [#allocation24], %s6205
        // Predicated region
        $region141: #{tpu_custom_call.1} parent=87 // pred_check
          %p6207 = pneg %p425
        $region142: #{tpu_custom_call.1} parent=87 // pred_check_branch
          %6209 = sbr.rel (%p6207) target = $region144
        $region143: #{tpu_custom_call.1} parent=87 // pred_region
          %s6210 = smul.u32 2, %s45
          %6212 = vsyncadd %s6198, 0
          %s6213 = smul.addr %s6210, 7
          %s6214 = smul.addr %s6213, 4
          %s6215 = scalar_lea.hbm %s17, %s6214
          %s6216 = sshll.u32 %s6201, 4
          %s6217 = int_to_ptr.vmem [resolvable:$true] %s6216
          %s6218 = sshll.u32 %s6215, 4
          %s6219 = int_to_ptr.hbm [resolvable:$true] %s6218
          %6224 = dma.vmem_to_hbm [thread:$0]  %s6217, 896, %s6219, %s6198, 448, 448, 28
        $region144: #{tpu_custom_call.1} parent=87 // pred_fallthru
          _
        // Predicated region
        $region145: #{tpu_custom_call.1} parent=87 // pred_check
          %p6225 = pneg %p451
        $region146: #{tpu_custom_call.1} parent=87 // pred_check_branch
          %6227 = sbr.rel (%p6225) target = $region148
        $region147: #{tpu_custom_call.1} parent=87 // pred_region
          %s6228 = smul.u32 2, %s45
          %6230 = vsyncadd %s6203, 0
          %s6231 = smul.addr %s6228, 4
          %s6232 = scalar_lea.hbm %s18, %s6231
          %s6233 = sshll.u32 %s6206, 4
          %s6234 = int_to_ptr.vmem [resolvable:$true] %s6233
          %s6235 = sshll.u32 %s6232, 4
          %s6236 = int_to_ptr.hbm [resolvable:$true] %s6235
          %6241 = dma.vmem_to_hbm [thread:$0]  %s6234, 128, %s6236, %s6203, 64, 64, 4
        $region148: #{tpu_custom_call.1} parent=87 // pred_fallthru
          _
      $region88: #{tpu_custom_call.1} parent=5 // pred_fallthru
        _
      %p6242 = scmp.le.s32.totalorder 2, %s40
      // Predicated region
      $region149: #{tpu_custom_call.1} parent=5 // pred_check
        %p6243 = pneg %p6242
      $region150: #{tpu_custom_call.1} parent=5 // pred_check_branch
        %6245 = sbr.rel (%p6243) target = $region152
      $region151: #{tpu_custom_call.1} parent=5 // pred_region
        %s6246 = ssub.s32 %s40, 2
        // Predicated region
        $region153: #{tpu_custom_call.1} parent=151 // pred_check
          %p6247 = pneg %p431
        $region154: #{tpu_custom_call.1} parent=151 // pred_check_branch
          %6249 = sbr.rel (%p6247) target = $region156
        $region155: #{tpu_custom_call.1} parent=151 // pred_region
          %s6250 = sand.u32 %s416, 1
          %s6251 = scalar_lea.sflag [#allocation4], %s6250
          %s6252 = sand.u32 %s416, 1
          %s6253 = smul.addr %s6252, 56
          %s6254 = scalar_lea.vmem [#allocation23], %s6253
          %6256 = dma.done %s6251, 896
        $region156: #{tpu_custom_call.1} parent=151 // pred_fallthru
          _
        // Predicated region
        $region157: #{tpu_custom_call.1} parent=151 // pred_check
          %p6257 = pneg %p457
        $region158: #{tpu_custom_call.1} parent=151 // pred_check_branch
          %6259 = sbr.rel (%p6257) target = $region160
        $region159: #{tpu_custom_call.1} parent=151 // pred_region
          %s6260 = sand.u32 %s442, 1
          %s6261 = scalar_lea.sflag [#allocation25], %s6260
          %s6262 = sand.u32 %s442, 1
          %s6263 = smul.addr %s6262, 8
          %s6264 = scalar_lea.vmem [#allocation24], %s6263
          %6266 = dma.done %s6261, 128
        $region160: #{tpu_custom_call.1} parent=151 // pred_fallthru
          _
      $region152: #{tpu_custom_call.1} parent=5 // pred_fallthru
        _
    $region6: #{tpu_custom_call.1} parent=1 // loop_footer
      %s44 = sadd.s32 1, %s40
    $region7: #{tpu_custom_call.1} parent=1 // loop_footer_branch
      %39 = sbr.rel target = $region3
    $region8: #{tpu_custom_call.1} parent=1 // loop_exit
      _
    %6267 = vsyncpa [#allocation3], 1
    %s6268 = scalar_lea.sflag [#allocation3], 1
    %6269 = vsyncpa %s6268, 1
    %6270 = vsyncpa [#allocation6], 1
    %6271 = vsyncpa [#allocation9], 1
    %6272 = vsyncpa [#allocation12], 1
    %6273 = vsyncpa [#allocation15], 1
    %6274 = vsyncpa [#allocation18], 1
    %6275 = vsyncpa [#allocation21], 1
    %6276 = vsyncpa [#allocation4], 1
    %s6277 = scalar_lea.sflag [#allocation4], 1
    %6278 = vsyncpa %s6277, 1
    %6279 = vsyncpa [#allocation25], 1
    %s6280 = scalar_lea.sflag [#allocation25], 1
    %6281 = vsyncpa %s6280, 1

</llo_original>
